<compile_context>
chip_gen: v5e
topology: v5e:2x2
jax: 0.10.0
libtpu: 0.0.40
codegen_flags: <defaults>
</compile_context>

<pallas_src>
import jax
import jax.numpy as jnp
from jax.experimental import pallas as pl
from jax.experimental.pallas import tpu as pltpu

DIM_1 = 3
DIM_2 = 20
DIM_3 = 10
DIM_4 = 3
NEG_SLOPE = 0.01                     # nn.LeakyReLU() default

LANES = 128
SUBLANES = 8
TILE_QUANTUM = SUBLANES * LANES      # 1024 batch elements = one dense (8,128) slab-row
MAX_TILE_N = 32768                   # 256 sublane-rows x 128 lanes; ~12 MiB peak VMEM per step


def _round_up(n, m):
    return ((n + m - 1) // m) * m


def _leaky_relu(x):
    # max(x, a*x): 2 VALU ops (mul+max) instead of 3 (cmp+mul+select); exact for 0 < a < 1.
    return jnp.maximum(x, NEG_SLOPE * x)


def mlp_kernel(x_ref, w1_ref, b1_ref, w2_ref, b2_ref, w3_ref, b3_ref, o_ref):
    """Fused 3->20->10->3 MLP entirely on the VPU.

    x_ref : [DIM_1, TILE_ROWS, 128] f32 VMEM   (batch packed dense on sublanes x lanes)
    w*/b* : flat 1-D f32 SMEM (PyTorch [out, in] row-major), read as scalars
    o_ref : [DIM_4, TILE_ROWS, 128] f32 VMEM
    All loops over the tiny feature dims are unrolled at trace time; each term is a
    scalar-broadcast FMA on a dense [TILE_ROWS, 128] slab.
    """
    x = [x_ref[j] for j in range(DIM_1)]

    h1 = []
    for k in range(DIM_2):
        acc = b1_ref[k] + w1_ref[k * DIM_1] * x[0]
        for j in range(1, DIM_1):
            acc = acc + w1_ref[k * DIM_1 + j] * x[j]
        h1.append(_leaky_relu(acc))

    h2 = []
    for k in range(DIM_3):
        acc = b2_ref[k] + w2_ref[k * DIM_2] * h1[0]
        for j in range(1, DIM_2):
            acc = acc + w2_ref[k * DIM_2 + j] * h1[j]
        h2.append(_leaky_relu(acc))

    for k in range(DIM_4):
        acc = b3_ref[k] + w3_ref[k * DIM_3] * h2[0]
        for j in range(1, DIM_3):
            acc = acc + w3_ref[k * DIM_3 + j] * h2[j]
        o_ref[k] = acc.astype(o_ref.dtype)


def _pick_tile_n(n):
    # Aim for >=4 grid steps once the batch is large enough (>=2 per TC on v7x, plus
    # pipelining slack), always a multiple of the dense (8,128) quantum, capped by VMEM.
    target = _round_up(-(-max(n, 1) // 4), TILE_QUANTUM)
    return max(TILE_QUANTUM, min(MAX_TILE_N, target))


def net_forward_slabs(x_slabs, params, tile_n):
    """Relayout-free entry point. x_slabs: [DIM_1, R, 128] f32, R*128 a multiple of tile_n."""
    w1, b1, w2, b2, w3, b3 = params
    rows = x_slabs.shape[1]
    n_pad = rows * LANES
    tile_rows = tile_n // LANES
    grid = (n_pad // tile_n,)

    smem = pl.BlockSpec(memory_space=pltpu.MemorySpace.SMEM)

    # VMEM budget: double-buffered in/out tiles + live h1/h2 slabs (+ spill headroom).
    slab_bytes = 4 * tile_n
    vmem_need = slab_bytes * (2 * (DIM_1 + DIM_4) + 2 * (DIM_2 + DIM_3))
    vmem_limit = min(int(vmem_need) + (4 << 20), 32 << 20)

    n_weight_elems = (DIM_1 * DIM_2 + DIM_2 + DIM_2 * DIM_3 + DIM_3 + DIM_3 * DIM_4 + DIM_4)
    cost = pl.CostEstimate(
        flops=2 * (DIM_1 * DIM_2 + DIM_2 * DIM_3 + DIM_3 * DIM_4) * n_pad,
        transcendentals=0,
        bytes_accessed=4 * ((DIM_1 + DIM_4) * n_pad + n_weight_elems),
    )

    return pl.pallas_call(
        mlp_kernel,
        out_shape=jax.ShapeDtypeStruct((DIM_4, rows, LANES), jnp.float32),
        grid=grid,
        in_specs=[
            pl.BlockSpec((DIM_1, tile_rows, LANES), lambda i: (0, i, 0)),  # pipelined x tiles
            smem, smem, smem, smem, smem, smem,                            # resident scalar tables
        ],
        out_specs=pl.BlockSpec((DIM_4, tile_rows, LANES), lambda i: (0, i, 0)),
        compiler_params=pltpu.CompilerParams(
            dimension_semantics=("parallel",),      # batch tiles shard across TCs (v7x)
            vmem_limit_bytes=vmem_limit,
        ),
        cost_estimate=cost,
    )(x_slabs, w1, b1, w2, b2, w3, b3)


def net_forward(x, params, decode=True, tile_n=None):
    """PyTorch-convention forward: x is [N, DIM_1]; returns [N, DIM_4].

    NOTE: the transpose/pad/reshape here are XLA relayout passes outside the kernel; if the
    surrounding graph can keep activations in the [DIM, N/128, 128] slab layout, call
    net_forward_slabs directly and skip them.
    """
    n = x.shape[0]
    if tile_n is None:
        tile_n = _pick_tile_n(n)
    # Clamp caller-supplied tile so it stays inside v7x's smaller VMEM as well.
    tile_n = max(TILE_QUANTUM, min(MAX_TILE_N, _round_up(tile_n, TILE_QUANTUM)))
    n_pad = _round_up(max(n, 1), tile_n)

    xt = jnp.pad(x.astype(jnp.float32).T, ((0, 0), (0, n_pad - n)))
    x_slabs = xt.reshape(DIM_1, n_pad // LANES, LANES)

    out_slabs = net_forward_slabs(x_slabs, params, tile_n)
    out = out_slabs.reshape(DIM_4, n_pad)[:, :n].T
    if decode:
        out = out  # Net.decode() is the identity holder
    return out


def init_params(key):
    """Deterministic synthetic parameters. Weights are PyTorch [out, in] row-major, flattened
    to 1-D so they live in SMEM inside the kernel."""
    ks = jax.random.split(key, 6)
    w1 = jax.random.normal(ks[0], (DIM_2, DIM_1), jnp.float32) * 0.1
    b1 = jax.random.normal(ks[1], (DIM_2,), jnp.float32) * 0.1
    w2 = jax.random.normal(ks[2], (DIM_3, DIM_2), jnp.float32) * 0.1
    b2 = jax.random.normal(ks[3], (DIM_3,), jnp.float32) * 0.1
    w3 = jax.random.normal(ks[4], (DIM_4, DIM_3), jnp.float32) * 0.1
    b3 = jax.random.normal(ks[5], (DIM_4,), jnp.float32) * 0.1
    return (w1.reshape(-1), b1, w2.reshape(-1), b2, w3.reshape(-1), b3)


def reference_forward(x, params):
    """Pure-JAX reference of the same forward pass (PyTorch semantics, f32-accurate dots)."""
    w1, b1, w2, b2, w3, b3 = params
    W1 = w1.reshape(DIM_2, DIM_1)
    W2 = w2.reshape(DIM_3, DIM_2)
    W3 = w3.reshape(DIM_4, DIM_3)
    hp = jax.lax.Precision.HIGHEST
    h = _leaky_relu(jnp.dot(x, W1.T, precision=hp) + b1)
    h = _leaky_relu(jnp.dot(h, W2.T, precision=hp) + b2)
    return jnp.dot(h, W3.T, precision=hp) + b3


if __name__ == "__main__":
    key = jax.random.PRNGKey(0)
    k_x, k_x2, k_p = jax.random.split(key, 3)
    params = init_params(k_p)

    # Small test: single tile (batch pads to one 1024-element slab-row).
    batch = 8
    x = jax.random.normal(k_x, (batch, DIM_1), jnp.float32)
    out = jax.block_until_ready(net_forward(x, params, decode=True))
    ref = reference_forward(x, params)
    assert out.shape == (batch, DIM_4)
    assert jnp.allclose(out, ref, atol=1e-5, rtol=1e-5)

    # Multi-tile test: exercises the batch grid, pipelining, and tail padding.
    batch2 = 2500
    x2 = jax.random.normal(k_x2, (batch2, DIM_1), jnp.float32)
    out2 = jax.block_until_ready(net_forward(x2, params, decode=True, tile_n=1024))
    ref2 = reference_forward(x2, params)
    assert out2.shape == (batch2, DIM_4)
    assert jnp.allclose(out2, ref2, atol=1e-5, rtol=1e-5)

    print("KERNEL_OK")
</pallas_src>

<mosaic_0001>
module attributes {stable_mosaic.version = 11 : i64} {
  func.func @mlp_kernel(%arg0: i32, %arg1: memref<3x8x128xf32, #tpu.memory_space<vmem>>, %arg2: memref<60xf32, #tpu.memory_space<smem>>, %arg3: memref<20xf32, #tpu.memory_space<smem>>, %arg4: memref<200xf32, #tpu.memory_space<smem>>, %arg5: memref<10xf32, #tpu.memory_space<smem>>, %arg6: memref<30xf32, #tpu.memory_space<smem>>, %arg7: memref<3xf32, #tpu.memory_space<smem>>, %arg8: memref<3x8x128xf32, #tpu.memory_space<vmem>>) attributes {dimension_semantics = [#tpu.dimension_semantics<parallel>], iteration_bounds = array<i64: 1>, scalar_prefetch = 0 : i64, scratch_operands = 0 : i64, tpu.core_type = #tpu.core_type<tc>, window_params = [{transform_indices = @transform_0, window_bounds = array<i64: 3, 8, 128>}, {transform_indices = @transform_1, window_bounds = array<i64: 60>}, {transform_indices = @transform_2, window_bounds = array<i64: 20>}, {transform_indices = @transform_3, window_bounds = array<i64: 200>}, {transform_indices = @transform_4, window_bounds = array<i64: 10>}, {transform_indices = @transform_5, window_bounds = array<i64: 30>}, {transform_indices = @transform_6, window_bounds = array<i64: 3>}, {transform_indices = @transform_7, window_bounds = array<i64: 3, 8, 128>}]} {
    %c0 = arith.constant 0 : index
    %c0_0 = arith.constant 0 : index
    %c0_1 = arith.constant 0 : index
    %0 = vector.load %arg1[%c0, %c0_0, %c0_1] : memref<3x8x128xf32, #tpu.memory_space<vmem>>, vector<1x8x128xf32>
    %1 = vector.shape_cast %0 : vector<1x8x128xf32> to vector<8x128xf32>
    %c1 = arith.constant 1 : index
    %c0_2 = arith.constant 0 : index
    %c0_3 = arith.constant 0 : index
    %2 = vector.load %arg1[%c1, %c0_2, %c0_3] : memref<3x8x128xf32, #tpu.memory_space<vmem>>, vector<1x8x128xf32>
    %3 = vector.shape_cast %2 : vector<1x8x128xf32> to vector<8x128xf32>
    %c2 = arith.constant 2 : index
    %c0_4 = arith.constant 0 : index
    %c0_5 = arith.constant 0 : index
    %4 = vector.load %arg1[%c2, %c0_4, %c0_5] : memref<3x8x128xf32, #tpu.memory_space<vmem>>, vector<1x8x128xf32>
    %5 = vector.shape_cast %4 : vector<1x8x128xf32> to vector<8x128xf32>
    %c0_6 = arith.constant 0 : index
    %6 = memref.load %arg3[%c0_6] : memref<20xf32, #tpu.memory_space<smem>>
    %c0_7 = arith.constant 0 : index
    %7 = memref.load %arg2[%c0_7] : memref<60xf32, #tpu.memory_space<smem>>
    %8 = vector.broadcast %7 : f32 to vector<8x128xf32>
    %9 = arith.mulf %8, %1 : vector<8x128xf32>
    %10 = vector.broadcast %6 : f32 to vector<8x128xf32>
    %11 = arith.addf %10, %9 : vector<8x128xf32>
    %c1_8 = arith.constant 1 : index
    %12 = memref.load %arg2[%c1_8] : memref<60xf32, #tpu.memory_space<smem>>
    %13 = vector.broadcast %12 : f32 to vector<8x128xf32>
    %14 = arith.mulf %13, %3 : vector<8x128xf32>
    %15 = arith.addf %11, %14 : vector<8x128xf32>
    %c2_9 = arith.constant 2 : index
    %16 = memref.load %arg2[%c2_9] : memref<60xf32, #tpu.memory_space<smem>>
    %17 = vector.broadcast %16 : f32 to vector<8x128xf32>
    %18 = arith.mulf %17, %5 : vector<8x128xf32>
    %19 = arith.addf %15, %18 : vector<8x128xf32>
    %cst = arith.constant 0.00999999977 : f32
    %20 = vector.broadcast %cst : f32 to vector<8x128xf32>
    %21 = arith.mulf %20, %19 : vector<8x128xf32>
    %22 = arith.maximumf %19, %21 : vector<8x128xf32>
    %c1_10 = arith.constant 1 : index
    %23 = memref.load %arg3[%c1_10] : memref<20xf32, #tpu.memory_space<smem>>
    %c3 = arith.constant 3 : index
    %24 = memref.load %arg2[%c3] : memref<60xf32, #tpu.memory_space<smem>>
    %25 = vector.broadcast %24 : f32 to vector<8x128xf32>
    %26 = arith.mulf %25, %1 : vector<8x128xf32>
    %27 = vector.broadcast %23 : f32 to vector<8x128xf32>
    %28 = arith.addf %27, %26 : vector<8x128xf32>
    %c4 = arith.constant 4 : index
    %29 = memref.load %arg2[%c4] : memref<60xf32, #tpu.memory_space<smem>>
    %30 = vector.broadcast %29 : f32 to vector<8x128xf32>
    %31 = arith.mulf %30, %3 : vector<8x128xf32>
    %32 = arith.addf %28, %31 : vector<8x128xf32>
    %c5 = arith.constant 5 : index
    %33 = memref.load %arg2[%c5] : memref<60xf32, #tpu.memory_space<smem>>
    %34 = vector.broadcast %33 : f32 to vector<8x128xf32>
    %35 = arith.mulf %34, %5 : vector<8x128xf32>
    %36 = arith.addf %32, %35 : vector<8x128xf32>
    %cst_11 = arith.constant 0.00999999977 : f32
    %37 = vector.broadcast %cst_11 : f32 to vector<8x128xf32>
    %38 = arith.mulf %37, %36 : vector<8x128xf32>
    %39 = arith.maximumf %36, %38 : vector<8x128xf32>
    %c2_12 = arith.constant 2 : index
    %40 = memref.load %arg3[%c2_12] : memref<20xf32, #tpu.memory_space<smem>>
    %c6 = arith.constant 6 : index
    %41 = memref.load %arg2[%c6] : memref<60xf32, #tpu.memory_space<smem>>
    %42 = vector.broadcast %41 : f32 to vector<8x128xf32>
    %43 = arith.mulf %42, %1 : vector<8x128xf32>
    %44 = vector.broadcast %40 : f32 to vector<8x128xf32>
    %45 = arith.addf %44, %43 : vector<8x128xf32>
    %c7 = arith.constant 7 : index
    %46 = memref.load %arg2[%c7] : memref<60xf32, #tpu.memory_space<smem>>
    %47 = vector.broadcast %46 : f32 to vector<8x128xf32>
    %48 = arith.mulf %47, %3 : vector<8x128xf32>
    %49 = arith.addf %45, %48 : vector<8x128xf32>
    %c8 = arith.constant 8 : index
    %50 = memref.load %arg2[%c8] : memref<60xf32, #tpu.memory_space<smem>>
    %51 = vector.broadcast %50 : f32 to vector<8x128xf32>
    %52 = arith.mulf %51, %5 : vector<8x128xf32>
    %53 = arith.addf %49, %52 : vector<8x128xf32>
    %cst_13 = arith.constant 0.00999999977 : f32
    %54 = vector.broadcast %cst_13 : f32 to vector<8x128xf32>
    %55 = arith.mulf %54, %53 : vector<8x128xf32>
    %56 = arith.maximumf %53, %55 : vector<8x128xf32>
    %c3_14 = arith.constant 3 : index
    %57 = memref.load %arg3[%c3_14] : memref<20xf32, #tpu.memory_space<smem>>
    %c9 = arith.constant 9 : index
    %58 = memref.load %arg2[%c9] : memref<60xf32, #tpu.memory_space<smem>>
    %59 = vector.broadcast %58 : f32 to vector<8x128xf32>
    %60 = arith.mulf %59, %1 : vector<8x128xf32>
    %61 = vector.broadcast %57 : f32 to vector<8x128xf32>
    %62 = arith.addf %61, %60 : vector<8x128xf32>
    %c10 = arith.constant 10 : index
    %63 = memref.load %arg2[%c10] : memref<60xf32, #tpu.memory_space<smem>>
    %64 = vector.broadcast %63 : f32 to vector<8x128xf32>
    %65 = arith.mulf %64, %3 : vector<8x128xf32>
    %66 = arith.addf %62, %65 : vector<8x128xf32>
    %c11 = arith.constant 11 : index
    %67 = memref.load %arg2[%c11] : memref<60xf32, #tpu.memory_space<smem>>
    %68 = vector.broadcast %67 : f32 to vector<8x128xf32>
    %69 = arith.mulf %68, %5 : vector<8x128xf32>
    %70 = arith.addf %66, %69 : vector<8x128xf32>
    %cst_15 = arith.constant 0.00999999977 : f32
    %71 = vector.broadcast %cst_15 : f32 to vector<8x128xf32>
    %72 = arith.mulf %71, %70 : vector<8x128xf32>
    %73 = arith.maximumf %70, %72 : vector<8x128xf32>
    %c4_16 = arith.constant 4 : index
    %74 = memref.load %arg3[%c4_16] : memref<20xf32, #tpu.memory_space<smem>>
    %c12 = arith.constant 12 : index
    %75 = memref.load %arg2[%c12] : memref<60xf32, #tpu.memory_space<smem>>
    %76 = vector.broadcast %75 : f32 to vector<8x128xf32>
    %77 = arith.mulf %76, %1 : vector<8x128xf32>
    %78 = vector.broadcast %74 : f32 to vector<8x128xf32>
    %79 = arith.addf %78, %77 : vector<8x128xf32>
    %c13 = arith.constant 13 : index
    %80 = memref.load %arg2[%c13] : memref<60xf32, #tpu.memory_space<smem>>
    %81 = vector.broadcast %80 : f32 to vector<8x128xf32>
    %82 = arith.mulf %81, %3 : vector<8x128xf32>
    %83 = arith.addf %79, %82 : vector<8x128xf32>
    %c14 = arith.constant 14 : index
    %84 = memref.load %arg2[%c14] : memref<60xf32, #tpu.memory_space<smem>>
    %85 = vector.broadcast %84 : f32 to vector<8x128xf32>
    %86 = arith.mulf %85, %5 : vector<8x128xf32>
    %87 = arith.addf %83, %86 : vector<8x128xf32>
    %cst_17 = arith.constant 0.00999999977 : f32
    %88 = vector.broadcast %cst_17 : f32 to vector<8x128xf32>
    %89 = arith.mulf %88, %87 : vector<8x128xf32>
    %90 = arith.maximumf %87, %89 : vector<8x128xf32>
    %c5_18 = arith.constant 5 : index
    %91 = memref.load %arg3[%c5_18] : memref<20xf32, #tpu.memory_space<smem>>
    %c15 = arith.constant 15 : index
    %92 = memref.load %arg2[%c15] : memref<60xf32, #tpu.memory_space<smem>>
    %93 = vector.broadcast %92 : f32 to vector<8x128xf32>
    %94 = arith.mulf %93, %1 : vector<8x128xf32>
    %95 = vector.broadcast %91 : f32 to vector<8x128xf32>
    %96 = arith.addf %95, %94 : vector<8x128xf32>
    %c16 = arith.constant 16 : index
    %97 = memref.load %arg2[%c16] : memref<60xf32, #tpu.memory_space<smem>>
    %98 = vector.broadcast %97 : f32 to vector<8x128xf32>
    %99 = arith.mulf %98, %3 : vector<8x128xf32>
    %100 = arith.addf %96, %99 : vector<8x128xf32>
    %c17 = arith.constant 17 : index
    %101 = memref.load %arg2[%c17] : memref<60xf32, #tpu.memory_space<smem>>
    %102 = vector.broadcast %101 : f32 to vector<8x128xf32>
    %103 = arith.mulf %102, %5 : vector<8x128xf32>
    %104 = arith.addf %100, %103 : vector<8x128xf32>
    %cst_19 = arith.constant 0.00999999977 : f32
    %105 = vector.broadcast %cst_19 : f32 to vector<8x128xf32>
    %106 = arith.mulf %105, %104 : vector<8x128xf32>
    %107 = arith.maximumf %104, %106 : vector<8x128xf32>
    %c6_20 = arith.constant 6 : index
    %108 = memref.load %arg3[%c6_20] : memref<20xf32, #tpu.memory_space<smem>>
    %c18 = arith.constant 18 : index
    %109 = memref.load %arg2[%c18] : memref<60xf32, #tpu.memory_space<smem>>
    %110 = vector.broadcast %109 : f32 to vector<8x128xf32>
    %111 = arith.mulf %110, %1 : vector<8x128xf32>
    %112 = vector.broadcast %108 : f32 to vector<8x128xf32>
    %113 = arith.addf %112, %111 : vector<8x128xf32>
    %c19 = arith.constant 19 : index
    %114 = memref.load %arg2[%c19] : memref<60xf32, #tpu.memory_space<smem>>
    %115 = vector.broadcast %114 : f32 to vector<8x128xf32>
    %116 = arith.mulf %115, %3 : vector<8x128xf32>
    %117 = arith.addf %113, %116 : vector<8x128xf32>
    %c20 = arith.constant 20 : index
    %118 = memref.load %arg2[%c20] : memref<60xf32, #tpu.memory_space<smem>>
    %119 = vector.broadcast %118 : f32 to vector<8x128xf32>
    %120 = arith.mulf %119, %5 : vector<8x128xf32>
    %121 = arith.addf %117, %120 : vector<8x128xf32>
    %cst_21 = arith.constant 0.00999999977 : f32
    %122 = vector.broadcast %cst_21 : f32 to vector<8x128xf32>
    %123 = arith.mulf %122, %121 : vector<8x128xf32>
    %124 = arith.maximumf %121, %123 : vector<8x128xf32>
    %c7_22 = arith.constant 7 : index
    %125 = memref.load %arg3[%c7_22] : memref<20xf32, #tpu.memory_space<smem>>
    %c21 = arith.constant 21 : index
    %126 = memref.load %arg2[%c21] : memref<60xf32, #tpu.memory_space<smem>>
    %127 = vector.broadcast %126 : f32 to vector<8x128xf32>
    %128 = arith.mulf %127, %1 : vector<8x128xf32>
    %129 = vector.broadcast %125 : f32 to vector<8x128xf32>
    %130 = arith.addf %129, %128 : vector<8x128xf32>
    %c22 = arith.constant 22 : index
    %131 = memref.load %arg2[%c22] : memref<60xf32, #tpu.memory_space<smem>>
    %132 = vector.broadcast %131 : f32 to vector<8x128xf32>
    %133 = arith.mulf %132, %3 : vector<8x128xf32>
    %134 = arith.addf %130, %133 : vector<8x128xf32>
    %c23 = arith.constant 23 : index
    %135 = memref.load %arg2[%c23] : memref<60xf32, #tpu.memory_space<smem>>
    %136 = vector.broadcast %135 : f32 to vector<8x128xf32>
    %137 = arith.mulf %136, %5 : vector<8x128xf32>
    %138 = arith.addf %134, %137 : vector<8x128xf32>
    %cst_23 = arith.constant 0.00999999977 : f32
    %139 = vector.broadcast %cst_23 : f32 to vector<8x128xf32>
    %140 = arith.mulf %139, %138 : vector<8x128xf32>
    %141 = arith.maximumf %138, %140 : vector<8x128xf32>
    %c8_24 = arith.constant 8 : index
    %142 = memref.load %arg3[%c8_24] : memref<20xf32, #tpu.memory_space<smem>>
    %c24 = arith.constant 24 : index
    %143 = memref.load %arg2[%c24] : memref<60xf32, #tpu.memory_space<smem>>
    %144 = vector.broadcast %143 : f32 to vector<8x128xf32>
    %145 = arith.mulf %144, %1 : vector<8x128xf32>
    %146 = vector.broadcast %142 : f32 to vector<8x128xf32>
    %147 = arith.addf %146, %145 : vector<8x128xf32>
    %c25 = arith.constant 25 : index
    %148 = memref.load %arg2[%c25] : memref<60xf32, #tpu.memory_space<smem>>
    %149 = vector.broadcast %148 : f32 to vector<8x128xf32>
    %150 = arith.mulf %149, %3 : vector<8x128xf32>
    %151 = arith.addf %147, %150 : vector<8x128xf32>
    %c26 = arith.constant 26 : index
    %152 = memref.load %arg2[%c26] : memref<60xf32, #tpu.memory_space<smem>>
    %153 = vector.broadcast %152 : f32 to vector<8x128xf32>
    %154 = arith.mulf %153, %5 : vector<8x128xf32>
    %155 = arith.addf %151, %154 : vector<8x128xf32>
    %cst_25 = arith.constant 0.00999999977 : f32
    %156 = vector.broadcast %cst_25 : f32 to vector<8x128xf32>
    %157 = arith.mulf %156, %155 : vector<8x128xf32>
    %158 = arith.maximumf %155, %157 : vector<8x128xf32>
    %c9_26 = arith.constant 9 : index
    %159 = memref.load %arg3[%c9_26] : memref<20xf32, #tpu.memory_space<smem>>
    %c27 = arith.constant 27 : index
    %160 = memref.load %arg2[%c27] : memref<60xf32, #tpu.memory_space<smem>>
    %161 = vector.broadcast %160 : f32 to vector<8x128xf32>
    %162 = arith.mulf %161, %1 : vector<8x128xf32>
    %163 = vector.broadcast %159 : f32 to vector<8x128xf32>
    %164 = arith.addf %163, %162 : vector<8x128xf32>
    %c28 = arith.constant 28 : index
    %165 = memref.load %arg2[%c28] : memref<60xf32, #tpu.memory_space<smem>>
    %166 = vector.broadcast %165 : f32 to vector<8x128xf32>
    %167 = arith.mulf %166, %3 : vector<8x128xf32>
    %168 = arith.addf %164, %167 : vector<8x128xf32>
    %c29 = arith.constant 29 : index
    %169 = memref.load %arg2[%c29] : memref<60xf32, #tpu.memory_space<smem>>
    %170 = vector.broadcast %169 : f32 to vector<8x128xf32>
    %171 = arith.mulf %170, %5 : vector<8x128xf32>
    %172 = arith.addf %168, %171 : vector<8x128xf32>
    %cst_27 = arith.constant 0.00999999977 : f32
    %173 = vector.broadcast %cst_27 : f32 to vector<8x128xf32>
    %174 = arith.mulf %173, %172 : vector<8x128xf32>
    %175 = arith.maximumf %172, %174 : vector<8x128xf32>
    %c10_28 = arith.constant 10 : index
    %176 = memref.load %arg3[%c10_28] : memref<20xf32, #tpu.memory_space<smem>>
    %c30 = arith.constant 30 : index
    %177 = memref.load %arg2[%c30] : memref<60xf32, #tpu.memory_space<smem>>
    %178 = vector.broadcast %177 : f32 to vector<8x128xf32>
    %179 = arith.mulf %178, %1 : vector<8x128xf32>
    %180 = vector.broadcast %176 : f32 to vector<8x128xf32>
    %181 = arith.addf %180, %179 : vector<8x128xf32>
    %c31 = arith.constant 31 : index
    %182 = memref.load %arg2[%c31] : memref<60xf32, #tpu.memory_space<smem>>
    %183 = vector.broadcast %182 : f32 to vector<8x128xf32>
    %184 = arith.mulf %183, %3 : vector<8x128xf32>
    %185 = arith.addf %181, %184 : vector<8x128xf32>
    %c32 = arith.constant 32 : index
    %186 = memref.load %arg2[%c32] : memref<60xf32, #tpu.memory_space<smem>>
    %187 = vector.broadcast %186 : f32 to vector<8x128xf32>
    %188 = arith.mulf %187, %5 : vector<8x128xf32>
    %189 = arith.addf %185, %188 : vector<8x128xf32>
    %cst_29 = arith.constant 0.00999999977 : f32
    %190 = vector.broadcast %cst_29 : f32 to vector<8x128xf32>
    %191 = arith.mulf %190, %189 : vector<8x128xf32>
    %192 = arith.maximumf %189, %191 : vector<8x128xf32>
    %c11_30 = arith.constant 11 : index
    %193 = memref.load %arg3[%c11_30] : memref<20xf32, #tpu.memory_space<smem>>
    %c33 = arith.constant 33 : index
    %194 = memref.load %arg2[%c33] : memref<60xf32, #tpu.memory_space<smem>>
    %195 = vector.broadcast %194 : f32 to vector<8x128xf32>
    %196 = arith.mulf %195, %1 : vector<8x128xf32>
    %197 = vector.broadcast %193 : f32 to vector<8x128xf32>
    %198 = arith.addf %197, %196 : vector<8x128xf32>
    %c34 = arith.constant 34 : index
    %199 = memref.load %arg2[%c34] : memref<60xf32, #tpu.memory_space<smem>>
    %200 = vector.broadcast %199 : f32 to vector<8x128xf32>
    %201 = arith.mulf %200, %3 : vector<8x128xf32>
    %202 = arith.addf %198, %201 : vector<8x128xf32>
    %c35 = arith.constant 35 : index
    %203 = memref.load %arg2[%c35] : memref<60xf32, #tpu.memory_space<smem>>
    %204 = vector.broadcast %203 : f32 to vector<8x128xf32>
    %205 = arith.mulf %204, %5 : vector<8x128xf32>
    %206 = arith.addf %202, %205 : vector<8x128xf32>
    %cst_31 = arith.constant 0.00999999977 : f32
    %207 = vector.broadcast %cst_31 : f32 to vector<8x128xf32>
    %208 = arith.mulf %207, %206 : vector<8x128xf32>
    %209 = arith.maximumf %206, %208 : vector<8x128xf32>
    %c12_32 = arith.constant 12 : index
    %210 = memref.load %arg3[%c12_32] : memref<20xf32, #tpu.memory_space<smem>>
    %c36 = arith.constant 36 : index
    %211 = memref.load %arg2[%c36] : memref<60xf32, #tpu.memory_space<smem>>
    %212 = vector.broadcast %211 : f32 to vector<8x128xf32>
    %213 = arith.mulf %212, %1 : vector<8x128xf32>
    %214 = vector.broadcast %210 : f32 to vector<8x128xf32>
    %215 = arith.addf %214, %213 : vector<8x128xf32>
    %c37 = arith.constant 37 : index
    %216 = memref.load %arg2[%c37] : memref<60xf32, #tpu.memory_space<smem>>
    %217 = vector.broadcast %216 : f32 to vector<8x128xf32>
    %218 = arith.mulf %217, %3 : vector<8x128xf32>
    %219 = arith.addf %215, %218 : vector<8x128xf32>
    %c38 = arith.constant 38 : index
    %220 = memref.load %arg2[%c38] : memref<60xf32, #tpu.memory_space<smem>>
    %221 = vector.broadcast %220 : f32 to vector<8x128xf32>
    %222 = arith.mulf %221, %5 : vector<8x128xf32>
    %223 = arith.addf %219, %222 : vector<8x128xf32>
    %cst_33 = arith.constant 0.00999999977 : f32
    %224 = vector.broadcast %cst_33 : f32 to vector<8x128xf32>
    %225 = arith.mulf %224, %223 : vector<8x128xf32>
    %226 = arith.maximumf %223, %225 : vector<8x128xf32>
    %c13_34 = arith.constant 13 : index
    %227 = memref.load %arg3[%c13_34] : memref<20xf32, #tpu.memory_space<smem>>
    %c39 = arith.constant 39 : index
    %228 = memref.load %arg2[%c39] : memref<60xf32, #tpu.memory_space<smem>>
    %229 = vector.broadcast %228 : f32 to vector<8x128xf32>
    %230 = arith.mulf %229, %1 : vector<8x128xf32>
    %231 = vector.broadcast %227 : f32 to vector<8x128xf32>
    %232 = arith.addf %231, %230 : vector<8x128xf32>
    %c40 = arith.constant 40 : index
    %233 = memref.load %arg2[%c40] : memref<60xf32, #tpu.memory_space<smem>>
    %234 = vector.broadcast %233 : f32 to vector<8x128xf32>
    %235 = arith.mulf %234, %3 : vector<8x128xf32>
    %236 = arith.addf %232, %235 : vector<8x128xf32>
    %c41 = arith.constant 41 : index
    %237 = memref.load %arg2[%c41] : memref<60xf32, #tpu.memory_space<smem>>
    %238 = vector.broadcast %237 : f32 to vector<8x128xf32>
    %239 = arith.mulf %238, %5 : vector<8x128xf32>
    %240 = arith.addf %236, %239 : vector<8x128xf32>
    %cst_35 = arith.constant 0.00999999977 : f32
    %241 = vector.broadcast %cst_35 : f32 to vector<8x128xf32>
    %242 = arith.mulf %241, %240 : vector<8x128xf32>
    %243 = arith.maximumf %240, %242 : vector<8x128xf32>
    %c14_36 = arith.constant 14 : index
    %244 = memref.load %arg3[%c14_36] : memref<20xf32, #tpu.memory_space<smem>>
    %c42 = arith.constant 42 : index
    %245 = memref.load %arg2[%c42] : memref<60xf32, #tpu.memory_space<smem>>
    %246 = vector.broadcast %245 : f32 to vector<8x128xf32>
    %247 = arith.mulf %246, %1 : vector<8x128xf32>
    %248 = vector.broadcast %244 : f32 to vector<8x128xf32>
    %249 = arith.addf %248, %247 : vector<8x128xf32>
    %c43 = arith.constant 43 : index
    %250 = memref.load %arg2[%c43] : memref<60xf32, #tpu.memory_space<smem>>
    %251 = vector.broadcast %250 : f32 to vector<8x128xf32>
    %252 = arith.mulf %251, %3 : vector<8x128xf32>
    %253 = arith.addf %249, %252 : vector<8x128xf32>
    %c44 = arith.constant 44 : index
    %254 = memref.load %arg2[%c44] : memref<60xf32, #tpu.memory_space<smem>>
    %255 = vector.broadcast %254 : f32 to vector<8x128xf32>
    %256 = arith.mulf %255, %5 : vector<8x128xf32>
    %257 = arith.addf %253, %256 : vector<8x128xf32>
    %cst_37 = arith.constant 0.00999999977 : f32
    %258 = vector.broadcast %cst_37 : f32 to vector<8x128xf32>
    %259 = arith.mulf %258, %257 : vector<8x128xf32>
    %260 = arith.maximumf %257, %259 : vector<8x128xf32>
    %c15_38 = arith.constant 15 : index
    %261 = memref.load %arg3[%c15_38] : memref<20xf32, #tpu.memory_space<smem>>
    %c45 = arith.constant 45 : index
    %262 = memref.load %arg2[%c45] : memref<60xf32, #tpu.memory_space<smem>>
    %263 = vector.broadcast %262 : f32 to vector<8x128xf32>
    %264 = arith.mulf %263, %1 : vector<8x128xf32>
    %265 = vector.broadcast %261 : f32 to vector<8x128xf32>
    %266 = arith.addf %265, %264 : vector<8x128xf32>
    %c46 = arith.constant 46 : index
    %267 = memref.load %arg2[%c46] : memref<60xf32, #tpu.memory_space<smem>>
    %268 = vector.broadcast %267 : f32 to vector<8x128xf32>
    %269 = arith.mulf %268, %3 : vector<8x128xf32>
    %270 = arith.addf %266, %269 : vector<8x128xf32>
    %c47 = arith.constant 47 : index
    %271 = memref.load %arg2[%c47] : memref<60xf32, #tpu.memory_space<smem>>
    %272 = vector.broadcast %271 : f32 to vector<8x128xf32>
    %273 = arith.mulf %272, %5 : vector<8x128xf32>
    %274 = arith.addf %270, %273 : vector<8x128xf32>
    %cst_39 = arith.constant 0.00999999977 : f32
    %275 = vector.broadcast %cst_39 : f32 to vector<8x128xf32>
    %276 = arith.mulf %275, %274 : vector<8x128xf32>
    %277 = arith.maximumf %274, %276 : vector<8x128xf32>
    %c16_40 = arith.constant 16 : index
    %278 = memref.load %arg3[%c16_40] : memref<20xf32, #tpu.memory_space<smem>>
    %c48 = arith.constant 48 : index
    %279 = memref.load %arg2[%c48] : memref<60xf32, #tpu.memory_space<smem>>
    %280 = vector.broadcast %279 : f32 to vector<8x128xf32>
    %281 = arith.mulf %280, %1 : vector<8x128xf32>
    %282 = vector.broadcast %278 : f32 to vector<8x128xf32>
    %283 = arith.addf %282, %281 : vector<8x128xf32>
    %c49 = arith.constant 49 : index
    %284 = memref.load %arg2[%c49] : memref<60xf32, #tpu.memory_space<smem>>
    %285 = vector.broadcast %284 : f32 to vector<8x128xf32>
    %286 = arith.mulf %285, %3 : vector<8x128xf32>
    %287 = arith.addf %283, %286 : vector<8x128xf32>
    %c50 = arith.constant 50 : index
    %288 = memref.load %arg2[%c50] : memref<60xf32, #tpu.memory_space<smem>>
    %289 = vector.broadcast %288 : f32 to vector<8x128xf32>
    %290 = arith.mulf %289, %5 : vector<8x128xf32>
    %291 = arith.addf %287, %290 : vector<8x128xf32>
    %cst_41 = arith.constant 0.00999999977 : f32
    %292 = vector.broadcast %cst_41 : f32 to vector<8x128xf32>
    %293 = arith.mulf %292, %291 : vector<8x128xf32>
    %294 = arith.maximumf %291, %293 : vector<8x128xf32>
    %c17_42 = arith.constant 17 : index
    %295 = memref.load %arg3[%c17_42] : memref<20xf32, #tpu.memory_space<smem>>
    %c51 = arith.constant 51 : index
    %296 = memref.load %arg2[%c51] : memref<60xf32, #tpu.memory_space<smem>>
    %297 = vector.broadcast %296 : f32 to vector<8x128xf32>
    %298 = arith.mulf %297, %1 : vector<8x128xf32>
    %299 = vector.broadcast %295 : f32 to vector<8x128xf32>
    %300 = arith.addf %299, %298 : vector<8x128xf32>
    %c52 = arith.constant 52 : index
    %301 = memref.load %arg2[%c52] : memref<60xf32, #tpu.memory_space<smem>>
    %302 = vector.broadcast %301 : f32 to vector<8x128xf32>
    %303 = arith.mulf %302, %3 : vector<8x128xf32>
    %304 = arith.addf %300, %303 : vector<8x128xf32>
    %c53 = arith.constant 53 : index
    %305 = memref.load %arg2[%c53] : memref<60xf32, #tpu.memory_space<smem>>
    %306 = vector.broadcast %305 : f32 to vector<8x128xf32>
    %307 = arith.mulf %306, %5 : vector<8x128xf32>
    %308 = arith.addf %304, %307 : vector<8x128xf32>
    %cst_43 = arith.constant 0.00999999977 : f32
    %309 = vector.broadcast %cst_43 : f32 to vector<8x128xf32>
    %310 = arith.mulf %309, %308 : vector<8x128xf32>
    %311 = arith.maximumf %308, %310 : vector<8x128xf32>
    %c18_44 = arith.constant 18 : index
    %312 = memref.load %arg3[%c18_44] : memref<20xf32, #tpu.memory_space<smem>>
    %c54 = arith.constant 54 : index
    %313 = memref.load %arg2[%c54] : memref<60xf32, #tpu.memory_space<smem>>
    %314 = vector.broadcast %313 : f32 to vector<8x128xf32>
    %315 = arith.mulf %314, %1 : vector<8x128xf32>
    %316 = vector.broadcast %312 : f32 to vector<8x128xf32>
    %317 = arith.addf %316, %315 : vector<8x128xf32>
    %c55 = arith.constant 55 : index
    %318 = memref.load %arg2[%c55] : memref<60xf32, #tpu.memory_space<smem>>
    %319 = vector.broadcast %318 : f32 to vector<8x128xf32>
    %320 = arith.mulf %319, %3 : vector<8x128xf32>
    %321 = arith.addf %317, %320 : vector<8x128xf32>
    %c56 = arith.constant 56 : index
    %322 = memref.load %arg2[%c56] : memref<60xf32, #tpu.memory_space<smem>>
    %323 = vector.broadcast %322 : f32 to vector<8x128xf32>
    %324 = arith.mulf %323, %5 : vector<8x128xf32>
    %325 = arith.addf %321, %324 : vector<8x128xf32>
    %cst_45 = arith.constant 0.00999999977 : f32
    %326 = vector.broadcast %cst_45 : f32 to vector<8x128xf32>
    %327 = arith.mulf %326, %325 : vector<8x128xf32>
    %328 = arith.maximumf %325, %327 : vector<8x128xf32>
    %c19_46 = arith.constant 19 : index
    %329 = memref.load %arg3[%c19_46] : memref<20xf32, #tpu.memory_space<smem>>
    %c57 = arith.constant 57 : index
    %330 = memref.load %arg2[%c57] : memref<60xf32, #tpu.memory_space<smem>>
    %331 = vector.broadcast %330 : f32 to vector<8x128xf32>
    %332 = arith.mulf %331, %1 : vector<8x128xf32>
    %333 = vector.broadcast %329 : f32 to vector<8x128xf32>
    %334 = arith.addf %333, %332 : vector<8x128xf32>
    %c58 = arith.constant 58 : index
    %335 = memref.load %arg2[%c58] : memref<60xf32, #tpu.memory_space<smem>>
    %336 = vector.broadcast %335 : f32 to vector<8x128xf32>
    %337 = arith.mulf %336, %3 : vector<8x128xf32>
    %338 = arith.addf %334, %337 : vector<8x128xf32>
    %c59 = arith.constant 59 : index
    %339 = memref.load %arg2[%c59] : memref<60xf32, #tpu.memory_space<smem>>
    %340 = vector.broadcast %339 : f32 to vector<8x128xf32>
    %341 = arith.mulf %340, %5 : vector<8x128xf32>
    %342 = arith.addf %338, %341 : vector<8x128xf32>
    %cst_47 = arith.constant 0.00999999977 : f32
    %343 = vector.broadcast %cst_47 : f32 to vector<8x128xf32>
    %344 = arith.mulf %343, %342 : vector<8x128xf32>
    %345 = arith.maximumf %342, %344 : vector<8x128xf32>
    %c0_48 = arith.constant 0 : index
    %346 = memref.load %arg5[%c0_48] : memref<10xf32, #tpu.memory_space<smem>>
    %c0_49 = arith.constant 0 : index
    %347 = memref.load %arg4[%c0_49] : memref<200xf32, #tpu.memory_space<smem>>
    %348 = vector.broadcast %347 : f32 to vector<8x128xf32>
    %349 = arith.mulf %348, %22 : vector<8x128xf32>
    %350 = vector.broadcast %346 : f32 to vector<8x128xf32>
    %351 = arith.addf %350, %349 : vector<8x128xf32>
    %c1_50 = arith.constant 1 : index
    %352 = memref.load %arg4[%c1_50] : memref<200xf32, #tpu.memory_space<smem>>
    %353 = vector.broadcast %352 : f32 to vector<8x128xf32>
    %354 = arith.mulf %353, %39 : vector<8x128xf32>
    %355 = arith.addf %351, %354 : vector<8x128xf32>
    %c2_51 = arith.constant 2 : index
    %356 = memref.load %arg4[%c2_51] : memref<200xf32, #tpu.memory_space<smem>>
    %357 = vector.broadcast %356 : f32 to vector<8x128xf32>
    %358 = arith.mulf %357, %56 : vector<8x128xf32>
    %359 = arith.addf %355, %358 : vector<8x128xf32>
    %c3_52 = arith.constant 3 : index
    %360 = memref.load %arg4[%c3_52] : memref<200xf32, #tpu.memory_space<smem>>
    %361 = vector.broadcast %360 : f32 to vector<8x128xf32>
    %362 = arith.mulf %361, %73 : vector<8x128xf32>
    %363 = arith.addf %359, %362 : vector<8x128xf32>
    %c4_53 = arith.constant 4 : index
    %364 = memref.load %arg4[%c4_53] : memref<200xf32, #tpu.memory_space<smem>>
    %365 = vector.broadcast %364 : f32 to vector<8x128xf32>
    %366 = arith.mulf %365, %90 : vector<8x128xf32>
    %367 = arith.addf %363, %366 : vector<8x128xf32>
    %c5_54 = arith.constant 5 : index
    %368 = memref.load %arg4[%c5_54] : memref<200xf32, #tpu.memory_space<smem>>
    %369 = vector.broadcast %368 : f32 to vector<8x128xf32>
    %370 = arith.mulf %369, %107 : vector<8x128xf32>
    %371 = arith.addf %367, %370 : vector<8x128xf32>
    %c6_55 = arith.constant 6 : index
    %372 = memref.load %arg4[%c6_55] : memref<200xf32, #tpu.memory_space<smem>>
    %373 = vector.broadcast %372 : f32 to vector<8x128xf32>
    %374 = arith.mulf %373, %124 : vector<8x128xf32>
    %375 = arith.addf %371, %374 : vector<8x128xf32>
    %c7_56 = arith.constant 7 : index
    %376 = memref.load %arg4[%c7_56] : memref<200xf32, #tpu.memory_space<smem>>
    %377 = vector.broadcast %376 : f32 to vector<8x128xf32>
    %378 = arith.mulf %377, %141 : vector<8x128xf32>
    %379 = arith.addf %375, %378 : vector<8x128xf32>
    %c8_57 = arith.constant 8 : index
    %380 = memref.load %arg4[%c8_57] : memref<200xf32, #tpu.memory_space<smem>>
    %381 = vector.broadcast %380 : f32 to vector<8x128xf32>
    %382 = arith.mulf %381, %158 : vector<8x128xf32>
    %383 = arith.addf %379, %382 : vector<8x128xf32>
    %c9_58 = arith.constant 9 : index
    %384 = memref.load %arg4[%c9_58] : memref<200xf32, #tpu.memory_space<smem>>
    %385 = vector.broadcast %384 : f32 to vector<8x128xf32>
    %386 = arith.mulf %385, %175 : vector<8x128xf32>
    %387 = arith.addf %383, %386 : vector<8x128xf32>
    %c10_59 = arith.constant 10 : index
    %388 = memref.load %arg4[%c10_59] : memref<200xf32, #tpu.memory_space<smem>>
    %389 = vector.broadcast %388 : f32 to vector<8x128xf32>
    %390 = arith.mulf %389, %192 : vector<8x128xf32>
    %391 = arith.addf %387, %390 : vector<8x128xf32>
    %c11_60 = arith.constant 11 : index
    %392 = memref.load %arg4[%c11_60] : memref<200xf32, #tpu.memory_space<smem>>
    %393 = vector.broadcast %392 : f32 to vector<8x128xf32>
    %394 = arith.mulf %393, %209 : vector<8x128xf32>
    %395 = arith.addf %391, %394 : vector<8x128xf32>
    %c12_61 = arith.constant 12 : index
    %396 = memref.load %arg4[%c12_61] : memref<200xf32, #tpu.memory_space<smem>>
    %397 = vector.broadcast %396 : f32 to vector<8x128xf32>
    %398 = arith.mulf %397, %226 : vector<8x128xf32>
    %399 = arith.addf %395, %398 : vector<8x128xf32>
    %c13_62 = arith.constant 13 : index
    %400 = memref.load %arg4[%c13_62] : memref<200xf32, #tpu.memory_space<smem>>
    %401 = vector.broadcast %400 : f32 to vector<8x128xf32>
    %402 = arith.mulf %401, %243 : vector<8x128xf32>
    %403 = arith.addf %399, %402 : vector<8x128xf32>
    %c14_63 = arith.constant 14 : index
    %404 = memref.load %arg4[%c14_63] : memref<200xf32, #tpu.memory_space<smem>>
    %405 = vector.broadcast %404 : f32 to vector<8x128xf32>
    %406 = arith.mulf %405, %260 : vector<8x128xf32>
    %407 = arith.addf %403, %406 : vector<8x128xf32>
    %c15_64 = arith.constant 15 : index
    %408 = memref.load %arg4[%c15_64] : memref<200xf32, #tpu.memory_space<smem>>
    %409 = vector.broadcast %408 : f32 to vector<8x128xf32>
    %410 = arith.mulf %409, %277 : vector<8x128xf32>
    %411 = arith.addf %407, %410 : vector<8x128xf32>
    %c16_65 = arith.constant 16 : index
    %412 = memref.load %arg4[%c16_65] : memref<200xf32, #tpu.memory_space<smem>>
    %413 = vector.broadcast %412 : f32 to vector<8x128xf32>
    %414 = arith.mulf %413, %294 : vector<8x128xf32>
    %415 = arith.addf %411, %414 : vector<8x128xf32>
    %c17_66 = arith.constant 17 : index
    %416 = memref.load %arg4[%c17_66] : memref<200xf32, #tpu.memory_space<smem>>
    %417 = vector.broadcast %416 : f32 to vector<8x128xf32>
    %418 = arith.mulf %417, %311 : vector<8x128xf32>
    %419 = arith.addf %415, %418 : vector<8x128xf32>
    %c18_67 = arith.constant 18 : index
    %420 = memref.load %arg4[%c18_67] : memref<200xf32, #tpu.memory_space<smem>>
    %421 = vector.broadcast %420 : f32 to vector<8x128xf32>
    %422 = arith.mulf %421, %328 : vector<8x128xf32>
    %423 = arith.addf %419, %422 : vector<8x128xf32>
    %c19_68 = arith.constant 19 : index
    %424 = memref.load %arg4[%c19_68] : memref<200xf32, #tpu.memory_space<smem>>
    %425 = vector.broadcast %424 : f32 to vector<8x128xf32>
    %426 = arith.mulf %425, %345 : vector<8x128xf32>
    %427 = arith.addf %423, %426 : vector<8x128xf32>
    %cst_69 = arith.constant 0.00999999977 : f32
    %428 = vector.broadcast %cst_69 : f32 to vector<8x128xf32>
    %429 = arith.mulf %428, %427 : vector<8x128xf32>
    %430 = arith.maximumf %427, %429 : vector<8x128xf32>
    %c1_70 = arith.constant 1 : index
    %431 = memref.load %arg5[%c1_70] : memref<10xf32, #tpu.memory_space<smem>>
    %c20_71 = arith.constant 20 : index
    %432 = memref.load %arg4[%c20_71] : memref<200xf32, #tpu.memory_space<smem>>
    %433 = vector.broadcast %432 : f32 to vector<8x128xf32>
    %434 = arith.mulf %433, %22 : vector<8x128xf32>
    %435 = vector.broadcast %431 : f32 to vector<8x128xf32>
    %436 = arith.addf %435, %434 : vector<8x128xf32>
    %c21_72 = arith.constant 21 : index
    %437 = memref.load %arg4[%c21_72] : memref<200xf32, #tpu.memory_space<smem>>
    %438 = vector.broadcast %437 : f32 to vector<8x128xf32>
    %439 = arith.mulf %438, %39 : vector<8x128xf32>
    %440 = arith.addf %436, %439 : vector<8x128xf32>
    %c22_73 = arith.constant 22 : index
    %441 = memref.load %arg4[%c22_73] : memref<200xf32, #tpu.memory_space<smem>>
    %442 = vector.broadcast %441 : f32 to vector<8x128xf32>
    %443 = arith.mulf %442, %56 : vector<8x128xf32>
    %444 = arith.addf %440, %443 : vector<8x128xf32>
    %c23_74 = arith.constant 23 : index
    %445 = memref.load %arg4[%c23_74] : memref<200xf32, #tpu.memory_space<smem>>
    %446 = vector.broadcast %445 : f32 to vector<8x128xf32>
    %447 = arith.mulf %446, %73 : vector<8x128xf32>
    %448 = arith.addf %444, %447 : vector<8x128xf32>
    %c24_75 = arith.constant 24 : index
    %449 = memref.load %arg4[%c24_75] : memref<200xf32, #tpu.memory_space<smem>>
    %450 = vector.broadcast %449 : f32 to vector<8x128xf32>
    %451 = arith.mulf %450, %90 : vector<8x128xf32>
    %452 = arith.addf %448, %451 : vector<8x128xf32>
    %c25_76 = arith.constant 25 : index
    %453 = memref.load %arg4[%c25_76] : memref<200xf32, #tpu.memory_space<smem>>
    %454 = vector.broadcast %453 : f32 to vector<8x128xf32>
    %455 = arith.mulf %454, %107 : vector<8x128xf32>
    %456 = arith.addf %452, %455 : vector<8x128xf32>
    %c26_77 = arith.constant 26 : index
    %457 = memref.load %arg4[%c26_77] : memref<200xf32, #tpu.memory_space<smem>>
    %458 = vector.broadcast %457 : f32 to vector<8x128xf32>
    %459 = arith.mulf %458, %124 : vector<8x128xf32>
    %460 = arith.addf %456, %459 : vector<8x128xf32>
    %c27_78 = arith.constant 27 : index
    %461 = memref.load %arg4[%c27_78] : memref<200xf32, #tpu.memory_space<smem>>
    %462 = vector.broadcast %461 : f32 to vector<8x128xf32>
    %463 = arith.mulf %462, %141 : vector<8x128xf32>
    %464 = arith.addf %460, %463 : vector<8x128xf32>
    %c28_79 = arith.constant 28 : index
    %465 = memref.load %arg4[%c28_79] : memref<200xf32, #tpu.memory_space<smem>>
    %466 = vector.broadcast %465 : f32 to vector<8x128xf32>
    %467 = arith.mulf %466, %158 : vector<8x128xf32>
    %468 = arith.addf %464, %467 : vector<8x128xf32>
    %c29_80 = arith.constant 29 : index
    %469 = memref.load %arg4[%c29_80] : memref<200xf32, #tpu.memory_space<smem>>
    %470 = vector.broadcast %469 : f32 to vector<8x128xf32>
    %471 = arith.mulf %470, %175 : vector<8x128xf32>
    %472 = arith.addf %468, %471 : vector<8x128xf32>
    %c30_81 = arith.constant 30 : index
    %473 = memref.load %arg4[%c30_81] : memref<200xf32, #tpu.memory_space<smem>>
    %474 = vector.broadcast %473 : f32 to vector<8x128xf32>
    %475 = arith.mulf %474, %192 : vector<8x128xf32>
    %476 = arith.addf %472, %475 : vector<8x128xf32>
    %c31_82 = arith.constant 31 : index
    %477 = memref.load %arg4[%c31_82] : memref<200xf32, #tpu.memory_space<smem>>
    %478 = vector.broadcast %477 : f32 to vector<8x128xf32>
    %479 = arith.mulf %478, %209 : vector<8x128xf32>
    %480 = arith.addf %476, %479 : vector<8x128xf32>
    %c32_83 = arith.constant 32 : index
    %481 = memref.load %arg4[%c32_83] : memref<200xf32, #tpu.memory_space<smem>>
    %482 = vector.broadcast %481 : f32 to vector<8x128xf32>
    %483 = arith.mulf %482, %226 : vector<8x128xf32>
    %484 = arith.addf %480, %483 : vector<8x128xf32>
    %c33_84 = arith.constant 33 : index
    %485 = memref.load %arg4[%c33_84] : memref<200xf32, #tpu.memory_space<smem>>
    %486 = vector.broadcast %485 : f32 to vector<8x128xf32>
    %487 = arith.mulf %486, %243 : vector<8x128xf32>
    %488 = arith.addf %484, %487 : vector<8x128xf32>
    %c34_85 = arith.constant 34 : index
    %489 = memref.load %arg4[%c34_85] : memref<200xf32, #tpu.memory_space<smem>>
    %490 = vector.broadcast %489 : f32 to vector<8x128xf32>
    %491 = arith.mulf %490, %260 : vector<8x128xf32>
    %492 = arith.addf %488, %491 : vector<8x128xf32>
    %c35_86 = arith.constant 35 : index
    %493 = memref.load %arg4[%c35_86] : memref<200xf32, #tpu.memory_space<smem>>
    %494 = vector.broadcast %493 : f32 to vector<8x128xf32>
    %495 = arith.mulf %494, %277 : vector<8x128xf32>
    %496 = arith.addf %492, %495 : vector<8x128xf32>
    %c36_87 = arith.constant 36 : index
    %497 = memref.load %arg4[%c36_87] : memref<200xf32, #tpu.memory_space<smem>>
    %498 = vector.broadcast %497 : f32 to vector<8x128xf32>
    %499 = arith.mulf %498, %294 : vector<8x128xf32>
    %500 = arith.addf %496, %499 : vector<8x128xf32>
    %c37_88 = arith.constant 37 : index
    %501 = memref.load %arg4[%c37_88] : memref<200xf32, #tpu.memory_space<smem>>
    %502 = vector.broadcast %501 : f32 to vector<8x128xf32>
    %503 = arith.mulf %502, %311 : vector<8x128xf32>
    %504 = arith.addf %500, %503 : vector<8x128xf32>
    %c38_89 = arith.constant 38 : index
    %505 = memref.load %arg4[%c38_89] : memref<200xf32, #tpu.memory_space<smem>>
    %506 = vector.broadcast %505 : f32 to vector<8x128xf32>
    %507 = arith.mulf %506, %328 : vector<8x128xf32>
    %508 = arith.addf %504, %507 : vector<8x128xf32>
    %c39_90 = arith.constant 39 : index
    %509 = memref.load %arg4[%c39_90] : memref<200xf32, #tpu.memory_space<smem>>
    %510 = vector.broadcast %509 : f32 to vector<8x128xf32>
    %511 = arith.mulf %510, %345 : vector<8x128xf32>
    %512 = arith.addf %508, %511 : vector<8x128xf32>
    %cst_91 = arith.constant 0.00999999977 : f32
    %513 = vector.broadcast %cst_91 : f32 to vector<8x128xf32>
    %514 = arith.mulf %513, %512 : vector<8x128xf32>
    %515 = arith.maximumf %512, %514 : vector<8x128xf32>
    %c2_92 = arith.constant 2 : index
    %516 = memref.load %arg5[%c2_92] : memref<10xf32, #tpu.memory_space<smem>>
    %c40_93 = arith.constant 40 : index
    %517 = memref.load %arg4[%c40_93] : memref<200xf32, #tpu.memory_space<smem>>
    %518 = vector.broadcast %517 : f32 to vector<8x128xf32>
    %519 = arith.mulf %518, %22 : vector<8x128xf32>
    %520 = vector.broadcast %516 : f32 to vector<8x128xf32>
    %521 = arith.addf %520, %519 : vector<8x128xf32>
    %c41_94 = arith.constant 41 : index
    %522 = memref.load %arg4[%c41_94] : memref<200xf32, #tpu.memory_space<smem>>
    %523 = vector.broadcast %522 : f32 to vector<8x128xf32>
    %524 = arith.mulf %523, %39 : vector<8x128xf32>
    %525 = arith.addf %521, %524 : vector<8x128xf32>
    %c42_95 = arith.constant 42 : index
    %526 = memref.load %arg4[%c42_95] : memref<200xf32, #tpu.memory_space<smem>>
    %527 = vector.broadcast %526 : f32 to vector<8x128xf32>
    %528 = arith.mulf %527, %56 : vector<8x128xf32>
    %529 = arith.addf %525, %528 : vector<8x128xf32>
    %c43_96 = arith.constant 43 : index
    %530 = memref.load %arg4[%c43_96] : memref<200xf32, #tpu.memory_space<smem>>
    %531 = vector.broadcast %530 : f32 to vector<8x128xf32>
    %532 = arith.mulf %531, %73 : vector<8x128xf32>
    %533 = arith.addf %529, %532 : vector<8x128xf32>
    %c44_97 = arith.constant 44 : index
    %534 = memref.load %arg4[%c44_97] : memref<200xf32, #tpu.memory_space<smem>>
    %535 = vector.broadcast %534 : f32 to vector<8x128xf32>
    %536 = arith.mulf %535, %90 : vector<8x128xf32>
    %537 = arith.addf %533, %536 : vector<8x128xf32>
    %c45_98 = arith.constant 45 : index
    %538 = memref.load %arg4[%c45_98] : memref<200xf32, #tpu.memory_space<smem>>
    %539 = vector.broadcast %538 : f32 to vector<8x128xf32>
    %540 = arith.mulf %539, %107 : vector<8x128xf32>
    %541 = arith.addf %537, %540 : vector<8x128xf32>
    %c46_99 = arith.constant 46 : index
    %542 = memref.load %arg4[%c46_99] : memref<200xf32, #tpu.memory_space<smem>>
    %543 = vector.broadcast %542 : f32 to vector<8x128xf32>
    %544 = arith.mulf %543, %124 : vector<8x128xf32>
    %545 = arith.addf %541, %544 : vector<8x128xf32>
    %c47_100 = arith.constant 47 : index
    %546 = memref.load %arg4[%c47_100] : memref<200xf32, #tpu.memory_space<smem>>
    %547 = vector.broadcast %546 : f32 to vector<8x128xf32>
    %548 = arith.mulf %547, %141 : vector<8x128xf32>
    %549 = arith.addf %545, %548 : vector<8x128xf32>
    %c48_101 = arith.constant 48 : index
    %550 = memref.load %arg4[%c48_101] : memref<200xf32, #tpu.memory_space<smem>>
    %551 = vector.broadcast %550 : f32 to vector<8x128xf32>
    %552 = arith.mulf %551, %158 : vector<8x128xf32>
    %553 = arith.addf %549, %552 : vector<8x128xf32>
    %c49_102 = arith.constant 49 : index
    %554 = memref.load %arg4[%c49_102] : memref<200xf32, #tpu.memory_space<smem>>
    %555 = vector.broadcast %554 : f32 to vector<8x128xf32>
    %556 = arith.mulf %555, %175 : vector<8x128xf32>
    %557 = arith.addf %553, %556 : vector<8x128xf32>
    %c50_103 = arith.constant 50 : index
    %558 = memref.load %arg4[%c50_103] : memref<200xf32, #tpu.memory_space<smem>>
    %559 = vector.broadcast %558 : f32 to vector<8x128xf32>
    %560 = arith.mulf %559, %192 : vector<8x128xf32>
    %561 = arith.addf %557, %560 : vector<8x128xf32>
    %c51_104 = arith.constant 51 : index
    %562 = memref.load %arg4[%c51_104] : memref<200xf32, #tpu.memory_space<smem>>
    %563 = vector.broadcast %562 : f32 to vector<8x128xf32>
    %564 = arith.mulf %563, %209 : vector<8x128xf32>
    %565 = arith.addf %561, %564 : vector<8x128xf32>
    %c52_105 = arith.constant 52 : index
    %566 = memref.load %arg4[%c52_105] : memref<200xf32, #tpu.memory_space<smem>>
    %567 = vector.broadcast %566 : f32 to vector<8x128xf32>
    %568 = arith.mulf %567, %226 : vector<8x128xf32>
    %569 = arith.addf %565, %568 : vector<8x128xf32>
    %c53_106 = arith.constant 53 : index
    %570 = memref.load %arg4[%c53_106] : memref<200xf32, #tpu.memory_space<smem>>
    %571 = vector.broadcast %570 : f32 to vector<8x128xf32>
    %572 = arith.mulf %571, %243 : vector<8x128xf32>
    %573 = arith.addf %569, %572 : vector<8x128xf32>
    %c54_107 = arith.constant 54 : index
    %574 = memref.load %arg4[%c54_107] : memref<200xf32, #tpu.memory_space<smem>>
    %575 = vector.broadcast %574 : f32 to vector<8x128xf32>
    %576 = arith.mulf %575, %260 : vector<8x128xf32>
    %577 = arith.addf %573, %576 : vector<8x128xf32>
    %c55_108 = arith.constant 55 : index
    %578 = memref.load %arg4[%c55_108] : memref<200xf32, #tpu.memory_space<smem>>
    %579 = vector.broadcast %578 : f32 to vector<8x128xf32>
    %580 = arith.mulf %579, %277 : vector<8x128xf32>
    %581 = arith.addf %577, %580 : vector<8x128xf32>
    %c56_109 = arith.constant 56 : index
    %582 = memref.load %arg4[%c56_109] : memref<200xf32, #tpu.memory_space<smem>>
    %583 = vector.broadcast %582 : f32 to vector<8x128xf32>
    %584 = arith.mulf %583, %294 : vector<8x128xf32>
    %585 = arith.addf %581, %584 : vector<8x128xf32>
    %c57_110 = arith.constant 57 : index
    %586 = memref.load %arg4[%c57_110] : memref<200xf32, #tpu.memory_space<smem>>
    %587 = vector.broadcast %586 : f32 to vector<8x128xf32>
    %588 = arith.mulf %587, %311 : vector<8x128xf32>
    %589 = arith.addf %585, %588 : vector<8x128xf32>
    %c58_111 = arith.constant 58 : index
    %590 = memref.load %arg4[%c58_111] : memref<200xf32, #tpu.memory_space<smem>>
    %591 = vector.broadcast %590 : f32 to vector<8x128xf32>
    %592 = arith.mulf %591, %328 : vector<8x128xf32>
    %593 = arith.addf %589, %592 : vector<8x128xf32>
    %c59_112 = arith.constant 59 : index
    %594 = memref.load %arg4[%c59_112] : memref<200xf32, #tpu.memory_space<smem>>
    %595 = vector.broadcast %594 : f32 to vector<8x128xf32>
    %596 = arith.mulf %595, %345 : vector<8x128xf32>
    %597 = arith.addf %593, %596 : vector<8x128xf32>
    %cst_113 = arith.constant 0.00999999977 : f32
    %598 = vector.broadcast %cst_113 : f32 to vector<8x128xf32>
    %599 = arith.mulf %598, %597 : vector<8x128xf32>
    %600 = arith.maximumf %597, %599 : vector<8x128xf32>
    %c3_114 = arith.constant 3 : index
    %601 = memref.load %arg5[%c3_114] : memref<10xf32, #tpu.memory_space<smem>>
    %c60 = arith.constant 60 : index
    %602 = memref.load %arg4[%c60] : memref<200xf32, #tpu.memory_space<smem>>
    %603 = vector.broadcast %602 : f32 to vector<8x128xf32>
    %604 = arith.mulf %603, %22 : vector<8x128xf32>
    %605 = vector.broadcast %601 : f32 to vector<8x128xf32>
    %606 = arith.addf %605, %604 : vector<8x128xf32>
    %c61 = arith.constant 61 : index
    %607 = memref.load %arg4[%c61] : memref<200xf32, #tpu.memory_space<smem>>
    %608 = vector.broadcast %607 : f32 to vector<8x128xf32>
    %609 = arith.mulf %608, %39 : vector<8x128xf32>
    %610 = arith.addf %606, %609 : vector<8x128xf32>
    %c62 = arith.constant 62 : index
    %611 = memref.load %arg4[%c62] : memref<200xf32, #tpu.memory_space<smem>>
    %612 = vector.broadcast %611 : f32 to vector<8x128xf32>
    %613 = arith.mulf %612, %56 : vector<8x128xf32>
    %614 = arith.addf %610, %613 : vector<8x128xf32>
    %c63 = arith.constant 63 : index
    %615 = memref.load %arg4[%c63] : memref<200xf32, #tpu.memory_space<smem>>
    %616 = vector.broadcast %615 : f32 to vector<8x128xf32>
    %617 = arith.mulf %616, %73 : vector<8x128xf32>
    %618 = arith.addf %614, %617 : vector<8x128xf32>
    %c64 = arith.constant 64 : index
    %619 = memref.load %arg4[%c64] : memref<200xf32, #tpu.memory_space<smem>>
    %620 = vector.broadcast %619 : f32 to vector<8x128xf32>
    %621 = arith.mulf %620, %90 : vector<8x128xf32>
    %622 = arith.addf %618, %621 : vector<8x128xf32>
    %c65 = arith.constant 65 : index
    %623 = memref.load %arg4[%c65] : memref<200xf32, #tpu.memory_space<smem>>
    %624 = vector.broadcast %623 : f32 to vector<8x128xf32>
    %625 = arith.mulf %624, %107 : vector<8x128xf32>
    %626 = arith.addf %622, %625 : vector<8x128xf32>
    %c66 = arith.constant 66 : index
    %627 = memref.load %arg4[%c66] : memref<200xf32, #tpu.memory_space<smem>>
    %628 = vector.broadcast %627 : f32 to vector<8x128xf32>
    %629 = arith.mulf %628, %124 : vector<8x128xf32>
    %630 = arith.addf %626, %629 : vector<8x128xf32>
    %c67 = arith.constant 67 : index
    %631 = memref.load %arg4[%c67] : memref<200xf32, #tpu.memory_space<smem>>
    %632 = vector.broadcast %631 : f32 to vector<8x128xf32>
    %633 = arith.mulf %632, %141 : vector<8x128xf32>
    %634 = arith.addf %630, %633 : vector<8x128xf32>
    %c68 = arith.constant 68 : index
    %635 = memref.load %arg4[%c68] : memref<200xf32, #tpu.memory_space<smem>>
    %636 = vector.broadcast %635 : f32 to vector<8x128xf32>
    %637 = arith.mulf %636, %158 : vector<8x128xf32>
    %638 = arith.addf %634, %637 : vector<8x128xf32>
    %c69 = arith.constant 69 : index
    %639 = memref.load %arg4[%c69] : memref<200xf32, #tpu.memory_space<smem>>
    %640 = vector.broadcast %639 : f32 to vector<8x128xf32>
    %641 = arith.mulf %640, %175 : vector<8x128xf32>
    %642 = arith.addf %638, %641 : vector<8x128xf32>
    %c70 = arith.constant 70 : index
    %643 = memref.load %arg4[%c70] : memref<200xf32, #tpu.memory_space<smem>>
    %644 = vector.broadcast %643 : f32 to vector<8x128xf32>
    %645 = arith.mulf %644, %192 : vector<8x128xf32>
    %646 = arith.addf %642, %645 : vector<8x128xf32>
    %c71 = arith.constant 71 : index
    %647 = memref.load %arg4[%c71] : memref<200xf32, #tpu.memory_space<smem>>
    %648 = vector.broadcast %647 : f32 to vector<8x128xf32>
    %649 = arith.mulf %648, %209 : vector<8x128xf32>
    %650 = arith.addf %646, %649 : vector<8x128xf32>
    %c72 = arith.constant 72 : index
    %651 = memref.load %arg4[%c72] : memref<200xf32, #tpu.memory_space<smem>>
    %652 = vector.broadcast %651 : f32 to vector<8x128xf32>
    %653 = arith.mulf %652, %226 : vector<8x128xf32>
    %654 = arith.addf %650, %653 : vector<8x128xf32>
    %c73 = arith.constant 73 : index
    %655 = memref.load %arg4[%c73] : memref<200xf32, #tpu.memory_space<smem>>
    %656 = vector.broadcast %655 : f32 to vector<8x128xf32>
    %657 = arith.mulf %656, %243 : vector<8x128xf32>
    %658 = arith.addf %654, %657 : vector<8x128xf32>
    %c74 = arith.constant 74 : index
    %659 = memref.load %arg4[%c74] : memref<200xf32, #tpu.memory_space<smem>>
    %660 = vector.broadcast %659 : f32 to vector<8x128xf32>
    %661 = arith.mulf %660, %260 : vector<8x128xf32>
    %662 = arith.addf %658, %661 : vector<8x128xf32>
    %c75 = arith.constant 75 : index
    %663 = memref.load %arg4[%c75] : memref<200xf32, #tpu.memory_space<smem>>
    %664 = vector.broadcast %663 : f32 to vector<8x128xf32>
    %665 = arith.mulf %664, %277 : vector<8x128xf32>
    %666 = arith.addf %662, %665 : vector<8x128xf32>
    %c76 = arith.constant 76 : index
    %667 = memref.load %arg4[%c76] : memref<200xf32, #tpu.memory_space<smem>>
    %668 = vector.broadcast %667 : f32 to vector<8x128xf32>
    %669 = arith.mulf %668, %294 : vector<8x128xf32>
    %670 = arith.addf %666, %669 : vector<8x128xf32>
    %c77 = arith.constant 77 : index
    %671 = memref.load %arg4[%c77] : memref<200xf32, #tpu.memory_space<smem>>
    %672 = vector.broadcast %671 : f32 to vector<8x128xf32>
    %673 = arith.mulf %672, %311 : vector<8x128xf32>
    %674 = arith.addf %670, %673 : vector<8x128xf32>
    %c78 = arith.constant 78 : index
    %675 = memref.load %arg4[%c78] : memref<200xf32, #tpu.memory_space<smem>>
    %676 = vector.broadcast %675 : f32 to vector<8x128xf32>
    %677 = arith.mulf %676, %328 : vector<8x128xf32>
    %678 = arith.addf %674, %677 : vector<8x128xf32>
    %c79 = arith.constant 79 : index
    %679 = memref.load %arg4[%c79] : memref<200xf32, #tpu.memory_space<smem>>
    %680 = vector.broadcast %679 : f32 to vector<8x128xf32>
    %681 = arith.mulf %680, %345 : vector<8x128xf32>
    %682 = arith.addf %678, %681 : vector<8x128xf32>
    %cst_115 = arith.constant 0.00999999977 : f32
    %683 = vector.broadcast %cst_115 : f32 to vector<8x128xf32>
    %684 = arith.mulf %683, %682 : vector<8x128xf32>
    %685 = arith.maximumf %682, %684 : vector<8x128xf32>
    %c4_116 = arith.constant 4 : index
    %686 = memref.load %arg5[%c4_116] : memref<10xf32, #tpu.memory_space<smem>>
    %c80 = arith.constant 80 : index
    %687 = memref.load %arg4[%c80] : memref<200xf32, #tpu.memory_space<smem>>
    %688 = vector.broadcast %687 : f32 to vector<8x128xf32>
    %689 = arith.mulf %688, %22 : vector<8x128xf32>
    %690 = vector.broadcast %686 : f32 to vector<8x128xf32>
    %691 = arith.addf %690, %689 : vector<8x128xf32>
    %c81 = arith.constant 81 : index
    %692 = memref.load %arg4[%c81] : memref<200xf32, #tpu.memory_space<smem>>
    %693 = vector.broadcast %692 : f32 to vector<8x128xf32>
    %694 = arith.mulf %693, %39 : vector<8x128xf32>
    %695 = arith.addf %691, %694 : vector<8x128xf32>
    %c82 = arith.constant 82 : index
    %696 = memref.load %arg4[%c82] : memref<200xf32, #tpu.memory_space<smem>>
    %697 = vector.broadcast %696 : f32 to vector<8x128xf32>
    %698 = arith.mulf %697, %56 : vector<8x128xf32>
    %699 = arith.addf %695, %698 : vector<8x128xf32>
    %c83 = arith.constant 83 : index
    %700 = memref.load %arg4[%c83] : memref<200xf32, #tpu.memory_space<smem>>
    %701 = vector.broadcast %700 : f32 to vector<8x128xf32>
    %702 = arith.mulf %701, %73 : vector<8x128xf32>
    %703 = arith.addf %699, %702 : vector<8x128xf32>
    %c84 = arith.constant 84 : index
    %704 = memref.load %arg4[%c84] : memref<200xf32, #tpu.memory_space<smem>>
    %705 = vector.broadcast %704 : f32 to vector<8x128xf32>
    %706 = arith.mulf %705, %90 : vector<8x128xf32>
    %707 = arith.addf %703, %706 : vector<8x128xf32>
    %c85 = arith.constant 85 : index
    %708 = memref.load %arg4[%c85] : memref<200xf32, #tpu.memory_space<smem>>
    %709 = vector.broadcast %708 : f32 to vector<8x128xf32>
    %710 = arith.mulf %709, %107 : vector<8x128xf32>
    %711 = arith.addf %707, %710 : vector<8x128xf32>
    %c86 = arith.constant 86 : index
    %712 = memref.load %arg4[%c86] : memref<200xf32, #tpu.memory_space<smem>>
    %713 = vector.broadcast %712 : f32 to vector<8x128xf32>
    %714 = arith.mulf %713, %124 : vector<8x128xf32>
    %715 = arith.addf %711, %714 : vector<8x128xf32>
    %c87 = arith.constant 87 : index
    %716 = memref.load %arg4[%c87] : memref<200xf32, #tpu.memory_space<smem>>
    %717 = vector.broadcast %716 : f32 to vector<8x128xf32>
    %718 = arith.mulf %717, %141 : vector<8x128xf32>
    %719 = arith.addf %715, %718 : vector<8x128xf32>
    %c88 = arith.constant 88 : index
    %720 = memref.load %arg4[%c88] : memref<200xf32, #tpu.memory_space<smem>>
    %721 = vector.broadcast %720 : f32 to vector<8x128xf32>
    %722 = arith.mulf %721, %158 : vector<8x128xf32>
    %723 = arith.addf %719, %722 : vector<8x128xf32>
    %c89 = arith.constant 89 : index
    %724 = memref.load %arg4[%c89] : memref<200xf32, #tpu.memory_space<smem>>
    %725 = vector.broadcast %724 : f32 to vector<8x128xf32>
    %726 = arith.mulf %725, %175 : vector<8x128xf32>
    %727 = arith.addf %723, %726 : vector<8x128xf32>
    %c90 = arith.constant 90 : index
    %728 = memref.load %arg4[%c90] : memref<200xf32, #tpu.memory_space<smem>>
    %729 = vector.broadcast %728 : f32 to vector<8x128xf32>
    %730 = arith.mulf %729, %192 : vector<8x128xf32>
    %731 = arith.addf %727, %730 : vector<8x128xf32>
    %c91 = arith.constant 91 : index
    %732 = memref.load %arg4[%c91] : memref<200xf32, #tpu.memory_space<smem>>
    %733 = vector.broadcast %732 : f32 to vector<8x128xf32>
    %734 = arith.mulf %733, %209 : vector<8x128xf32>
    %735 = arith.addf %731, %734 : vector<8x128xf32>
    %c92 = arith.constant 92 : index
    %736 = memref.load %arg4[%c92] : memref<200xf32, #tpu.memory_space<smem>>
    %737 = vector.broadcast %736 : f32 to vector<8x128xf32>
    %738 = arith.mulf %737, %226 : vector<8x128xf32>
    %739 = arith.addf %735, %738 : vector<8x128xf32>
    %c93 = arith.constant 93 : index
    %740 = memref.load %arg4[%c93] : memref<200xf32, #tpu.memory_space<smem>>
    %741 = vector.broadcast %740 : f32 to vector<8x128xf32>
    %742 = arith.mulf %741, %243 : vector<8x128xf32>
    %743 = arith.addf %739, %742 : vector<8x128xf32>
    %c94 = arith.constant 94 : index
    %744 = memref.load %arg4[%c94] : memref<200xf32, #tpu.memory_space<smem>>
    %745 = vector.broadcast %744 : f32 to vector<8x128xf32>
    %746 = arith.mulf %745, %260 : vector<8x128xf32>
    %747 = arith.addf %743, %746 : vector<8x128xf32>
    %c95 = arith.constant 95 : index
    %748 = memref.load %arg4[%c95] : memref<200xf32, #tpu.memory_space<smem>>
    %749 = vector.broadcast %748 : f32 to vector<8x128xf32>
    %750 = arith.mulf %749, %277 : vector<8x128xf32>
    %751 = arith.addf %747, %750 : vector<8x128xf32>
    %c96 = arith.constant 96 : index
    %752 = memref.load %arg4[%c96] : memref<200xf32, #tpu.memory_space<smem>>
    %753 = vector.broadcast %752 : f32 to vector<8x128xf32>
    %754 = arith.mulf %753, %294 : vector<8x128xf32>
    %755 = arith.addf %751, %754 : vector<8x128xf32>
    %c97 = arith.constant 97 : index
    %756 = memref.load %arg4[%c97] : memref<200xf32, #tpu.memory_space<smem>>
    %757 = vector.broadcast %756 : f32 to vector<8x128xf32>
    %758 = arith.mulf %757, %311 : vector<8x128xf32>
    %759 = arith.addf %755, %758 : vector<8x128xf32>
    %c98 = arith.constant 98 : index
    %760 = memref.load %arg4[%c98] : memref<200xf32, #tpu.memory_space<smem>>
    %761 = vector.broadcast %760 : f32 to vector<8x128xf32>
    %762 = arith.mulf %761, %328 : vector<8x128xf32>
    %763 = arith.addf %759, %762 : vector<8x128xf32>
    %c99 = arith.constant 99 : index
    %764 = memref.load %arg4[%c99] : memref<200xf32, #tpu.memory_space<smem>>
    %765 = vector.broadcast %764 : f32 to vector<8x128xf32>
    %766 = arith.mulf %765, %345 : vector<8x128xf32>
    %767 = arith.addf %763, %766 : vector<8x128xf32>
    %cst_117 = arith.constant 0.00999999977 : f32
    %768 = vector.broadcast %cst_117 : f32 to vector<8x128xf32>
    %769 = arith.mulf %768, %767 : vector<8x128xf32>
    %770 = arith.maximumf %767, %769 : vector<8x128xf32>
    %c5_118 = arith.constant 5 : index
    %771 = memref.load %arg5[%c5_118] : memref<10xf32, #tpu.memory_space<smem>>
    %c100 = arith.constant 100 : index
    %772 = memref.load %arg4[%c100] : memref<200xf32, #tpu.memory_space<smem>>
    %773 = vector.broadcast %772 : f32 to vector<8x128xf32>
    %774 = arith.mulf %773, %22 : vector<8x128xf32>
    %775 = vector.broadcast %771 : f32 to vector<8x128xf32>
    %776 = arith.addf %775, %774 : vector<8x128xf32>
    %c101 = arith.constant 101 : index
    %777 = memref.load %arg4[%c101] : memref<200xf32, #tpu.memory_space<smem>>
    %778 = vector.broadcast %777 : f32 to vector<8x128xf32>
    %779 = arith.mulf %778, %39 : vector<8x128xf32>
    %780 = arith.addf %776, %779 : vector<8x128xf32>
    %c102 = arith.constant 102 : index
    %781 = memref.load %arg4[%c102] : memref<200xf32, #tpu.memory_space<smem>>
    %782 = vector.broadcast %781 : f32 to vector<8x128xf32>
    %783 = arith.mulf %782, %56 : vector<8x128xf32>
    %784 = arith.addf %780, %783 : vector<8x128xf32>
    %c103 = arith.constant 103 : index
    %785 = memref.load %arg4[%c103] : memref<200xf32, #tpu.memory_space<smem>>
    %786 = vector.broadcast %785 : f32 to vector<8x128xf32>
    %787 = arith.mulf %786, %73 : vector<8x128xf32>
    %788 = arith.addf %784, %787 : vector<8x128xf32>
    %c104 = arith.constant 104 : index
    %789 = memref.load %arg4[%c104] : memref<200xf32, #tpu.memory_space<smem>>
    %790 = vector.broadcast %789 : f32 to vector<8x128xf32>
    %791 = arith.mulf %790, %90 : vector<8x128xf32>
    %792 = arith.addf %788, %791 : vector<8x128xf32>
    %c105 = arith.constant 105 : index
    %793 = memref.load %arg4[%c105] : memref<200xf32, #tpu.memory_space<smem>>
    %794 = vector.broadcast %793 : f32 to vector<8x128xf32>
    %795 = arith.mulf %794, %107 : vector<8x128xf32>
    %796 = arith.addf %792, %795 : vector<8x128xf32>
    %c106 = arith.constant 106 : index
    %797 = memref.load %arg4[%c106] : memref<200xf32, #tpu.memory_space<smem>>
    %798 = vector.broadcast %797 : f32 to vector<8x128xf32>
    %799 = arith.mulf %798, %124 : vector<8x128xf32>
    %800 = arith.addf %796, %799 : vector<8x128xf32>
    %c107 = arith.constant 107 : index
    %801 = memref.load %arg4[%c107] : memref<200xf32, #tpu.memory_space<smem>>
    %802 = vector.broadcast %801 : f32 to vector<8x128xf32>
    %803 = arith.mulf %802, %141 : vector<8x128xf32>
    %804 = arith.addf %800, %803 : vector<8x128xf32>
    %c108 = arith.constant 108 : index
    %805 = memref.load %arg4[%c108] : memref<200xf32, #tpu.memory_space<smem>>
    %806 = vector.broadcast %805 : f32 to vector<8x128xf32>
    %807 = arith.mulf %806, %158 : vector<8x128xf32>
    %808 = arith.addf %804, %807 : vector<8x128xf32>
    %c109 = arith.constant 109 : index
    %809 = memref.load %arg4[%c109] : memref<200xf32, #tpu.memory_space<smem>>
    %810 = vector.broadcast %809 : f32 to vector<8x128xf32>
    %811 = arith.mulf %810, %175 : vector<8x128xf32>
    %812 = arith.addf %808, %811 : vector<8x128xf32>
    %c110 = arith.constant 110 : index
    %813 = memref.load %arg4[%c110] : memref<200xf32, #tpu.memory_space<smem>>
    %814 = vector.broadcast %813 : f32 to vector<8x128xf32>
    %815 = arith.mulf %814, %192 : vector<8x128xf32>
    %816 = arith.addf %812, %815 : vector<8x128xf32>
    %c111 = arith.constant 111 : index
    %817 = memref.load %arg4[%c111] : memref<200xf32, #tpu.memory_space<smem>>
    %818 = vector.broadcast %817 : f32 to vector<8x128xf32>
    %819 = arith.mulf %818, %209 : vector<8x128xf32>
    %820 = arith.addf %816, %819 : vector<8x128xf32>
    %c112 = arith.constant 112 : index
    %821 = memref.load %arg4[%c112] : memref<200xf32, #tpu.memory_space<smem>>
    %822 = vector.broadcast %821 : f32 to vector<8x128xf32>
    %823 = arith.mulf %822, %226 : vector<8x128xf32>
    %824 = arith.addf %820, %823 : vector<8x128xf32>
    %c113 = arith.constant 113 : index
    %825 = memref.load %arg4[%c113] : memref<200xf32, #tpu.memory_space<smem>>
    %826 = vector.broadcast %825 : f32 to vector<8x128xf32>
    %827 = arith.mulf %826, %243 : vector<8x128xf32>
    %828 = arith.addf %824, %827 : vector<8x128xf32>
    %c114 = arith.constant 114 : index
    %829 = memref.load %arg4[%c114] : memref<200xf32, #tpu.memory_space<smem>>
    %830 = vector.broadcast %829 : f32 to vector<8x128xf32>
    %831 = arith.mulf %830, %260 : vector<8x128xf32>
    %832 = arith.addf %828, %831 : vector<8x128xf32>
    %c115 = arith.constant 115 : index
    %833 = memref.load %arg4[%c115] : memref<200xf32, #tpu.memory_space<smem>>
    %834 = vector.broadcast %833 : f32 to vector<8x128xf32>
    %835 = arith.mulf %834, %277 : vector<8x128xf32>
    %836 = arith.addf %832, %835 : vector<8x128xf32>
    %c116 = arith.constant 116 : index
    %837 = memref.load %arg4[%c116] : memref<200xf32, #tpu.memory_space<smem>>
    %838 = vector.broadcast %837 : f32 to vector<8x128xf32>
    %839 = arith.mulf %838, %294 : vector<8x128xf32>
    %840 = arith.addf %836, %839 : vector<8x128xf32>
    %c117 = arith.constant 117 : index
    %841 = memref.load %arg4[%c117] : memref<200xf32, #tpu.memory_space<smem>>
    %842 = vector.broadcast %841 : f32 to vector<8x128xf32>
    %843 = arith.mulf %842, %311 : vector<8x128xf32>
    %844 = arith.addf %840, %843 : vector<8x128xf32>
    %c118 = arith.constant 118 : index
    %845 = memref.load %arg4[%c118] : memref<200xf32, #tpu.memory_space<smem>>
    %846 = vector.broadcast %845 : f32 to vector<8x128xf32>
    %847 = arith.mulf %846, %328 : vector<8x128xf32>
    %848 = arith.addf %844, %847 : vector<8x128xf32>
    %c119 = arith.constant 119 : index
    %849 = memref.load %arg4[%c119] : memref<200xf32, #tpu.memory_space<smem>>
    %850 = vector.broadcast %849 : f32 to vector<8x128xf32>
    %851 = arith.mulf %850, %345 : vector<8x128xf32>
    %852 = arith.addf %848, %851 : vector<8x128xf32>
    %cst_119 = arith.constant 0.00999999977 : f32
    %853 = vector.broadcast %cst_119 : f32 to vector<8x128xf32>
    %854 = arith.mulf %853, %852 : vector<8x128xf32>
    %855 = arith.maximumf %852, %854 : vector<8x128xf32>
    %c6_120 = arith.constant 6 : index
    %856 = memref.load %arg5[%c6_120] : memref<10xf32, #tpu.memory_space<smem>>
    %c120 = arith.constant 120 : index
    %857 = memref.load %arg4[%c120] : memref<200xf32, #tpu.memory_space<smem>>
    %858 = vector.broadcast %857 : f32 to vector<8x128xf32>
    %859 = arith.mulf %858, %22 : vector<8x128xf32>
    %860 = vector.broadcast %856 : f32 to vector<8x128xf32>
    %861 = arith.addf %860, %859 : vector<8x128xf32>
    %c121 = arith.constant 121 : index
    %862 = memref.load %arg4[%c121] : memref<200xf32, #tpu.memory_space<smem>>
    %863 = vector.broadcast %862 : f32 to vector<8x128xf32>
    %864 = arith.mulf %863, %39 : vector<8x128xf32>
    %865 = arith.addf %861, %864 : vector<8x128xf32>
    %c122 = arith.constant 122 : index
    %866 = memref.load %arg4[%c122] : memref<200xf32, #tpu.memory_space<smem>>
    %867 = vector.broadcast %866 : f32 to vector<8x128xf32>
    %868 = arith.mulf %867, %56 : vector<8x128xf32>
    %869 = arith.addf %865, %868 : vector<8x128xf32>
    %c123 = arith.constant 123 : index
    %870 = memref.load %arg4[%c123] : memref<200xf32, #tpu.memory_space<smem>>
    %871 = vector.broadcast %870 : f32 to vector<8x128xf32>
    %872 = arith.mulf %871, %73 : vector<8x128xf32>
    %873 = arith.addf %869, %872 : vector<8x128xf32>
    %c124 = arith.constant 124 : index
    %874 = memref.load %arg4[%c124] : memref<200xf32, #tpu.memory_space<smem>>
    %875 = vector.broadcast %874 : f32 to vector<8x128xf32>
    %876 = arith.mulf %875, %90 : vector<8x128xf32>
    %877 = arith.addf %873, %876 : vector<8x128xf32>
    %c125 = arith.constant 125 : index
    %878 = memref.load %arg4[%c125] : memref<200xf32, #tpu.memory_space<smem>>
    %879 = vector.broadcast %878 : f32 to vector<8x128xf32>
    %880 = arith.mulf %879, %107 : vector<8x128xf32>
    %881 = arith.addf %877, %880 : vector<8x128xf32>
    %c126 = arith.constant 126 : index
    %882 = memref.load %arg4[%c126] : memref<200xf32, #tpu.memory_space<smem>>
    %883 = vector.broadcast %882 : f32 to vector<8x128xf32>
    %884 = arith.mulf %883, %124 : vector<8x128xf32>
    %885 = arith.addf %881, %884 : vector<8x128xf32>
    %c127 = arith.constant 127 : index
    %886 = memref.load %arg4[%c127] : memref<200xf32, #tpu.memory_space<smem>>
    %887 = vector.broadcast %886 : f32 to vector<8x128xf32>
    %888 = arith.mulf %887, %141 : vector<8x128xf32>
    %889 = arith.addf %885, %888 : vector<8x128xf32>
    %c128 = arith.constant 128 : index
    %890 = memref.load %arg4[%c128] : memref<200xf32, #tpu.memory_space<smem>>
    %891 = vector.broadcast %890 : f32 to vector<8x128xf32>
    %892 = arith.mulf %891, %158 : vector<8x128xf32>
    %893 = arith.addf %889, %892 : vector<8x128xf32>
    %c129 = arith.constant 129 : index
    %894 = memref.load %arg4[%c129] : memref<200xf32, #tpu.memory_space<smem>>
    %895 = vector.broadcast %894 : f32 to vector<8x128xf32>
    %896 = arith.mulf %895, %175 : vector<8x128xf32>
    %897 = arith.addf %893, %896 : vector<8x128xf32>
    %c130 = arith.constant 130 : index
    %898 = memref.load %arg4[%c130] : memref<200xf32, #tpu.memory_space<smem>>
    %899 = vector.broadcast %898 : f32 to vector<8x128xf32>
    %900 = arith.mulf %899, %192 : vector<8x128xf32>
    %901 = arith.addf %897, %900 : vector<8x128xf32>
    %c131 = arith.constant 131 : index
    %902 = memref.load %arg4[%c131] : memref<200xf32, #tpu.memory_space<smem>>
    %903 = vector.broadcast %902 : f32 to vector<8x128xf32>
    %904 = arith.mulf %903, %209 : vector<8x128xf32>
    %905 = arith.addf %901, %904 : vector<8x128xf32>
    %c132 = arith.constant 132 : index
    %906 = memref.load %arg4[%c132] : memref<200xf32, #tpu.memory_space<smem>>
    %907 = vector.broadcast %906 : f32 to vector<8x128xf32>
    %908 = arith.mulf %907, %226 : vector<8x128xf32>
    %909 = arith.addf %905, %908 : vector<8x128xf32>
    %c133 = arith.constant 133 : index
    %910 = memref.load %arg4[%c133] : memref<200xf32, #tpu.memory_space<smem>>
    %911 = vector.broadcast %910 : f32 to vector<8x128xf32>
    %912 = arith.mulf %911, %243 : vector<8x128xf32>
    %913 = arith.addf %909, %912 : vector<8x128xf32>
    %c134 = arith.constant 134 : index
    %914 = memref.load %arg4[%c134] : memref<200xf32, #tpu.memory_space<smem>>
    %915 = vector.broadcast %914 : f32 to vector<8x128xf32>
    %916 = arith.mulf %915, %260 : vector<8x128xf32>
    %917 = arith.addf %913, %916 : vector<8x128xf32>
    %c135 = arith.constant 135 : index
    %918 = memref.load %arg4[%c135] : memref<200xf32, #tpu.memory_space<smem>>
    %919 = vector.broadcast %918 : f32 to vector<8x128xf32>
    %920 = arith.mulf %919, %277 : vector<8x128xf32>
    %921 = arith.addf %917, %920 : vector<8x128xf32>
    %c136 = arith.constant 136 : index
    %922 = memref.load %arg4[%c136] : memref<200xf32, #tpu.memory_space<smem>>
    %923 = vector.broadcast %922 : f32 to vector<8x128xf32>
    %924 = arith.mulf %923, %294 : vector<8x128xf32>
    %925 = arith.addf %921, %924 : vector<8x128xf32>
    %c137 = arith.constant 137 : index
    %926 = memref.load %arg4[%c137] : memref<200xf32, #tpu.memory_space<smem>>
    %927 = vector.broadcast %926 : f32 to vector<8x128xf32>
    %928 = arith.mulf %927, %311 : vector<8x128xf32>
    %929 = arith.addf %925, %928 : vector<8x128xf32>
    %c138 = arith.constant 138 : index
    %930 = memref.load %arg4[%c138] : memref<200xf32, #tpu.memory_space<smem>>
    %931 = vector.broadcast %930 : f32 to vector<8x128xf32>
    %932 = arith.mulf %931, %328 : vector<8x128xf32>
    %933 = arith.addf %929, %932 : vector<8x128xf32>
    %c139 = arith.constant 139 : index
    %934 = memref.load %arg4[%c139] : memref<200xf32, #tpu.memory_space<smem>>
    %935 = vector.broadcast %934 : f32 to vector<8x128xf32>
    %936 = arith.mulf %935, %345 : vector<8x128xf32>
    %937 = arith.addf %933, %936 : vector<8x128xf32>
    %cst_121 = arith.constant 0.00999999977 : f32
    %938 = vector.broadcast %cst_121 : f32 to vector<8x128xf32>
    %939 = arith.mulf %938, %937 : vector<8x128xf32>
    %940 = arith.maximumf %937, %939 : vector<8x128xf32>
    %c7_122 = arith.constant 7 : index
    %941 = memref.load %arg5[%c7_122] : memref<10xf32, #tpu.memory_space<smem>>
    %c140 = arith.constant 140 : index
    %942 = memref.load %arg4[%c140] : memref<200xf32, #tpu.memory_space<smem>>
    %943 = vector.broadcast %942 : f32 to vector<8x128xf32>
    %944 = arith.mulf %943, %22 : vector<8x128xf32>
    %945 = vector.broadcast %941 : f32 to vector<8x128xf32>
    %946 = arith.addf %945, %944 : vector<8x128xf32>
    %c141 = arith.constant 141 : index
    %947 = memref.load %arg4[%c141] : memref<200xf32, #tpu.memory_space<smem>>
    %948 = vector.broadcast %947 : f32 to vector<8x128xf32>
    %949 = arith.mulf %948, %39 : vector<8x128xf32>
    %950 = arith.addf %946, %949 : vector<8x128xf32>
    %c142 = arith.constant 142 : index
    %951 = memref.load %arg4[%c142] : memref<200xf32, #tpu.memory_space<smem>>
    %952 = vector.broadcast %951 : f32 to vector<8x128xf32>
    %953 = arith.mulf %952, %56 : vector<8x128xf32>
    %954 = arith.addf %950, %953 : vector<8x128xf32>
    %c143 = arith.constant 143 : index
    %955 = memref.load %arg4[%c143] : memref<200xf32, #tpu.memory_space<smem>>
    %956 = vector.broadcast %955 : f32 to vector<8x128xf32>
    %957 = arith.mulf %956, %73 : vector<8x128xf32>
    %958 = arith.addf %954, %957 : vector<8x128xf32>
    %c144 = arith.constant 144 : index
    %959 = memref.load %arg4[%c144] : memref<200xf32, #tpu.memory_space<smem>>
    %960 = vector.broadcast %959 : f32 to vector<8x128xf32>
    %961 = arith.mulf %960, %90 : vector<8x128xf32>
    %962 = arith.addf %958, %961 : vector<8x128xf32>
    %c145 = arith.constant 145 : index
    %963 = memref.load %arg4[%c145] : memref<200xf32, #tpu.memory_space<smem>>
    %964 = vector.broadcast %963 : f32 to vector<8x128xf32>
    %965 = arith.mulf %964, %107 : vector<8x128xf32>
    %966 = arith.addf %962, %965 : vector<8x128xf32>
    %c146 = arith.constant 146 : index
    %967 = memref.load %arg4[%c146] : memref<200xf32, #tpu.memory_space<smem>>
    %968 = vector.broadcast %967 : f32 to vector<8x128xf32>
    %969 = arith.mulf %968, %124 : vector<8x128xf32>
    %970 = arith.addf %966, %969 : vector<8x128xf32>
    %c147 = arith.constant 147 : index
    %971 = memref.load %arg4[%c147] : memref<200xf32, #tpu.memory_space<smem>>
    %972 = vector.broadcast %971 : f32 to vector<8x128xf32>
    %973 = arith.mulf %972, %141 : vector<8x128xf32>
    %974 = arith.addf %970, %973 : vector<8x128xf32>
    %c148 = arith.constant 148 : index
    %975 = memref.load %arg4[%c148] : memref<200xf32, #tpu.memory_space<smem>>
    %976 = vector.broadcast %975 : f32 to vector<8x128xf32>
    %977 = arith.mulf %976, %158 : vector<8x128xf32>
    %978 = arith.addf %974, %977 : vector<8x128xf32>
    %c149 = arith.constant 149 : index
    %979 = memref.load %arg4[%c149] : memref<200xf32, #tpu.memory_space<smem>>
    %980 = vector.broadcast %979 : f32 to vector<8x128xf32>
    %981 = arith.mulf %980, %175 : vector<8x128xf32>
    %982 = arith.addf %978, %981 : vector<8x128xf32>
    %c150 = arith.constant 150 : index
    %983 = memref.load %arg4[%c150] : memref<200xf32, #tpu.memory_space<smem>>
    %984 = vector.broadcast %983 : f32 to vector<8x128xf32>
    %985 = arith.mulf %984, %192 : vector<8x128xf32>
    %986 = arith.addf %982, %985 : vector<8x128xf32>
    %c151 = arith.constant 151 : index
    %987 = memref.load %arg4[%c151] : memref<200xf32, #tpu.memory_space<smem>>
    %988 = vector.broadcast %987 : f32 to vector<8x128xf32>
    %989 = arith.mulf %988, %209 : vector<8x128xf32>
    %990 = arith.addf %986, %989 : vector<8x128xf32>
    %c152 = arith.constant 152 : index
    %991 = memref.load %arg4[%c152] : memref<200xf32, #tpu.memory_space<smem>>
    %992 = vector.broadcast %991 : f32 to vector<8x128xf32>
    %993 = arith.mulf %992, %226 : vector<8x128xf32>
    %994 = arith.addf %990, %993 : vector<8x128xf32>
    %c153 = arith.constant 153 : index
    %995 = memref.load %arg4[%c153] : memref<200xf32, #tpu.memory_space<smem>>
    %996 = vector.broadcast %995 : f32 to vector<8x128xf32>
    %997 = arith.mulf %996, %243 : vector<8x128xf32>
    %998 = arith.addf %994, %997 : vector<8x128xf32>
    %c154 = arith.constant 154 : index
    %999 = memref.load %arg4[%c154] : memref<200xf32, #tpu.memory_space<smem>>
    %1000 = vector.broadcast %999 : f32 to vector<8x128xf32>
    %1001 = arith.mulf %1000, %260 : vector<8x128xf32>
    %1002 = arith.addf %998, %1001 : vector<8x128xf32>
    %c155 = arith.constant 155 : index
    %1003 = memref.load %arg4[%c155] : memref<200xf32, #tpu.memory_space<smem>>
    %1004 = vector.broadcast %1003 : f32 to vector<8x128xf32>
    %1005 = arith.mulf %1004, %277 : vector<8x128xf32>
    %1006 = arith.addf %1002, %1005 : vector<8x128xf32>
    %c156 = arith.constant 156 : index
    %1007 = memref.load %arg4[%c156] : memref<200xf32, #tpu.memory_space<smem>>
    %1008 = vector.broadcast %1007 : f32 to vector<8x128xf32>
    %1009 = arith.mulf %1008, %294 : vector<8x128xf32>
    %1010 = arith.addf %1006, %1009 : vector<8x128xf32>
    %c157 = arith.constant 157 : index
    %1011 = memref.load %arg4[%c157] : memref<200xf32, #tpu.memory_space<smem>>
    %1012 = vector.broadcast %1011 : f32 to vector<8x128xf32>
    %1013 = arith.mulf %1012, %311 : vector<8x128xf32>
    %1014 = arith.addf %1010, %1013 : vector<8x128xf32>
    %c158 = arith.constant 158 : index
    %1015 = memref.load %arg4[%c158] : memref<200xf32, #tpu.memory_space<smem>>
    %1016 = vector.broadcast %1015 : f32 to vector<8x128xf32>
    %1017 = arith.mulf %1016, %328 : vector<8x128xf32>
    %1018 = arith.addf %1014, %1017 : vector<8x128xf32>
    %c159 = arith.constant 159 : index
    %1019 = memref.load %arg4[%c159] : memref<200xf32, #tpu.memory_space<smem>>
    %1020 = vector.broadcast %1019 : f32 to vector<8x128xf32>
    %1021 = arith.mulf %1020, %345 : vector<8x128xf32>
    %1022 = arith.addf %1018, %1021 : vector<8x128xf32>
    %cst_123 = arith.constant 0.00999999977 : f32
    %1023 = vector.broadcast %cst_123 : f32 to vector<8x128xf32>
    %1024 = arith.mulf %1023, %1022 : vector<8x128xf32>
    %1025 = arith.maximumf %1022, %1024 : vector<8x128xf32>
    %c8_124 = arith.constant 8 : index
    %1026 = memref.load %arg5[%c8_124] : memref<10xf32, #tpu.memory_space<smem>>
    %c160 = arith.constant 160 : index
    %1027 = memref.load %arg4[%c160] : memref<200xf32, #tpu.memory_space<smem>>
    %1028 = vector.broadcast %1027 : f32 to vector<8x128xf32>
    %1029 = arith.mulf %1028, %22 : vector<8x128xf32>
    %1030 = vector.broadcast %1026 : f32 to vector<8x128xf32>
    %1031 = arith.addf %1030, %1029 : vector<8x128xf32>
    %c161 = arith.constant 161 : index
    %1032 = memref.load %arg4[%c161] : memref<200xf32, #tpu.memory_space<smem>>
    %1033 = vector.broadcast %1032 : f32 to vector<8x128xf32>
    %1034 = arith.mulf %1033, %39 : vector<8x128xf32>
    %1035 = arith.addf %1031, %1034 : vector<8x128xf32>
    %c162 = arith.constant 162 : index
    %1036 = memref.load %arg4[%c162] : memref<200xf32, #tpu.memory_space<smem>>
    %1037 = vector.broadcast %1036 : f32 to vector<8x128xf32>
    %1038 = arith.mulf %1037, %56 : vector<8x128xf32>
    %1039 = arith.addf %1035, %1038 : vector<8x128xf32>
    %c163 = arith.constant 163 : index
    %1040 = memref.load %arg4[%c163] : memref<200xf32, #tpu.memory_space<smem>>
    %1041 = vector.broadcast %1040 : f32 to vector<8x128xf32>
    %1042 = arith.mulf %1041, %73 : vector<8x128xf32>
    %1043 = arith.addf %1039, %1042 : vector<8x128xf32>
    %c164 = arith.constant 164 : index
    %1044 = memref.load %arg4[%c164] : memref<200xf32, #tpu.memory_space<smem>>
    %1045 = vector.broadcast %1044 : f32 to vector<8x128xf32>
    %1046 = arith.mulf %1045, %90 : vector<8x128xf32>
    %1047 = arith.addf %1043, %1046 : vector<8x128xf32>
    %c165 = arith.constant 165 : index
    %1048 = memref.load %arg4[%c165] : memref<200xf32, #tpu.memory_space<smem>>
    %1049 = vector.broadcast %1048 : f32 to vector<8x128xf32>
    %1050 = arith.mulf %1049, %107 : vector<8x128xf32>
    %1051 = arith.addf %1047, %1050 : vector<8x128xf32>
    %c166 = arith.constant 166 : index
    %1052 = memref.load %arg4[%c166] : memref<200xf32, #tpu.memory_space<smem>>
    %1053 = vector.broadcast %1052 : f32 to vector<8x128xf32>
    %1054 = arith.mulf %1053, %124 : vector<8x128xf32>
    %1055 = arith.addf %1051, %1054 : vector<8x128xf32>
    %c167 = arith.constant 167 : index
    %1056 = memref.load %arg4[%c167] : memref<200xf32, #tpu.memory_space<smem>>
    %1057 = vector.broadcast %1056 : f32 to vector<8x128xf32>
    %1058 = arith.mulf %1057, %141 : vector<8x128xf32>
    %1059 = arith.addf %1055, %1058 : vector<8x128xf32>
    %c168 = arith.constant 168 : index
    %1060 = memref.load %arg4[%c168] : memref<200xf32, #tpu.memory_space<smem>>
    %1061 = vector.broadcast %1060 : f32 to vector<8x128xf32>
    %1062 = arith.mulf %1061, %158 : vector<8x128xf32>
    %1063 = arith.addf %1059, %1062 : vector<8x128xf32>
    %c169 = arith.constant 169 : index
    %1064 = memref.load %arg4[%c169] : memref<200xf32, #tpu.memory_space<smem>>
    %1065 = vector.broadcast %1064 : f32 to vector<8x128xf32>
    %1066 = arith.mulf %1065, %175 : vector<8x128xf32>
    %1067 = arith.addf %1063, %1066 : vector<8x128xf32>
    %c170 = arith.constant 170 : index
    %1068 = memref.load %arg4[%c170] : memref<200xf32, #tpu.memory_space<smem>>
    %1069 = vector.broadcast %1068 : f32 to vector<8x128xf32>
    %1070 = arith.mulf %1069, %192 : vector<8x128xf32>
    %1071 = arith.addf %1067, %1070 : vector<8x128xf32>
    %c171 = arith.constant 171 : index
    %1072 = memref.load %arg4[%c171] : memref<200xf32, #tpu.memory_space<smem>>
    %1073 = vector.broadcast %1072 : f32 to vector<8x128xf32>
    %1074 = arith.mulf %1073, %209 : vector<8x128xf32>
    %1075 = arith.addf %1071, %1074 : vector<8x128xf32>
    %c172 = arith.constant 172 : index
    %1076 = memref.load %arg4[%c172] : memref<200xf32, #tpu.memory_space<smem>>
    %1077 = vector.broadcast %1076 : f32 to vector<8x128xf32>
    %1078 = arith.mulf %1077, %226 : vector<8x128xf32>
    %1079 = arith.addf %1075, %1078 : vector<8x128xf32>
    %c173 = arith.constant 173 : index
    %1080 = memref.load %arg4[%c173] : memref<200xf32, #tpu.memory_space<smem>>
    %1081 = vector.broadcast %1080 : f32 to vector<8x128xf32>
    %1082 = arith.mulf %1081, %243 : vector<8x128xf32>
    %1083 = arith.addf %1079, %1082 : vector<8x128xf32>
    %c174 = arith.constant 174 : index
    %1084 = memref.load %arg4[%c174] : memref<200xf32, #tpu.memory_space<smem>>
    %1085 = vector.broadcast %1084 : f32 to vector<8x128xf32>
    %1086 = arith.mulf %1085, %260 : vector<8x128xf32>
    %1087 = arith.addf %1083, %1086 : vector<8x128xf32>
    %c175 = arith.constant 175 : index
    %1088 = memref.load %arg4[%c175] : memref<200xf32, #tpu.memory_space<smem>>
    %1089 = vector.broadcast %1088 : f32 to vector<8x128xf32>
    %1090 = arith.mulf %1089, %277 : vector<8x128xf32>
    %1091 = arith.addf %1087, %1090 : vector<8x128xf32>
    %c176 = arith.constant 176 : index
    %1092 = memref.load %arg4[%c176] : memref<200xf32, #tpu.memory_space<smem>>
    %1093 = vector.broadcast %1092 : f32 to vector<8x128xf32>
    %1094 = arith.mulf %1093, %294 : vector<8x128xf32>
    %1095 = arith.addf %1091, %1094 : vector<8x128xf32>
    %c177 = arith.constant 177 : index
    %1096 = memref.load %arg4[%c177] : memref<200xf32, #tpu.memory_space<smem>>
    %1097 = vector.broadcast %1096 : f32 to vector<8x128xf32>
    %1098 = arith.mulf %1097, %311 : vector<8x128xf32>
    %1099 = arith.addf %1095, %1098 : vector<8x128xf32>
    %c178 = arith.constant 178 : index
    %1100 = memref.load %arg4[%c178] : memref<200xf32, #tpu.memory_space<smem>>
    %1101 = vector.broadcast %1100 : f32 to vector<8x128xf32>
    %1102 = arith.mulf %1101, %328 : vector<8x128xf32>
    %1103 = arith.addf %1099, %1102 : vector<8x128xf32>
    %c179 = arith.constant 179 : index
    %1104 = memref.load %arg4[%c179] : memref<200xf32, #tpu.memory_space<smem>>
    %1105 = vector.broadcast %1104 : f32 to vector<8x128xf32>
    %1106 = arith.mulf %1105, %345 : vector<8x128xf32>
    %1107 = arith.addf %1103, %1106 : vector<8x128xf32>
    %cst_125 = arith.constant 0.00999999977 : f32
    %1108 = vector.broadcast %cst_125 : f32 to vector<8x128xf32>
    %1109 = arith.mulf %1108, %1107 : vector<8x128xf32>
    %1110 = arith.maximumf %1107, %1109 : vector<8x128xf32>
    %c9_126 = arith.constant 9 : index
    %1111 = memref.load %arg5[%c9_126] : memref<10xf32, #tpu.memory_space<smem>>
    %c180 = arith.constant 180 : index
    %1112 = memref.load %arg4[%c180] : memref<200xf32, #tpu.memory_space<smem>>
    %1113 = vector.broadcast %1112 : f32 to vector<8x128xf32>
    %1114 = arith.mulf %1113, %22 : vector<8x128xf32>
    %1115 = vector.broadcast %1111 : f32 to vector<8x128xf32>
    %1116 = arith.addf %1115, %1114 : vector<8x128xf32>
    %c181 = arith.constant 181 : index
    %1117 = memref.load %arg4[%c181] : memref<200xf32, #tpu.memory_space<smem>>
    %1118 = vector.broadcast %1117 : f32 to vector<8x128xf32>
    %1119 = arith.mulf %1118, %39 : vector<8x128xf32>
    %1120 = arith.addf %1116, %1119 : vector<8x128xf32>
    %c182 = arith.constant 182 : index
    %1121 = memref.load %arg4[%c182] : memref<200xf32, #tpu.memory_space<smem>>
    %1122 = vector.broadcast %1121 : f32 to vector<8x128xf32>
    %1123 = arith.mulf %1122, %56 : vector<8x128xf32>
    %1124 = arith.addf %1120, %1123 : vector<8x128xf32>
    %c183 = arith.constant 183 : index
    %1125 = memref.load %arg4[%c183] : memref<200xf32, #tpu.memory_space<smem>>
    %1126 = vector.broadcast %1125 : f32 to vector<8x128xf32>
    %1127 = arith.mulf %1126, %73 : vector<8x128xf32>
    %1128 = arith.addf %1124, %1127 : vector<8x128xf32>
    %c184 = arith.constant 184 : index
    %1129 = memref.load %arg4[%c184] : memref<200xf32, #tpu.memory_space<smem>>
    %1130 = vector.broadcast %1129 : f32 to vector<8x128xf32>
    %1131 = arith.mulf %1130, %90 : vector<8x128xf32>
    %1132 = arith.addf %1128, %1131 : vector<8x128xf32>
    %c185 = arith.constant 185 : index
    %1133 = memref.load %arg4[%c185] : memref<200xf32, #tpu.memory_space<smem>>
    %1134 = vector.broadcast %1133 : f32 to vector<8x128xf32>
    %1135 = arith.mulf %1134, %107 : vector<8x128xf32>
    %1136 = arith.addf %1132, %1135 : vector<8x128xf32>
    %c186 = arith.constant 186 : index
    %1137 = memref.load %arg4[%c186] : memref<200xf32, #tpu.memory_space<smem>>
    %1138 = vector.broadcast %1137 : f32 to vector<8x128xf32>
    %1139 = arith.mulf %1138, %124 : vector<8x128xf32>
    %1140 = arith.addf %1136, %1139 : vector<8x128xf32>
    %c187 = arith.constant 187 : index
    %1141 = memref.load %arg4[%c187] : memref<200xf32, #tpu.memory_space<smem>>
    %1142 = vector.broadcast %1141 : f32 to vector<8x128xf32>
    %1143 = arith.mulf %1142, %141 : vector<8x128xf32>
    %1144 = arith.addf %1140, %1143 : vector<8x128xf32>
    %c188 = arith.constant 188 : index
    %1145 = memref.load %arg4[%c188] : memref<200xf32, #tpu.memory_space<smem>>
    %1146 = vector.broadcast %1145 : f32 to vector<8x128xf32>
    %1147 = arith.mulf %1146, %158 : vector<8x128xf32>
    %1148 = arith.addf %1144, %1147 : vector<8x128xf32>
    %c189 = arith.constant 189 : index
    %1149 = memref.load %arg4[%c189] : memref<200xf32, #tpu.memory_space<smem>>
    %1150 = vector.broadcast %1149 : f32 to vector<8x128xf32>
    %1151 = arith.mulf %1150, %175 : vector<8x128xf32>
    %1152 = arith.addf %1148, %1151 : vector<8x128xf32>
    %c190 = arith.constant 190 : index
    %1153 = memref.load %arg4[%c190] : memref<200xf32, #tpu.memory_space<smem>>
    %1154 = vector.broadcast %1153 : f32 to vector<8x128xf32>
    %1155 = arith.mulf %1154, %192 : vector<8x128xf32>
    %1156 = arith.addf %1152, %1155 : vector<8x128xf32>
    %c191 = arith.constant 191 : index
    %1157 = memref.load %arg4[%c191] : memref<200xf32, #tpu.memory_space<smem>>
    %1158 = vector.broadcast %1157 : f32 to vector<8x128xf32>
    %1159 = arith.mulf %1158, %209 : vector<8x128xf32>
    %1160 = arith.addf %1156, %1159 : vector<8x128xf32>
    %c192 = arith.constant 192 : index
    %1161 = memref.load %arg4[%c192] : memref<200xf32, #tpu.memory_space<smem>>
    %1162 = vector.broadcast %1161 : f32 to vector<8x128xf32>
    %1163 = arith.mulf %1162, %226 : vector<8x128xf32>
    %1164 = arith.addf %1160, %1163 : vector<8x128xf32>
    %c193 = arith.constant 193 : index
    %1165 = memref.load %arg4[%c193] : memref<200xf32, #tpu.memory_space<smem>>
    %1166 = vector.broadcast %1165 : f32 to vector<8x128xf32>
    %1167 = arith.mulf %1166, %243 : vector<8x128xf32>
    %1168 = arith.addf %1164, %1167 : vector<8x128xf32>
    %c194 = arith.constant 194 : index
    %1169 = memref.load %arg4[%c194] : memref<200xf32, #tpu.memory_space<smem>>
    %1170 = vector.broadcast %1169 : f32 to vector<8x128xf32>
    %1171 = arith.mulf %1170, %260 : vector<8x128xf32>
    %1172 = arith.addf %1168, %1171 : vector<8x128xf32>
    %c195 = arith.constant 195 : index
    %1173 = memref.load %arg4[%c195] : memref<200xf32, #tpu.memory_space<smem>>
    %1174 = vector.broadcast %1173 : f32 to vector<8x128xf32>
    %1175 = arith.mulf %1174, %277 : vector<8x128xf32>
    %1176 = arith.addf %1172, %1175 : vector<8x128xf32>
    %c196 = arith.constant 196 : index
    %1177 = memref.load %arg4[%c196] : memref<200xf32, #tpu.memory_space<smem>>
    %1178 = vector.broadcast %1177 : f32 to vector<8x128xf32>
    %1179 = arith.mulf %1178, %294 : vector<8x128xf32>
    %1180 = arith.addf %1176, %1179 : vector<8x128xf32>
    %c197 = arith.constant 197 : index
    %1181 = memref.load %arg4[%c197] : memref<200xf32, #tpu.memory_space<smem>>
    %1182 = vector.broadcast %1181 : f32 to vector<8x128xf32>
    %1183 = arith.mulf %1182, %311 : vector<8x128xf32>
    %1184 = arith.addf %1180, %1183 : vector<8x128xf32>
    %c198 = arith.constant 198 : index
    %1185 = memref.load %arg4[%c198] : memref<200xf32, #tpu.memory_space<smem>>
    %1186 = vector.broadcast %1185 : f32 to vector<8x128xf32>
    %1187 = arith.mulf %1186, %328 : vector<8x128xf32>
    %1188 = arith.addf %1184, %1187 : vector<8x128xf32>
    %c199 = arith.constant 199 : index
    %1189 = memref.load %arg4[%c199] : memref<200xf32, #tpu.memory_space<smem>>
    %1190 = vector.broadcast %1189 : f32 to vector<8x128xf32>
    %1191 = arith.mulf %1190, %345 : vector<8x128xf32>
    %1192 = arith.addf %1188, %1191 : vector<8x128xf32>
    %cst_127 = arith.constant 0.00999999977 : f32
    %1193 = vector.broadcast %cst_127 : f32 to vector<8x128xf32>
    %1194 = arith.mulf %1193, %1192 : vector<8x128xf32>
    %1195 = arith.maximumf %1192, %1194 : vector<8x128xf32>
    %c0_128 = arith.constant 0 : index
    %1196 = memref.load %arg7[%c0_128] : memref<3xf32, #tpu.memory_space<smem>>
    %c0_129 = arith.constant 0 : index
    %1197 = memref.load %arg6[%c0_129] : memref<30xf32, #tpu.memory_space<smem>>
    %1198 = vector.broadcast %1197 : f32 to vector<8x128xf32>
    %1199 = arith.mulf %1198, %430 : vector<8x128xf32>
    %1200 = vector.broadcast %1196 : f32 to vector<8x128xf32>
    %1201 = arith.addf %1200, %1199 : vector<8x128xf32>
    %c1_130 = arith.constant 1 : index
    %1202 = memref.load %arg6[%c1_130] : memref<30xf32, #tpu.memory_space<smem>>
    %1203 = vector.broadcast %1202 : f32 to vector<8x128xf32>
    %1204 = arith.mulf %1203, %515 : vector<8x128xf32>
    %1205 = arith.addf %1201, %1204 : vector<8x128xf32>
    %c2_131 = arith.constant 2 : index
    %1206 = memref.load %arg6[%c2_131] : memref<30xf32, #tpu.memory_space<smem>>
    %1207 = vector.broadcast %1206 : f32 to vector<8x128xf32>
    %1208 = arith.mulf %1207, %600 : vector<8x128xf32>
    %1209 = arith.addf %1205, %1208 : vector<8x128xf32>
    %c3_132 = arith.constant 3 : index
    %1210 = memref.load %arg6[%c3_132] : memref<30xf32, #tpu.memory_space<smem>>
    %1211 = vector.broadcast %1210 : f32 to vector<8x128xf32>
    %1212 = arith.mulf %1211, %685 : vector<8x128xf32>
    %1213 = arith.addf %1209, %1212 : vector<8x128xf32>
    %c4_133 = arith.constant 4 : index
    %1214 = memref.load %arg6[%c4_133] : memref<30xf32, #tpu.memory_space<smem>>
    %1215 = vector.broadcast %1214 : f32 to vector<8x128xf32>
    %1216 = arith.mulf %1215, %770 : vector<8x128xf32>
    %1217 = arith.addf %1213, %1216 : vector<8x128xf32>
    %c5_134 = arith.constant 5 : index
    %1218 = memref.load %arg6[%c5_134] : memref<30xf32, #tpu.memory_space<smem>>
    %1219 = vector.broadcast %1218 : f32 to vector<8x128xf32>
    %1220 = arith.mulf %1219, %855 : vector<8x128xf32>
    %1221 = arith.addf %1217, %1220 : vector<8x128xf32>
    %c6_135 = arith.constant 6 : index
    %1222 = memref.load %arg6[%c6_135] : memref<30xf32, #tpu.memory_space<smem>>
    %1223 = vector.broadcast %1222 : f32 to vector<8x128xf32>
    %1224 = arith.mulf %1223, %940 : vector<8x128xf32>
    %1225 = arith.addf %1221, %1224 : vector<8x128xf32>
    %c7_136 = arith.constant 7 : index
    %1226 = memref.load %arg6[%c7_136] : memref<30xf32, #tpu.memory_space<smem>>
    %1227 = vector.broadcast %1226 : f32 to vector<8x128xf32>
    %1228 = arith.mulf %1227, %1025 : vector<8x128xf32>
    %1229 = arith.addf %1225, %1228 : vector<8x128xf32>
    %c8_137 = arith.constant 8 : index
    %1230 = memref.load %arg6[%c8_137] : memref<30xf32, #tpu.memory_space<smem>>
    %1231 = vector.broadcast %1230 : f32 to vector<8x128xf32>
    %1232 = arith.mulf %1231, %1110 : vector<8x128xf32>
    %1233 = arith.addf %1229, %1232 : vector<8x128xf32>
    %c9_138 = arith.constant 9 : index
    %1234 = memref.load %arg6[%c9_138] : memref<30xf32, #tpu.memory_space<smem>>
    %1235 = vector.broadcast %1234 : f32 to vector<8x128xf32>
    %1236 = arith.mulf %1235, %1195 : vector<8x128xf32>
    %1237 = arith.addf %1233, %1236 : vector<8x128xf32>
    %c0_139 = arith.constant 0 : index
    %c0_140 = arith.constant 0 : index
    %c0_141 = arith.constant 0 : index
    %1238 = vector.load %arg8[%c0_139, %c0_140, %c0_141] : memref<3x8x128xf32, #tpu.memory_space<vmem>>, vector<1x8x128xf32>
    %1239 = vector.shape_cast %1238 : vector<1x8x128xf32> to vector<8x128xf32>
    %1240 = vector.shape_cast %1237 : vector<8x128xf32> to vector<1x8x128xf32>
    tpu.vector_store %arg8[%c0_139, %c0_140, %c0_141], %1240 {strides = array<i32>} : memref<3x8x128xf32, #tpu.memory_space<vmem>>, vector<1x8x128xf32>,
    %c1_142 = arith.constant 1 : index
    %1241 = memref.load %arg7[%c1_142] : memref<3xf32, #tpu.memory_space<smem>>
    %c10_143 = arith.constant 10 : index
    %1242 = memref.load %arg6[%c10_143] : memref<30xf32, #tpu.memory_space<smem>>
    %1243 = vector.broadcast %1242 : f32 to vector<8x128xf32>
    %1244 = arith.mulf %1243, %430 : vector<8x128xf32>
    %1245 = vector.broadcast %1241 : f32 to vector<8x128xf32>
    %1246 = arith.addf %1245, %1244 : vector<8x128xf32>
    %c11_144 = arith.constant 11 : index
    %1247 = memref.load %arg6[%c11_144] : memref<30xf32, #tpu.memory_space<smem>>
    %1248 = vector.broadcast %1247 : f32 to vector<8x128xf32>
    %1249 = arith.mulf %1248, %515 : vector<8x128xf32>
    %1250 = arith.addf %1246, %1249 : vector<8x128xf32>
    %c12_145 = arith.constant 12 : index
    %1251 = memref.load %arg6[%c12_145] : memref<30xf32, #tpu.memory_space<smem>>
    %1252 = vector.broadcast %1251 : f32 to vector<8x128xf32>
    %1253 = arith.mulf %1252, %600 : vector<8x128xf32>
    %1254 = arith.addf %1250, %1253 : vector<8x128xf32>
    %c13_146 = arith.constant 13 : index
    %1255 = memref.load %arg6[%c13_146] : memref<30xf32, #tpu.memory_space<smem>>
    %1256 = vector.broadcast %1255 : f32 to vector<8x128xf32>
    %1257 = arith.mulf %1256, %685 : vector<8x128xf32>
    %1258 = arith.addf %1254, %1257 : vector<8x128xf32>
    %c14_147 = arith.constant 14 : index
    %1259 = memref.load %arg6[%c14_147] : memref<30xf32, #tpu.memory_space<smem>>
    %1260 = vector.broadcast %1259 : f32 to vector<8x128xf32>
    %1261 = arith.mulf %1260, %770 : vector<8x128xf32>
    %1262 = arith.addf %1258, %1261 : vector<8x128xf32>
    %c15_148 = arith.constant 15 : index
    %1263 = memref.load %arg6[%c15_148] : memref<30xf32, #tpu.memory_space<smem>>
    %1264 = vector.broadcast %1263 : f32 to vector<8x128xf32>
    %1265 = arith.mulf %1264, %855 : vector<8x128xf32>
    %1266 = arith.addf %1262, %1265 : vector<8x128xf32>
    %c16_149 = arith.constant 16 : index
    %1267 = memref.load %arg6[%c16_149] : memref<30xf32, #tpu.memory_space<smem>>
    %1268 = vector.broadcast %1267 : f32 to vector<8x128xf32>
    %1269 = arith.mulf %1268, %940 : vector<8x128xf32>
    %1270 = arith.addf %1266, %1269 : vector<8x128xf32>
    %c17_150 = arith.constant 17 : index
    %1271 = memref.load %arg6[%c17_150] : memref<30xf32, #tpu.memory_space<smem>>
    %1272 = vector.broadcast %1271 : f32 to vector<8x128xf32>
    %1273 = arith.mulf %1272, %1025 : vector<8x128xf32>
    %1274 = arith.addf %1270, %1273 : vector<8x128xf32>
    %c18_151 = arith.constant 18 : index
    %1275 = memref.load %arg6[%c18_151] : memref<30xf32, #tpu.memory_space<smem>>
    %1276 = vector.broadcast %1275 : f32 to vector<8x128xf32>
    %1277 = arith.mulf %1276, %1110 : vector<8x128xf32>
    %1278 = arith.addf %1274, %1277 : vector<8x128xf32>
    %c19_152 = arith.constant 19 : index
    %1279 = memref.load %arg6[%c19_152] : memref<30xf32, #tpu.memory_space<smem>>
    %1280 = vector.broadcast %1279 : f32 to vector<8x128xf32>
    %1281 = arith.mulf %1280, %1195 : vector<8x128xf32>
    %1282 = arith.addf %1278, %1281 : vector<8x128xf32>
    %c1_153 = arith.constant 1 : index
    %c0_154 = arith.constant 0 : index
    %c0_155 = arith.constant 0 : index
    %1283 = vector.load %arg8[%c1_153, %c0_154, %c0_155] : memref<3x8x128xf32, #tpu.memory_space<vmem>>, vector<1x8x128xf32>
    %1284 = vector.shape_cast %1283 : vector<1x8x128xf32> to vector<8x128xf32>
    %1285 = vector.shape_cast %1282 : vector<8x128xf32> to vector<1x8x128xf32>
    tpu.vector_store %arg8[%c1_153, %c0_154, %c0_155], %1285 {strides = array<i32>} : memref<3x8x128xf32, #tpu.memory_space<vmem>>, vector<1x8x128xf32>,
    %c2_156 = arith.constant 2 : index
    %1286 = memref.load %arg7[%c2_156] : memref<3xf32, #tpu.memory_space<smem>>
    %c20_157 = arith.constant 20 : index
    %1287 = memref.load %arg6[%c20_157] : memref<30xf32, #tpu.memory_space<smem>>
    %1288 = vector.broadcast %1287 : f32 to vector<8x128xf32>
    %1289 = arith.mulf %1288, %430 : vector<8x128xf32>
    %1290 = vector.broadcast %1286 : f32 to vector<8x128xf32>
    %1291 = arith.addf %1290, %1289 : vector<8x128xf32>
    %c21_158 = arith.constant 21 : index
    %1292 = memref.load %arg6[%c21_158] : memref<30xf32, #tpu.memory_space<smem>>
    %1293 = vector.broadcast %1292 : f32 to vector<8x128xf32>
    %1294 = arith.mulf %1293, %515 : vector<8x128xf32>
    %1295 = arith.addf %1291, %1294 : vector<8x128xf32>
    %c22_159 = arith.constant 22 : index
    %1296 = memref.load %arg6[%c22_159] : memref<30xf32, #tpu.memory_space<smem>>
    %1297 = vector.broadcast %1296 : f32 to vector<8x128xf32>
    %1298 = arith.mulf %1297, %600 : vector<8x128xf32>
    %1299 = arith.addf %1295, %1298 : vector<8x128xf32>
    %c23_160 = arith.constant 23 : index
    %1300 = memref.load %arg6[%c23_160] : memref<30xf32, #tpu.memory_space<smem>>
    %1301 = vector.broadcast %1300 : f32 to vector<8x128xf32>
    %1302 = arith.mulf %1301, %685 : vector<8x128xf32>
    %1303 = arith.addf %1299, %1302 : vector<8x128xf32>
    %c24_161 = arith.constant 24 : index
    %1304 = memref.load %arg6[%c24_161] : memref<30xf32, #tpu.memory_space<smem>>
    %1305 = vector.broadcast %1304 : f32 to vector<8x128xf32>
    %1306 = arith.mulf %1305, %770 : vector<8x128xf32>
    %1307 = arith.addf %1303, %1306 : vector<8x128xf32>
    %c25_162 = arith.constant 25 : index
    %1308 = memref.load %arg6[%c25_162] : memref<30xf32, #tpu.memory_space<smem>>
    %1309 = vector.broadcast %1308 : f32 to vector<8x128xf32>
    %1310 = arith.mulf %1309, %855 : vector<8x128xf32>
    %1311 = arith.addf %1307, %1310 : vector<8x128xf32>
    %c26_163 = arith.constant 26 : index
    %1312 = memref.load %arg6[%c26_163] : memref<30xf32, #tpu.memory_space<smem>>
    %1313 = vector.broadcast %1312 : f32 to vector<8x128xf32>
    %1314 = arith.mulf %1313, %940 : vector<8x128xf32>
    %1315 = arith.addf %1311, %1314 : vector<8x128xf32>
    %c27_164 = arith.constant 27 : index
    %1316 = memref.load %arg6[%c27_164] : memref<30xf32, #tpu.memory_space<smem>>
    %1317 = vector.broadcast %1316 : f32 to vector<8x128xf32>
    %1318 = arith.mulf %1317, %1025 : vector<8x128xf32>
    %1319 = arith.addf %1315, %1318 : vector<8x128xf32>
    %c28_165 = arith.constant 28 : index
    %1320 = memref.load %arg6[%c28_165] : memref<30xf32, #tpu.memory_space<smem>>
    %1321 = vector.broadcast %1320 : f32 to vector<8x128xf32>
    %1322 = arith.mulf %1321, %1110 : vector<8x128xf32>
    %1323 = arith.addf %1319, %1322 : vector<8x128xf32>
    %c29_166 = arith.constant 29 : index
    %1324 = memref.load %arg6[%c29_166] : memref<30xf32, #tpu.memory_space<smem>>
    %1325 = vector.broadcast %1324 : f32 to vector<8x128xf32>
    %1326 = arith.mulf %1325, %1195 : vector<8x128xf32>
    %1327 = arith.addf %1323, %1326 : vector<8x128xf32>
    %c2_167 = arith.constant 2 : index
    %c0_168 = arith.constant 0 : index
    %c0_169 = arith.constant 0 : index
    %1328 = vector.load %arg8[%c2_167, %c0_168, %c0_169] : memref<3x8x128xf32, #tpu.memory_space<vmem>>, vector<1x8x128xf32>
    %1329 = vector.shape_cast %1328 : vector<1x8x128xf32> to vector<8x128xf32>
    %1330 = vector.shape_cast %1327 : vector<8x128xf32> to vector<1x8x128xf32>
    tpu.vector_store %arg8[%c2_167, %c0_168, %c0_169], %1330 {strides = array<i32>} : memref<3x8x128xf32, #tpu.memory_space<vmem>>, vector<1x8x128xf32>,
    return
  }
  func.func @transform_0(%arg0: i32) -> (i32, i32, i32) {
    %c0_i32 = arith.constant 0 : i32
    %c0_i32_0 = arith.constant 0 : i32
    %c0_i32_1 = arith.constant 0 : i32
    return %c0_i32, %arg0, %c0_i32_0 : i32, i32, i32
  }
  func.func @transform_1(%arg0: i32) -> i32 {
    %c0_i32 = arith.constant 0 : i32
    %c0_i32_0 = arith.constant 0 : i32
    return %c0_i32 : i32
  }
  func.func @transform_2(%arg0: i32) -> i32 {
    %c0_i32 = arith.constant 0 : i32
    %c0_i32_0 = arith.constant 0 : i32
    return %c0_i32 : i32
  }
  func.func @transform_3(%arg0: i32) -> i32 {
    %c0_i32 = arith.constant 0 : i32
    %c0_i32_0 = arith.constant 0 : i32
    return %c0_i32 : i32
  }
  func.func @transform_4(%arg0: i32) -> i32 {
    %c0_i32 = arith.constant 0 : i32
    %c0_i32_0 = arith.constant 0 : i32
    return %c0_i32 : i32
  }
  func.func @transform_5(%arg0: i32) -> i32 {
    %c0_i32 = arith.constant 0 : i32
    %c0_i32_0 = arith.constant 0 : i32
    return %c0_i32 : i32
  }
  func.func @transform_6(%arg0: i32) -> i32 {
    %c0_i32 = arith.constant 0 : i32
    %c0_i32_0 = arith.constant 0 : i32
    return %c0_i32 : i32
  }
  func.func @transform_7(%arg0: i32) -> (i32, i32, i32) {
    %c0_i32 = arith.constant 0 : i32
    %c0_i32_0 = arith.constant 0 : i32
    %c0_i32_1 = arith.constant 0 : i32
    return %c0_i32, %arg0, %c0_i32_0 : i32, i32, i32
  }
}

</mosaic_0001>

<llo_original>
// kernel: tpu_custom_call.1
$region0: #{tpu_custom_call.1}
  #allocation0 [shape = 'u32[]', space=smem, size = 0x4, offset = 0x4, fixed_abs, tag = 'smem constant byte address 0x4 - core index']
  #allocation1 [shape = 'u32[72,128]{1,0:T(1,128)}', space=vmem, size = 0x9000, scoped, tag = 'internal scratch']
  %s0 = inlined_call_operand.hbm [shape: f32[3,8,128], index: 0, kind: input, shape index: {}]
  %s1 = inlined_call_operand.hbm [shape: f32[60], index: 1, kind: input, shape index: {}]
  %s2 = inlined_call_operand.hbm [shape: f32[20], index: 2, kind: input, shape index: {}]
  %s3 = inlined_call_operand.vmem [shape: f32[200], index: 3, kind: input, shape index: {}]
  %s4 = inlined_call_operand.vmem [shape: f32[10], index: 4, kind: input, shape index: {}]
  %s5 = inlined_call_operand.vmem [shape: f32[30], index: 5, kind: input, shape index: {}]
  %s6 = inlined_call_operand.vmem [shape: f32[3], index: 6, kind: input, shape index: {}]
  %s7 = inlined_call_operand.hbm [shape: f32[3,8,128], index: 7, kind: output, shape index: {}]
  %s8 = sld [smem:[#allocation0]]
  $region66: #{tpu_custom_call.1} parent=0
    _
  %s10 = ssub.s32 1, %s8
  %s11 = scalar_select 0, %s10, %s8
  $region1: #{tpu_custom_call.1} parent=0
    #allocation2 [shape = 'u8[12288]{0}', space=vmem, size = 0x3000, scoped, tag = 'input window, operand 0, single buffered']
    #allocation3 [shape = 's32[1]{0}', space=sflag, size = 0x4, scoped, tag = 'scoped memory for tpu_custom_call.1']
    #allocation4 [shape = 's32[1]{0}', space=sflag, size = 0x4, scoped, tag = 'scoped memory for tpu_custom_call.1']
    #allocation5 [shape = 's32[1]{0}', space=sflag, size = 0x4, scoped, tag = 'scoped memory for tpu_custom_call.1']
    #allocation6 [shape = 's32[1]{0}', space=sflag, size = 0x4, scoped, tag = 'scoped memory for tpu_custom_call.1']
    #allocation7 [shape = 'u8[512]{0}', space=smem, size = 0x200, scoped, tag = 'input window, operand 1, single buffered']
    #allocation8 [shape = 'u8[512]{0}', space=smem, size = 0x200, scoped, tag = 'input window, operand 2, single buffered']
    #allocation9 [shape = 's32[1]{0}', space=sflag, size = 0x4, scoped, tag = 'scoped memory for tpu_custom_call.1']
    #allocation10 [shape = 'u8[1024]{0}', space=smem, size = 0x400, scoped, tag = 'input window, operand 3, single buffered']
    #allocation11 [shape = 'u8[512]{0}', space=smem, size = 0x200, scoped, tag = 'input window, operand 4, single buffered']
    #allocation12 [shape = 's32[1]{0}', space=sflag, size = 0x4, scoped, tag = 'scoped memory for tpu_custom_call.1']
    #allocation13 [shape = 'u8[512]{0}', space=smem, size = 0x200, scoped, tag = 'input window, operand 5, single buffered']
    #allocation14 [shape = 'u8[512]{0}', space=smem, size = 0x200, scoped, tag = 'input window, operand 6, single buffered']
    #allocation15 [shape = 's32[1]{0}', space=sflag, size = 0x4, scoped, tag = 'scoped memory for tpu_custom_call.1']
    #allocation16 [shape = 'u8[12288]{0}', space=vmem, size = 0x3000, scoped, tag = 'output window, operand 0, single buffered']
    %12 = vsyncpa [#allocation3], 0
    %13 = vsyncpa [#allocation5], 0
    %14 = vsyncpa [#allocation9], 0
    %15 = vsyncpa [#allocation6], 0
    %16 = vsyncpa [#allocation12], 0
    %17 = vsyncpa [#allocation15], 0
    %18 = vsyncpa [#allocation4], 0
    // Predicated region
    $region2: #{tpu_custom_call.1} parent=1 // pred_check
      _
    $region3: #{tpu_custom_call.1} parent=1 // pred_check_branch
      %20 = sbr.rel (0) target = $region5
    $region4: #{tpu_custom_call.1} parent=1 // pred_region
      %22 = vsyncadd [#allocation3], 0
      %s23 = sshll.u32 %s0, 4
      %s24 = int_to_ptr.hbm [resolvable:$true] %s23
      %s25 = sshll.u32 [#allocation2], 4
      %s26 = int_to_ptr.vmem [resolvable:$true] %s25
      %31 = dma.hbm_to_vmem [thread:$0]  %s24, 384, %s26, [#allocation3], 128, 128, 8
    $region5: #{tpu_custom_call.1} parent=1 // pred_fallthru
      _
    // Predicated region
    $region6: #{tpu_custom_call.1} parent=1 // pred_check
      _
    $region7: #{tpu_custom_call.1} parent=1 // pred_check_branch
      %33 = sbr.rel (0) target = $region9
    $region8: #{tpu_custom_call.1} parent=1 // pred_region
      %35 = vsyncadd [#allocation5], 0
      %s37 = sshll.u32 %s1, 4
      %s38 = int_to_ptr.hbm [resolvable:$true] %s37
      %40 = dma.hbm_to_smem %s38, 16, [#allocation7], [#allocation5]
    $region9: #{tpu_custom_call.1} parent=1 // pred_fallthru
      _
    // Predicated region
    $region10: #{tpu_custom_call.1} parent=1 // pred_check
      _
    $region11: #{tpu_custom_call.1} parent=1 // pred_check_branch
      %42 = sbr.rel (0) target = $region13
    $region12: #{tpu_custom_call.1} parent=1 // pred_region
      %44 = vsyncadd [#allocation9], 0
      %s46 = sshll.u32 %s2, 4
      %s47 = int_to_ptr.hbm [resolvable:$true] %s46
      %49 = dma.hbm_to_smem %s47, 16, [#allocation8], [#allocation9]
    $region13: #{tpu_custom_call.1} parent=1 // pred_fallthru
      _
    // Predicated region
    $region14: #{tpu_custom_call.1} parent=1 // pred_check
      _
    $region15: #{tpu_custom_call.1} parent=1 // pred_check_branch
      %51 = sbr.rel (0) target = $region17
    $region16: #{tpu_custom_call.1} parent=1 // pred_region
      %53 = vsyncadd [#allocation6], 0
      %s55 = sshll.u32 %s3, 4
      %s56 = int_to_ptr.vmem [resolvable:$true] %s55
      %58 = dma.vmem_to_smem %s56, 32, [#allocation10], [#allocation6]
    $region17: #{tpu_custom_call.1} parent=1 // pred_fallthru
      _
    // Predicated region
    $region18: #{tpu_custom_call.1} parent=1 // pred_check
      _
    $region19: #{tpu_custom_call.1} parent=1 // pred_check_branch
      %60 = sbr.rel (0) target = $region21
    $region20: #{tpu_custom_call.1} parent=1 // pred_region
      %62 = vsyncadd [#allocation12], 0
      %s64 = sshll.u32 %s4, 4
      %s65 = int_to_ptr.vmem [resolvable:$true] %s64
      %67 = dma.vmem_to_smem %s65, 16, [#allocation11], [#allocation12]
    $region21: #{tpu_custom_call.1} parent=1 // pred_fallthru
      _
    // Predicated region
    $region22: #{tpu_custom_call.1} parent=1 // pred_check
      _
    $region23: #{tpu_custom_call.1} parent=1 // pred_check_branch
      %69 = sbr.rel (0) target = $region25
    $region24: #{tpu_custom_call.1} parent=1 // pred_region
      %71 = vsyncadd [#allocation12], 0
      %s73 = sshll.u32 %s5, 4
      %s74 = int_to_ptr.vmem [resolvable:$true] %s73
      %76 = dma.vmem_to_smem %s74, 16, [#allocation13], [#allocation12]
    $region25: #{tpu_custom_call.1} parent=1 // pred_fallthru
      _
    // Predicated region
    $region26: #{tpu_custom_call.1} parent=1 // pred_check
      _
    $region27: #{tpu_custom_call.1} parent=1 // pred_check_branch
      %78 = sbr.rel (0) target = $region29
    $region28: #{tpu_custom_call.1} parent=1 // pred_region
      %80 = vsyncadd [#allocation15], 0
      %s82 = sshll.u32 %s6, 4
      %s83 = int_to_ptr.vmem [resolvable:$true] %s82
      %85 = dma.vmem_to_smem %s83, 16, [#allocation14], [#allocation15]
    $region29: #{tpu_custom_call.1} parent=1 // pred_fallthru
      _
    // Predicated region
    $region30: #{tpu_custom_call.1} parent=1 // pred_check
      _
    $region31: #{tpu_custom_call.1} parent=1 // pred_check_branch
      %87 = sbr.rel (0) target = $region33
    $region32: #{tpu_custom_call.1} parent=1 // pred_region
      %89 = dma.done [#allocation3], 384
    $region33: #{tpu_custom_call.1} parent=1 // pred_fallthru
      _
    // Predicated region
    $region34: #{tpu_custom_call.1} parent=1 // pred_check
      _
    $region35: #{tpu_custom_call.1} parent=1 // pred_check_branch
      %91 = sbr.rel (0) target = $region37
    $region36: #{tpu_custom_call.1} parent=1 // pred_region
      %93 = dma.done [#allocation5], 16
    $region37: #{tpu_custom_call.1} parent=1 // pred_fallthru
      _
    // Predicated region
    $region38: #{tpu_custom_call.1} parent=1 // pred_check
      _
    $region39: #{tpu_custom_call.1} parent=1 // pred_check_branch
      %95 = sbr.rel (0) target = $region41
    $region40: #{tpu_custom_call.1} parent=1 // pred_region
      %97 = dma.done [#allocation9], 16
    $region41: #{tpu_custom_call.1} parent=1 // pred_fallthru
      _
    // Predicated region
    $region42: #{tpu_custom_call.1} parent=1 // pred_check
      _
    $region43: #{tpu_custom_call.1} parent=1 // pred_check_branch
      %99 = sbr.rel (0) target = $region45
    $region44: #{tpu_custom_call.1} parent=1 // pred_region
      %101 = dma.done [#allocation6], 32
    $region45: #{tpu_custom_call.1} parent=1 // pred_fallthru
      _
    // Predicated region
    $region46: #{tpu_custom_call.1} parent=1 // pred_check
      _
    $region47: #{tpu_custom_call.1} parent=1 // pred_check_branch
      %103 = sbr.rel (0) target = $region49
    $region48: #{tpu_custom_call.1} parent=1 // pred_region
      %105 = dma.done [#allocation12], 16
    $region49: #{tpu_custom_call.1} parent=1 // pred_fallthru
      _
    // Predicated region
    $region50: #{tpu_custom_call.1} parent=1 // pred_check
      _
    $region51: #{tpu_custom_call.1} parent=1 // pred_check_branch
      %107 = sbr.rel (0) target = $region53
    $region52: #{tpu_custom_call.1} parent=1 // pred_region
      %109 = dma.done [#allocation12], 16
    $region53: #{tpu_custom_call.1} parent=1 // pred_fallthru
      _
    // Predicated region
    $region54: #{tpu_custom_call.1} parent=1 // pred_check
      _
    $region55: #{tpu_custom_call.1} parent=1 // pred_check_branch
      %111 = sbr.rel (0) target = $region57
    $region56: #{tpu_custom_call.1} parent=1 // pred_region
      %113 = dma.done [#allocation15], 16
    $region57: #{tpu_custom_call.1} parent=1 // pred_fallthru
      _
    %114 = sfence
    %v115 = vld [vmem:[#allocation2] sm:$0xff]
    %s116 = scalar_lea.vmem [#allocation2], 8
    %v117 = vld [vmem:[%s116] sm:$0xff]
    %s118 = scalar_lea.vmem [#allocation2], 16
    %v119 = vld [vmem:[%s118] sm:$0xff]
    %s120 = sld [smem:[#allocation8]]
    %s121 = sld [smem:[#allocation7]]
    %v122 = vstv %s121
    %v123 = vmul.f32 %v122, %v115
    %v124 = vstv %s120
    %v125 = vadd.f32 %v124, %v123
    %s126 = sld [smem:[#allocation7 + $0x1]]
    %v127 = vstv %s126
    %v128 = vmul.f32 %v127, %v117
    %v129 = vadd.f32 %v125, %v128
    %s130 = sld [smem:[#allocation7 + $0x2]]
    %v131 = vstv %s130
    %v132 = vmul.f32 %v131, %v119
    %v133 = vadd.f32 %v129, %v132
    %v134 = vmul.f32 %v133, 0.01
    %v135 = vmax.f32 %v133, %v134
    %s136 = sld [smem:[#allocation8 + $0x1]]
    %s137 = sld [smem:[#allocation7 + $0x3]]
    %v138 = vstv %s137
    %v139 = vmul.f32 %v138, %v115
    %v140 = vstv %s136
    %v141 = vadd.f32 %v140, %v139
    %s142 = sld [smem:[#allocation7 + $0x4]]
    %v143 = vstv %s142
    %v144 = vmul.f32 %v143, %v117
    %v145 = vadd.f32 %v141, %v144
    %s146 = sld [smem:[#allocation7 + $0x5]]
    %v147 = vstv %s146
    %v148 = vmul.f32 %v147, %v119
    %v149 = vadd.f32 %v145, %v148
    %v150 = vmul.f32 %v149, 0.01
    %v151 = vmax.f32 %v149, %v150
    %s152 = sld [smem:[#allocation8 + $0x2]]
    %s153 = sld [smem:[#allocation7 + $0x6]]
    %v154 = vstv %s153
    %v155 = vmul.f32 %v154, %v115
    %v156 = vstv %s152
    %v157 = vadd.f32 %v156, %v155
    %s158 = sld [smem:[#allocation7 + $0x7]]
    %v159 = vstv %s158
    %v160 = vmul.f32 %v159, %v117
    %v161 = vadd.f32 %v157, %v160
    %s162 = sld [smem:[#allocation7 + $0x8]]
    %v163 = vstv %s162
    %v164 = vmul.f32 %v163, %v119
    %v165 = vadd.f32 %v161, %v164
    %v166 = vmul.f32 %v165, 0.01
    %v167 = vmax.f32 %v165, %v166
    %s168 = sld [smem:[#allocation8 + $0x3]]
    %s169 = sld [smem:[#allocation7 + $0x9]]
    %v170 = vstv %s169
    %v171 = vmul.f32 %v170, %v115
    %v172 = vstv %s168
    %v173 = vadd.f32 %v172, %v171
    %s174 = sld [smem:[#allocation7 + $0xa]]
    %v175 = vstv %s174
    %v176 = vmul.f32 %v175, %v117
    %v177 = vadd.f32 %v173, %v176
    %s178 = sld [smem:[#allocation7 + $0xb]]
    %v179 = vstv %s178
    %v180 = vmul.f32 %v179, %v119
    %v181 = vadd.f32 %v177, %v180
    %v182 = vmul.f32 %v181, 0.01
    %v183 = vmax.f32 %v181, %v182
    %s184 = sld [smem:[#allocation8 + $0x4]]
    %s185 = sld [smem:[#allocation7 + $0xc]]
    %v186 = vstv %s185
    %v187 = vmul.f32 %v186, %v115
    %v188 = vstv %s184
    %v189 = vadd.f32 %v188, %v187
    %s190 = sld [smem:[#allocation7 + $0xd]]
    %v191 = vstv %s190
    %v192 = vmul.f32 %v191, %v117
    %v193 = vadd.f32 %v189, %v192
    %s194 = sld [smem:[#allocation7 + $0xe]]
    %v195 = vstv %s194
    %v196 = vmul.f32 %v195, %v119
    %v197 = vadd.f32 %v193, %v196
    %v198 = vmul.f32 %v197, 0.01
    %v199 = vmax.f32 %v197, %v198
    %s200 = sld [smem:[#allocation8 + $0x5]]
    %s201 = sld [smem:[#allocation7 + $0xf]]
    %v202 = vstv %s201
    %v203 = vmul.f32 %v202, %v115
    %v204 = vstv %s200
    %v205 = vadd.f32 %v204, %v203
    %s206 = sld [smem:[#allocation7 + $0x10]]
    %v207 = vstv %s206
    %v208 = vmul.f32 %v207, %v117
    %v209 = vadd.f32 %v205, %v208
    %s210 = sld [smem:[#allocation7 + $0x11]]
    %v211 = vstv %s210
    %v212 = vmul.f32 %v211, %v119
    %v213 = vadd.f32 %v209, %v212
    %v214 = vmul.f32 %v213, 0.01
    %v215 = vmax.f32 %v213, %v214
    %s216 = sld [smem:[#allocation8 + $0x6]]
    %s217 = sld [smem:[#allocation7 + $0x12]]
    %v218 = vstv %s217
    %v219 = vmul.f32 %v218, %v115
    %v220 = vstv %s216
    %v221 = vadd.f32 %v220, %v219
    %s222 = sld [smem:[#allocation7 + $0x13]]
    %v223 = vstv %s222
    %v224 = vmul.f32 %v223, %v117
    %v225 = vadd.f32 %v221, %v224
    %s226 = sld [smem:[#allocation7 + $0x14]]
    %v227 = vstv %s226
    %v228 = vmul.f32 %v227, %v119
    %v229 = vadd.f32 %v225, %v228
    %v230 = vmul.f32 %v229, 0.01
    %v231 = vmax.f32 %v229, %v230
    %s232 = sld [smem:[#allocation8 + $0x7]]
    %s233 = sld [smem:[#allocation7 + $0x15]]
    %v234 = vstv %s233
    %v235 = vmul.f32 %v234, %v115
    %v236 = vstv %s232
    %v237 = vadd.f32 %v236, %v235
    %s238 = sld [smem:[#allocation7 + $0x16]]
    %v239 = vstv %s238
    %v240 = vmul.f32 %v239, %v117
    %v241 = vadd.f32 %v237, %v240
    %s242 = sld [smem:[#allocation7 + $0x17]]
    %v243 = vstv %s242
    %v244 = vmul.f32 %v243, %v119
    %v245 = vadd.f32 %v241, %v244
    %v246 = vmul.f32 %v245, 0.01
    %v247 = vmax.f32 %v245, %v246
    %s248 = sld [smem:[#allocation8 + $0x8]]
    %s249 = sld [smem:[#allocation7 + $0x18]]
    %v250 = vstv %s249
    %v251 = vmul.f32 %v250, %v115
    %v252 = vstv %s248
    %v253 = vadd.f32 %v252, %v251
    %s254 = sld [smem:[#allocation7 + $0x19]]
    %v255 = vstv %s254
    %v256 = vmul.f32 %v255, %v117
    %v257 = vadd.f32 %v253, %v256
    %s258 = sld [smem:[#allocation7 + $0x1a]]
    %v259 = vstv %s258
    %v260 = vmul.f32 %v259, %v119
    %v261 = vadd.f32 %v257, %v260
    %v262 = vmul.f32 %v261, 0.01
    %v263 = vmax.f32 %v261, %v262
    %s264 = sld [smem:[#allocation8 + $0x9]]
    %s265 = sld [smem:[#allocation7 + $0x1b]]
    %v266 = vstv %s265
    %v267 = vmul.f32 %v266, %v115
    %v268 = vstv %s264
    %v269 = vadd.f32 %v268, %v267
    %s270 = sld [smem:[#allocation7 + $0x1c]]
    %v271 = vstv %s270
    %v272 = vmul.f32 %v271, %v117
    %v273 = vadd.f32 %v269, %v272
    %s274 = sld [smem:[#allocation7 + $0x1d]]
    %v275 = vstv %s274
    %v276 = vmul.f32 %v275, %v119
    %v277 = vadd.f32 %v273, %v276
    %v278 = vmul.f32 %v277, 0.01
    %v279 = vmax.f32 %v277, %v278
    %s280 = sld [smem:[#allocation8 + $0xa]]
    %s281 = sld [smem:[#allocation7 + $0x1e]]
    %v282 = vstv %s281
    %v283 = vmul.f32 %v282, %v115
    %v284 = vstv %s280
    %v285 = vadd.f32 %v284, %v283
    %s286 = sld [smem:[#allocation7 + $0x1f]]
    %v287 = vstv %s286
    %v288 = vmul.f32 %v287, %v117
    %v289 = vadd.f32 %v285, %v288
    %s290 = sld [smem:[#allocation7 + $0x20]]
    %v291 = vstv %s290
    %v292 = vmul.f32 %v291, %v119
    %v293 = vadd.f32 %v289, %v292
    %v294 = vmul.f32 %v293, 0.01
    %v295 = vmax.f32 %v293, %v294
    %s296 = sld [smem:[#allocation8 + $0xb]]
    %s297 = sld [smem:[#allocation7 + $0x21]]
    %v298 = vstv %s297
    %v299 = vmul.f32 %v298, %v115
    %v300 = vstv %s296
    %v301 = vadd.f32 %v300, %v299
    %s302 = sld [smem:[#allocation7 + $0x22]]
    %v303 = vstv %s302
    %v304 = vmul.f32 %v303, %v117
    %v305 = vadd.f32 %v301, %v304
    %s306 = sld [smem:[#allocation7 + $0x23]]
    %v307 = vstv %s306
    %v308 = vmul.f32 %v307, %v119
    %v309 = vadd.f32 %v305, %v308
    %v310 = vmul.f32 %v309, 0.01
    %v311 = vmax.f32 %v309, %v310
    %s312 = sld [smem:[#allocation8 + $0xc]]
    %s313 = sld [smem:[#allocation7 + $0x24]]
    %v314 = vstv %s313
    %v315 = vmul.f32 %v314, %v115
    %v316 = vstv %s312
    %v317 = vadd.f32 %v316, %v315
    %s318 = sld [smem:[#allocation7 + $0x25]]
    %v319 = vstv %s318
    %v320 = vmul.f32 %v319, %v117
    %v321 = vadd.f32 %v317, %v320
    %s322 = sld [smem:[#allocation7 + $0x26]]
    %v323 = vstv %s322
    %v324 = vmul.f32 %v323, %v119
    %v325 = vadd.f32 %v321, %v324
    %v326 = vmul.f32 %v325, 0.01
    %v327 = vmax.f32 %v325, %v326
    %s328 = sld [smem:[#allocation8 + $0xd]]
    %s329 = sld [smem:[#allocation7 + $0x27]]
    %v330 = vstv %s329
    %v331 = vmul.f32 %v330, %v115
    %v332 = vstv %s328
    %v333 = vadd.f32 %v332, %v331
    %s334 = sld [smem:[#allocation7 + $0x28]]
    %v335 = vstv %s334
    %v336 = vmul.f32 %v335, %v117
    %v337 = vadd.f32 %v333, %v336
    %s338 = sld [smem:[#allocation7 + $0x29]]
    %v339 = vstv %s338
    %v340 = vmul.f32 %v339, %v119
    %v341 = vadd.f32 %v337, %v340
    %v342 = vmul.f32 %v341, 0.01
    %v343 = vmax.f32 %v341, %v342
    %s344 = sld [smem:[#allocation8 + $0xe]]
    %s345 = sld [smem:[#allocation7 + $0x2a]]
    %v346 = vstv %s345
    %v347 = vmul.f32 %v346, %v115
    %v348 = vstv %s344
    %v349 = vadd.f32 %v348, %v347
    %s350 = sld [smem:[#allocation7 + $0x2b]]
    %v351 = vstv %s350
    %v352 = vmul.f32 %v351, %v117
    %v353 = vadd.f32 %v349, %v352
    %s354 = sld [smem:[#allocation7 + $0x2c]]
    %v355 = vstv %s354
    %v356 = vmul.f32 %v355, %v119
    %v357 = vadd.f32 %v353, %v356
    %v358 = vmul.f32 %v357, 0.01
    %v359 = vmax.f32 %v357, %v358
    %s360 = sld [smem:[#allocation8 + $0xf]]
    %s361 = sld [smem:[#allocation7 + $0x2d]]
    %v362 = vstv %s361
    %v363 = vmul.f32 %v362, %v115
    %v364 = vstv %s360
    %v365 = vadd.f32 %v364, %v363
    %s366 = sld [smem:[#allocation7 + $0x2e]]
    %v367 = vstv %s366
    %v368 = vmul.f32 %v367, %v117
    %v369 = vadd.f32 %v365, %v368
    %s370 = sld [smem:[#allocation7 + $0x2f]]
    %v371 = vstv %s370
    %v372 = vmul.f32 %v371, %v119
    %v373 = vadd.f32 %v369, %v372
    %v374 = vmul.f32 %v373, 0.01
    %v375 = vmax.f32 %v373, %v374
    %s376 = sld [smem:[#allocation8 + $0x10]]
    %s377 = sld [smem:[#allocation7 + $0x30]]
    %v378 = vstv %s377
    %v379 = vmul.f32 %v378, %v115
    %v380 = vstv %s376
    %v381 = vadd.f32 %v380, %v379
    %s382 = sld [smem:[#allocation7 + $0x31]]
    %v383 = vstv %s382
    %v384 = vmul.f32 %v383, %v117
    %v385 = vadd.f32 %v381, %v384
    %s386 = sld [smem:[#allocation7 + $0x32]]
    %v387 = vstv %s386
    %v388 = vmul.f32 %v387, %v119
    %v389 = vadd.f32 %v385, %v388
    %v390 = vmul.f32 %v389, 0.01
    %v391 = vmax.f32 %v389, %v390
    %s392 = sld [smem:[#allocation8 + $0x11]]
    %s393 = sld [smem:[#allocation7 + $0x33]]
    %v394 = vstv %s393
    %v395 = vmul.f32 %v394, %v115
    %v396 = vstv %s392
    %v397 = vadd.f32 %v396, %v395
    %s398 = sld [smem:[#allocation7 + $0x34]]
    %v399 = vstv %s398
    %v400 = vmul.f32 %v399, %v117
    %v401 = vadd.f32 %v397, %v400
    %s402 = sld [smem:[#allocation7 + $0x35]]
    %v403 = vstv %s402
    %v404 = vmul.f32 %v403, %v119
    %v405 = vadd.f32 %v401, %v404
    %v406 = vmul.f32 %v405, 0.01
    %v407 = vmax.f32 %v405, %v406
    %s408 = sld [smem:[#allocation8 + $0x12]]
    %s409 = sld [smem:[#allocation7 + $0x36]]
    %v410 = vstv %s409
    %v411 = vmul.f32 %v410, %v115
    %v412 = vstv %s408
    %v413 = vadd.f32 %v412, %v411
    %s414 = sld [smem:[#allocation7 + $0x37]]
    %v415 = vstv %s414
    %v416 = vmul.f32 %v415, %v117
    %v417 = vadd.f32 %v413, %v416
    %s418 = sld [smem:[#allocation7 + $0x38]]
    %v419 = vstv %s418
    %v420 = vmul.f32 %v419, %v119
    %v421 = vadd.f32 %v417, %v420
    %v422 = vmul.f32 %v421, 0.01
    %v423 = vmax.f32 %v421, %v422
    %s424 = sld [smem:[#allocation8 + $0x13]]
    %s425 = sld [smem:[#allocation7 + $0x39]]
    %v426 = vstv %s425
    %v427 = vmul.f32 %v426, %v115
    %v428 = vstv %s424
    %v429 = vadd.f32 %v428, %v427
    %s430 = sld [smem:[#allocation7 + $0x3a]]
    %v431 = vstv %s430
    %v432 = vmul.f32 %v431, %v117
    %v433 = vadd.f32 %v429, %v432
    %s434 = sld [smem:[#allocation7 + $0x3b]]
    %v435 = vstv %s434
    %v436 = vmul.f32 %v435, %v119
    %v437 = vadd.f32 %v433, %v436
    %v438 = vmul.f32 %v437, 0.01
    %v439 = vmax.f32 %v437, %v438
    %s440 = sld [smem:[#allocation11]]
    %s441 = sld [smem:[#allocation10]]
    %v442 = vstv %s441
    %v443 = vmul.f32 %v442, %v135
    %v444 = vstv %s440
    %v445 = vadd.f32 %v444, %v443
    %s446 = sld [smem:[#allocation10 + $0x1]]
    %v447 = vstv %s446
    %v448 = vmul.f32 %v447, %v151
    %v449 = vadd.f32 %v445, %v448
    %s450 = sld [smem:[#allocation10 + $0x2]]
    %v451 = vstv %s450
    %v452 = vmul.f32 %v451, %v167
    %v453 = vadd.f32 %v449, %v452
    %s454 = sld [smem:[#allocation10 + $0x3]]
    %v455 = vstv %s454
    %v456 = vmul.f32 %v455, %v183
    %v457 = vadd.f32 %v453, %v456
    %s458 = sld [smem:[#allocation10 + $0x4]]
    %v459 = vstv %s458
    %v460 = vmul.f32 %v459, %v199
    %v461 = vadd.f32 %v457, %v460
    %s462 = sld [smem:[#allocation10 + $0x5]]
    %v463 = vstv %s462
    %v464 = vmul.f32 %v463, %v215
    %v465 = vadd.f32 %v461, %v464
    %s466 = sld [smem:[#allocation10 + $0x6]]
    %v467 = vstv %s466
    %v468 = vmul.f32 %v467, %v231
    %v469 = vadd.f32 %v465, %v468
    %s470 = sld [smem:[#allocation10 + $0x7]]
    %v471 = vstv %s470
    %v472 = vmul.f32 %v471, %v247
    %v473 = vadd.f32 %v469, %v472
    %s474 = sld [smem:[#allocation10 + $0x8]]
    %v475 = vstv %s474
    %v476 = vmul.f32 %v475, %v263
    %v477 = vadd.f32 %v473, %v476
    %s478 = sld [smem:[#allocation10 + $0x9]]
    %v479 = vstv %s478
    %v480 = vmul.f32 %v479, %v279
    %v481 = vadd.f32 %v477, %v480
    %s482 = sld [smem:[#allocation10 + $0xa]]
    %v483 = vstv %s482
    %v484 = vmul.f32 %v483, %v295
    %v485 = vadd.f32 %v481, %v484
    %s486 = sld [smem:[#allocation10 + $0xb]]
    %v487 = vstv %s486
    %v488 = vmul.f32 %v487, %v311
    %v489 = vadd.f32 %v485, %v488
    %s490 = sld [smem:[#allocation10 + $0xc]]
    %v491 = vstv %s490
    %v492 = vmul.f32 %v491, %v327
    %v493 = vadd.f32 %v489, %v492
    %s494 = sld [smem:[#allocation10 + $0xd]]
    %v495 = vstv %s494
    %v496 = vmul.f32 %v495, %v343
    %v497 = vadd.f32 %v493, %v496
    %s498 = sld [smem:[#allocation10 + $0xe]]
    %v499 = vstv %s498
    %v500 = vmul.f32 %v499, %v359
    %v501 = vadd.f32 %v497, %v500
    %s502 = sld [smem:[#allocation10 + $0xf]]
    %v503 = vstv %s502
    %v504 = vmul.f32 %v503, %v375
    %v505 = vadd.f32 %v501, %v504
    %s506 = sld [smem:[#allocation10 + $0x10]]
    %v507 = vstv %s506
    %v508 = vmul.f32 %v507, %v391
    %v509 = vadd.f32 %v505, %v508
    %s510 = sld [smem:[#allocation10 + $0x11]]
    %v511 = vstv %s510
    %v512 = vmul.f32 %v511, %v407
    %v513 = vadd.f32 %v509, %v512
    %s514 = sld [smem:[#allocation10 + $0x12]]
    %v515 = vstv %s514
    %v516 = vmul.f32 %v515, %v423
    %v517 = vadd.f32 %v513, %v516
    %s518 = sld [smem:[#allocation10 + $0x13]]
    %v519 = vstv %s518
    %v520 = vmul.f32 %v519, %v439
    %v521 = vadd.f32 %v517, %v520
    %v522 = vmul.f32 %v521, 0.01
    %v523 = vmax.f32 %v521, %v522
    %s524 = sld [smem:[#allocation11 + $0x1]]
    %s525 = sld [smem:[#allocation10 + $0x14]]
    %v526 = vstv %s525
    %v527 = vmul.f32 %v526, %v135
    %v528 = vstv %s524
    %v529 = vadd.f32 %v528, %v527
    %s530 = sld [smem:[#allocation10 + $0x15]]
    %v531 = vstv %s530
    %v532 = vmul.f32 %v531, %v151
    %v533 = vadd.f32 %v529, %v532
    %s534 = sld [smem:[#allocation10 + $0x16]]
    %v535 = vstv %s534
    %v536 = vmul.f32 %v535, %v167
    %v537 = vadd.f32 %v533, %v536
    %s538 = sld [smem:[#allocation10 + $0x17]]
    %v539 = vstv %s538
    %v540 = vmul.f32 %v539, %v183
    %v541 = vadd.f32 %v537, %v540
    %s542 = sld [smem:[#allocation10 + $0x18]]
    %v543 = vstv %s542
    %v544 = vmul.f32 %v543, %v199
    %v545 = vadd.f32 %v541, %v544
    %s546 = sld [smem:[#allocation10 + $0x19]]
    %v547 = vstv %s546
    %v548 = vmul.f32 %v547, %v215
    %v549 = vadd.f32 %v545, %v548
    %s550 = sld [smem:[#allocation10 + $0x1a]]
    %v551 = vstv %s550
    %v552 = vmul.f32 %v551, %v231
    %v553 = vadd.f32 %v549, %v552
    %s554 = sld [smem:[#allocation10 + $0x1b]]
    %v555 = vstv %s554
    %v556 = vmul.f32 %v555, %v247
    %v557 = vadd.f32 %v553, %v556
    %s558 = sld [smem:[#allocation10 + $0x1c]]
    %v559 = vstv %s558
    %v560 = vmul.f32 %v559, %v263
    %v561 = vadd.f32 %v557, %v560
    %s562 = sld [smem:[#allocation10 + $0x1d]]
    %v563 = vstv %s562
    %v564 = vmul.f32 %v563, %v279
    %v565 = vadd.f32 %v561, %v564
    %s566 = sld [smem:[#allocation10 + $0x1e]]
    %v567 = vstv %s566
    %v568 = vmul.f32 %v567, %v295
    %v569 = vadd.f32 %v565, %v568
    %s570 = sld [smem:[#allocation10 + $0x1f]]
    %v571 = vstv %s570
    %v572 = vmul.f32 %v571, %v311
    %v573 = vadd.f32 %v569, %v572
    %s574 = sld [smem:[#allocation10 + $0x20]]
    %v575 = vstv %s574
    %v576 = vmul.f32 %v575, %v327
    %v577 = vadd.f32 %v573, %v576
    %s578 = sld [smem:[#allocation10 + $0x21]]
    %v579 = vstv %s578
    %v580 = vmul.f32 %v579, %v343
    %v581 = vadd.f32 %v577, %v580
    %s582 = sld [smem:[#allocation10 + $0x22]]
    %v583 = vstv %s582
    %v584 = vmul.f32 %v583, %v359
    %v585 = vadd.f32 %v581, %v584
    %s586 = sld [smem:[#allocation10 + $0x23]]
    %v587 = vstv %s586
    %v588 = vmul.f32 %v587, %v375
    %v589 = vadd.f32 %v585, %v588
    %s590 = sld [smem:[#allocation10 + $0x24]]
    %v591 = vstv %s590
    %v592 = vmul.f32 %v591, %v391
    %v593 = vadd.f32 %v589, %v592
    %s594 = sld [smem:[#allocation10 + $0x25]]
    %v595 = vstv %s594
    %v596 = vmul.f32 %v595, %v407
    %v597 = vadd.f32 %v593, %v596
    %s598 = sld [smem:[#allocation10 + $0x26]]
    %v599 = vstv %s598
    %v600 = vmul.f32 %v599, %v423
    %v601 = vadd.f32 %v597, %v600
    %s602 = sld [smem:[#allocation10 + $0x27]]
    %v603 = vstv %s602
    %v604 = vmul.f32 %v603, %v439
    %v605 = vadd.f32 %v601, %v604
    %v606 = vmul.f32 %v605, 0.01
    %v607 = vmax.f32 %v605, %v606
    %s608 = sld [smem:[#allocation11 + $0x2]]
    %s609 = sld [smem:[#allocation10 + $0x28]]
    %v610 = vstv %s609
    %v611 = vmul.f32 %v610, %v135
    %v612 = vstv %s608
    %v613 = vadd.f32 %v612, %v611
    %s614 = sld [smem:[#allocation10 + $0x29]]
    %v615 = vstv %s614
    %v616 = vmul.f32 %v615, %v151
    %v617 = vadd.f32 %v613, %v616
    %s618 = sld [smem:[#allocation10 + $0x2a]]
    %v619 = vstv %s618
    %v620 = vmul.f32 %v619, %v167
    %v621 = vadd.f32 %v617, %v620
    %s622 = sld [smem:[#allocation10 + $0x2b]]
    %v623 = vstv %s622
    %v624 = vmul.f32 %v623, %v183
    %v625 = vadd.f32 %v621, %v624
    %s626 = sld [smem:[#allocation10 + $0x2c]]
    %v627 = vstv %s626
    %v628 = vmul.f32 %v627, %v199
    %v629 = vadd.f32 %v625, %v628
    %s630 = sld [smem:[#allocation10 + $0x2d]]
    %v631 = vstv %s630
    %v632 = vmul.f32 %v631, %v215
    %v633 = vadd.f32 %v629, %v632
    %s634 = sld [smem:[#allocation10 + $0x2e]]
    %v635 = vstv %s634
    %v636 = vmul.f32 %v635, %v231
    %v637 = vadd.f32 %v633, %v636
    %s638 = sld [smem:[#allocation10 + $0x2f]]
    %v639 = vstv %s638
    %v640 = vmul.f32 %v639, %v247
    %v641 = vadd.f32 %v637, %v640
    %s642 = sld [smem:[#allocation10 + $0x30]]
    %v643 = vstv %s642
    %v644 = vmul.f32 %v643, %v263
    %v645 = vadd.f32 %v641, %v644
    %s646 = sld [smem:[#allocation10 + $0x31]]
    %v647 = vstv %s646
    %v648 = vmul.f32 %v647, %v279
    %v649 = vadd.f32 %v645, %v648
    %s650 = sld [smem:[#allocation10 + $0x32]]
    %v651 = vstv %s650
    %v652 = vmul.f32 %v651, %v295
    %v653 = vadd.f32 %v649, %v652
    %s654 = sld [smem:[#allocation10 + $0x33]]
    %v655 = vstv %s654
    %v656 = vmul.f32 %v655, %v311
    %v657 = vadd.f32 %v653, %v656
    %s658 = sld [smem:[#allocation10 + $0x34]]
    %v659 = vstv %s658
    %v660 = vmul.f32 %v659, %v327
    %v661 = vadd.f32 %v657, %v660
    %s662 = sld [smem:[#allocation10 + $0x35]]
    %v663 = vstv %s662
    %v664 = vmul.f32 %v663, %v343
    %v665 = vadd.f32 %v661, %v664
    %s666 = sld [smem:[#allocation10 + $0x36]]
    %v667 = vstv %s666
    %v668 = vmul.f32 %v667, %v359
    %v669 = vadd.f32 %v665, %v668
    %s670 = sld [smem:[#allocation10 + $0x37]]
    %v671 = vstv %s670
    %v672 = vmul.f32 %v671, %v375
    %v673 = vadd.f32 %v669, %v672
    %s674 = sld [smem:[#allocation10 + $0x38]]
    %v675 = vstv %s674
    %v676 = vmul.f32 %v675, %v391
    %v677 = vadd.f32 %v673, %v676
    %s678 = sld [smem:[#allocation10 + $0x39]]
    %v679 = vstv %s678
    %v680 = vmul.f32 %v679, %v407
    %v681 = vadd.f32 %v677, %v680
    %s682 = sld [smem:[#allocation10 + $0x3a]]
    %v683 = vstv %s682
    %v684 = vmul.f32 %v683, %v423
    %v685 = vadd.f32 %v681, %v684
    %s686 = sld [smem:[#allocation10 + $0x3b]]
    %v687 = vstv %s686
    %v688 = vmul.f32 %v687, %v439
    %v689 = vadd.f32 %v685, %v688
    %v690 = vmul.f32 %v689, 0.01
    %v691 = vmax.f32 %v689, %v690
    %s692 = sld [smem:[#allocation11 + $0x3]]
    %s693 = sld [smem:[#allocation10 + $0x3c]]
    %v694 = vstv %s693
    %v695 = vmul.f32 %v694, %v135
    %v696 = vstv %s692
    %v697 = vadd.f32 %v696, %v695
    %s698 = sld [smem:[#allocation10 + $0x3d]]
    %v699 = vstv %s698
    %v700 = vmul.f32 %v699, %v151
    %v701 = vadd.f32 %v697, %v700
    %s702 = sld [smem:[#allocation10 + $0x3e]]
    %v703 = vstv %s702
    %v704 = vmul.f32 %v703, %v167
    %v705 = vadd.f32 %v701, %v704
    %s706 = sld [smem:[#allocation10 + $0x3f]]
    %v707 = vstv %s706
    %v708 = vmul.f32 %v707, %v183
    %v709 = vadd.f32 %v705, %v708
    %s710 = sld [smem:[#allocation10 + $0x40]]
    %v711 = vstv %s710
    %v712 = vmul.f32 %v711, %v199
    %v713 = vadd.f32 %v709, %v712
    %s714 = sld [smem:[#allocation10 + $0x41]]
    %v715 = vstv %s714
    %v716 = vmul.f32 %v715, %v215
    %v717 = vadd.f32 %v713, %v716
    %s718 = sld [smem:[#allocation10 + $0x42]]
    %v719 = vstv %s718
    %v720 = vmul.f32 %v719, %v231
    %v721 = vadd.f32 %v717, %v720
    %s722 = sld [smem:[#allocation10 + $0x43]]
    %v723 = vstv %s722
    %v724 = vmul.f32 %v723, %v247
    %v725 = vadd.f32 %v721, %v724
    %s726 = sld [smem:[#allocation10 + $0x44]]
    %v727 = vstv %s726
    %v728 = vmul.f32 %v727, %v263
    %v729 = vadd.f32 %v725, %v728
    %s730 = sld [smem:[#allocation10 + $0x45]]
    %v731 = vstv %s730
    %v732 = vmul.f32 %v731, %v279
    %v733 = vadd.f32 %v729, %v732
    %s734 = sld [smem:[#allocation10 + $0x46]]
    %v735 = vstv %s734
    %v736 = vmul.f32 %v735, %v295
    %v737 = vadd.f32 %v733, %v736
    %s738 = sld [smem:[#allocation10 + $0x47]]
    %v739 = vstv %s738
    %v740 = vmul.f32 %v739, %v311
    %v741 = vadd.f32 %v737, %v740
    %s742 = sld [smem:[#allocation10 + $0x48]]
    %v743 = vstv %s742
    %v744 = vmul.f32 %v743, %v327
    %v745 = vadd.f32 %v741, %v744
    %s746 = sld [smem:[#allocation10 + $0x49]]
    %v747 = vstv %s746
    %v748 = vmul.f32 %v747, %v343
    %v749 = vadd.f32 %v745, %v748
    %s750 = sld [smem:[#allocation10 + $0x4a]]
    %v751 = vstv %s750
    %v752 = vmul.f32 %v751, %v359
    %v753 = vadd.f32 %v749, %v752
    %s754 = sld [smem:[#allocation10 + $0x4b]]
    %v755 = vstv %s754
    %v756 = vmul.f32 %v755, %v375
    %v757 = vadd.f32 %v753, %v756
    %s758 = sld [smem:[#allocation10 + $0x4c]]
    %v759 = vstv %s758
    %v760 = vmul.f32 %v759, %v391
    %v761 = vadd.f32 %v757, %v760
    %s762 = sld [smem:[#allocation10 + $0x4d]]
    %v763 = vstv %s762
    %v764 = vmul.f32 %v763, %v407
    %v765 = vadd.f32 %v761, %v764
    %s766 = sld [smem:[#allocation10 + $0x4e]]
    %v767 = vstv %s766
    %v768 = vmul.f32 %v767, %v423
    %v769 = vadd.f32 %v765, %v768
    %s770 = sld [smem:[#allocation10 + $0x4f]]
    %v771 = vstv %s770
    %v772 = vmul.f32 %v771, %v439
    %v773 = vadd.f32 %v769, %v772
    %v774 = vmul.f32 %v773, 0.01
    %v775 = vmax.f32 %v773, %v774
    %s776 = sld [smem:[#allocation11 + $0x4]]
    %s777 = sld [smem:[#allocation10 + $0x50]]
    %v778 = vstv %s777
    %v779 = vmul.f32 %v778, %v135
    %v780 = vstv %s776
    %v781 = vadd.f32 %v780, %v779
    %s782 = sld [smem:[#allocation10 + $0x51]]
    %v783 = vstv %s782
    %v784 = vmul.f32 %v783, %v151
    %v785 = vadd.f32 %v781, %v784
    %s786 = sld [smem:[#allocation10 + $0x52]]
    %v787 = vstv %s786
    %v788 = vmul.f32 %v787, %v167
    %v789 = vadd.f32 %v785, %v788
    %s790 = sld [smem:[#allocation10 + $0x53]]
    %v791 = vstv %s790
    %v792 = vmul.f32 %v791, %v183
    %v793 = vadd.f32 %v789, %v792
    %s794 = sld [smem:[#allocation10 + $0x54]]
    %v795 = vstv %s794
    %v796 = vmul.f32 %v795, %v199
    %v797 = vadd.f32 %v793, %v796
    %s798 = sld [smem:[#allocation10 + $0x55]]
    %v799 = vstv %s798
    %v800 = vmul.f32 %v799, %v215
    %v801 = vadd.f32 %v797, %v800
    %s802 = sld [smem:[#allocation10 + $0x56]]
    %v803 = vstv %s802
    %v804 = vmul.f32 %v803, %v231
    %v805 = vadd.f32 %v801, %v804
    %s806 = sld [smem:[#allocation10 + $0x57]]
    %v807 = vstv %s806
    %v808 = vmul.f32 %v807, %v247
    %v809 = vadd.f32 %v805, %v808
    %s810 = sld [smem:[#allocation10 + $0x58]]
    %v811 = vstv %s810
    %v812 = vmul.f32 %v811, %v263
    %v813 = vadd.f32 %v809, %v812
    %s814 = sld [smem:[#allocation10 + $0x59]]
    %v815 = vstv %s814
    %v816 = vmul.f32 %v815, %v279
    %v817 = vadd.f32 %v813, %v816
    %s818 = sld [smem:[#allocation10 + $0x5a]]
    %v819 = vstv %s818
    %v820 = vmul.f32 %v819, %v295
    %v821 = vadd.f32 %v817, %v820
    %s822 = sld [smem:[#allocation10 + $0x5b]]
    %v823 = vstv %s822
    %v824 = vmul.f32 %v823, %v311
    %v825 = vadd.f32 %v821, %v824
    %s826 = sld [smem:[#allocation10 + $0x5c]]
    %v827 = vstv %s826
    %v828 = vmul.f32 %v827, %v327
    %v829 = vadd.f32 %v825, %v828
    %s830 = sld [smem:[#allocation10 + $0x5d]]
    %v831 = vstv %s830
    %v832 = vmul.f32 %v831, %v343
    %v833 = vadd.f32 %v829, %v832
    %s834 = sld [smem:[#allocation10 + $0x5e]]
    %v835 = vstv %s834
    %v836 = vmul.f32 %v835, %v359
    %v837 = vadd.f32 %v833, %v836
    %s838 = sld [smem:[#allocation10 + $0x5f]]
    %v839 = vstv %s838
    %v840 = vmul.f32 %v839, %v375
    %v841 = vadd.f32 %v837, %v840
    %s842 = sld [smem:[#allocation10 + $0x60]]
    %v843 = vstv %s842
    %v844 = vmul.f32 %v843, %v391
    %v845 = vadd.f32 %v841, %v844
    %s846 = sld [smem:[#allocation10 + $0x61]]
    %v847 = vstv %s846
    %v848 = vmul.f32 %v847, %v407
    %v849 = vadd.f32 %v845, %v848
    %s850 = sld [smem:[#allocation10 + $0x62]]
    %v851 = vstv %s850
    %v852 = vmul.f32 %v851, %v423
    %v853 = vadd.f32 %v849, %v852
    %s854 = sld [smem:[#allocation10 + $0x63]]
    %v855 = vstv %s854
    %v856 = vmul.f32 %v855, %v439
    %v857 = vadd.f32 %v853, %v856
    %v858 = vmul.f32 %v857, 0.01
    %v859 = vmax.f32 %v857, %v858
    %s860 = sld [smem:[#allocation11 + $0x5]]
    %s861 = sld [smem:[#allocation10 + $0x64]]
    %v862 = vstv %s861
    %v863 = vmul.f32 %v862, %v135
    %v864 = vstv %s860
    %v865 = vadd.f32 %v864, %v863
    %s866 = sld [smem:[#allocation10 + $0x65]]
    %v867 = vstv %s866
    %v868 = vmul.f32 %v867, %v151
    %v869 = vadd.f32 %v865, %v868
    %s870 = sld [smem:[#allocation10 + $0x66]]
    %v871 = vstv %s870
    %v872 = vmul.f32 %v871, %v167
    %v873 = vadd.f32 %v869, %v872
    %s874 = sld [smem:[#allocation10 + $0x67]]
    %v875 = vstv %s874
    %v876 = vmul.f32 %v875, %v183
    %v877 = vadd.f32 %v873, %v876
    %s878 = sld [smem:[#allocation10 + $0x68]]
    %v879 = vstv %s878
    %v880 = vmul.f32 %v879, %v199
    %v881 = vadd.f32 %v877, %v880
    %s882 = sld [smem:[#allocation10 + $0x69]]
    %v883 = vstv %s882
    %v884 = vmul.f32 %v883, %v215
    %v885 = vadd.f32 %v881, %v884
    %s886 = sld [smem:[#allocation10 + $0x6a]]
    %v887 = vstv %s886
    %v888 = vmul.f32 %v887, %v231
    %v889 = vadd.f32 %v885, %v888
    %s890 = sld [smem:[#allocation10 + $0x6b]]
    %v891 = vstv %s890
    %v892 = vmul.f32 %v891, %v247
    %v893 = vadd.f32 %v889, %v892
    %s894 = sld [smem:[#allocation10 + $0x6c]]
    %v895 = vstv %s894
    %v896 = vmul.f32 %v895, %v263
    %v897 = vadd.f32 %v893, %v896
    %s898 = sld [smem:[#allocation10 + $0x6d]]
    %v899 = vstv %s898
    %v900 = vmul.f32 %v899, %v279
    %v901 = vadd.f32 %v897, %v900
    %s902 = sld [smem:[#allocation10 + $0x6e]]
    %v903 = vstv %s902
    %v904 = vmul.f32 %v903, %v295
    %v905 = vadd.f32 %v901, %v904
    %s906 = sld [smem:[#allocation10 + $0x6f]]
    %v907 = vstv %s906
    %v908 = vmul.f32 %v907, %v311
    %v909 = vadd.f32 %v905, %v908
    %s910 = sld [smem:[#allocation10 + $0x70]]
    %v911 = vstv %s910
    %v912 = vmul.f32 %v911, %v327
    %v913 = vadd.f32 %v909, %v912
    %s914 = sld [smem:[#allocation10 + $0x71]]
    %v915 = vstv %s914
    %v916 = vmul.f32 %v915, %v343
    %v917 = vadd.f32 %v913, %v916
    %s918 = sld [smem:[#allocation10 + $0x72]]
    %v919 = vstv %s918
    %v920 = vmul.f32 %v919, %v359
    %v921 = vadd.f32 %v917, %v920
    %s922 = sld [smem:[#allocation10 + $0x73]]
    %v923 = vstv %s922
    %v924 = vmul.f32 %v923, %v375
    %v925 = vadd.f32 %v921, %v924
    %s926 = sld [smem:[#allocation10 + $0x74]]
    %v927 = vstv %s926
    %v928 = vmul.f32 %v927, %v391
    %v929 = vadd.f32 %v925, %v928
    %s930 = sld [smem:[#allocation10 + $0x75]]
    %v931 = vstv %s930
    %v932 = vmul.f32 %v931, %v407
    %v933 = vadd.f32 %v929, %v932
    %s934 = sld [smem:[#allocation10 + $0x76]]
    %v935 = vstv %s934
    %v936 = vmul.f32 %v935, %v423
    %v937 = vadd.f32 %v933, %v936
    %s938 = sld [smem:[#allocation10 + $0x77]]
    %v939 = vstv %s938
    %v940 = vmul.f32 %v939, %v439
    %v941 = vadd.f32 %v937, %v940
    %v942 = vmul.f32 %v941, 0.01
    %v943 = vmax.f32 %v941, %v942
    %s944 = sld [smem:[#allocation11 + $0x6]]
    %s945 = sld [smem:[#allocation10 + $0x78]]
    %v946 = vstv %s945
    %v947 = vmul.f32 %v946, %v135
    %v948 = vstv %s944
    %v949 = vadd.f32 %v948, %v947
    %s950 = sld [smem:[#allocation10 + $0x79]]
    %v951 = vstv %s950
    %v952 = vmul.f32 %v951, %v151
    %v953 = vadd.f32 %v949, %v952
    %s954 = sld [smem:[#allocation10 + $0x7a]]
    %v955 = vstv %s954
    %v956 = vmul.f32 %v955, %v167
    %v957 = vadd.f32 %v953, %v956
    %s958 = sld [smem:[#allocation10 + $0x7b]]
    %v959 = vstv %s958
    %v960 = vmul.f32 %v959, %v183
    %v961 = vadd.f32 %v957, %v960
    %s962 = sld [smem:[#allocation10 + $0x7c]]
    %v963 = vstv %s962
    %v964 = vmul.f32 %v963, %v199
    %v965 = vadd.f32 %v961, %v964
    %s966 = sld [smem:[#allocation10 + $0x7d]]
    %v967 = vstv %s966
    %v968 = vmul.f32 %v967, %v215
    %v969 = vadd.f32 %v965, %v968
    %s970 = sld [smem:[#allocation10 + $0x7e]]
    %v971 = vstv %s970
    %v972 = vmul.f32 %v971, %v231
    %v973 = vadd.f32 %v969, %v972
    %s974 = sld [smem:[#allocation10 + $0x7f]]
    %v975 = vstv %s974
    %v976 = vmul.f32 %v975, %v247
    %v977 = vadd.f32 %v973, %v976
    %s978 = sld [smem:[#allocation10 + $0x80]]
    %v979 = vstv %s978
    %v980 = vmul.f32 %v979, %v263
    %v981 = vadd.f32 %v977, %v980
    %s982 = sld [smem:[#allocation10 + $0x81]]
    %v983 = vstv %s982
    %v984 = vmul.f32 %v983, %v279
    %v985 = vadd.f32 %v981, %v984
    %s986 = sld [smem:[#allocation10 + $0x82]]
    %v987 = vstv %s986
    %v988 = vmul.f32 %v987, %v295
    %v989 = vadd.f32 %v985, %v988
    %s990 = sld [smem:[#allocation10 + $0x83]]
    %v991 = vstv %s990
    %v992 = vmul.f32 %v991, %v311
    %v993 = vadd.f32 %v989, %v992
    %s994 = sld [smem:[#allocation10 + $0x84]]
    %v995 = vstv %s994
    %v996 = vmul.f32 %v995, %v327
    %v997 = vadd.f32 %v993, %v996
    %s998 = sld [smem:[#allocation10 + $0x85]]
    %v999 = vstv %s998
    %v1000 = vmul.f32 %v999, %v343
    %v1001 = vadd.f32 %v997, %v1000
    %s1002 = sld [smem:[#allocation10 + $0x86]]
    %v1003 = vstv %s1002
    %v1004 = vmul.f32 %v1003, %v359
    %v1005 = vadd.f32 %v1001, %v1004
    %s1006 = sld [smem:[#allocation10 + $0x87]]
    %v1007 = vstv %s1006
    %v1008 = vmul.f32 %v1007, %v375
    %v1009 = vadd.f32 %v1005, %v1008
    %s1010 = sld [smem:[#allocation10 + $0x88]]
    %v1011 = vstv %s1010
    %v1012 = vmul.f32 %v1011, %v391
    %v1013 = vadd.f32 %v1009, %v1012
    %s1014 = sld [smem:[#allocation10 + $0x89]]
    %v1015 = vstv %s1014
    %v1016 = vmul.f32 %v1015, %v407
    %v1017 = vadd.f32 %v1013, %v1016
    %s1018 = sld [smem:[#allocation10 + $0x8a]]
    %v1019 = vstv %s1018
    %v1020 = vmul.f32 %v1019, %v423
    %v1021 = vadd.f32 %v1017, %v1020
    %s1022 = sld [smem:[#allocation10 + $0x8b]]
    %v1023 = vstv %s1022
    %v1024 = vmul.f32 %v1023, %v439
    %v1025 = vadd.f32 %v1021, %v1024
    %v1026 = vmul.f32 %v1025, 0.01
    %v1027 = vmax.f32 %v1025, %v1026
    %s1028 = sld [smem:[#allocation11 + $0x7]]
    %s1029 = sld [smem:[#allocation10 + $0x8c]]
    %v1030 = vstv %s1029
    %v1031 = vmul.f32 %v1030, %v135
    %v1032 = vstv %s1028
    %v1033 = vadd.f32 %v1032, %v1031
    %s1034 = sld [smem:[#allocation10 + $0x8d]]
    %v1035 = vstv %s1034
    %v1036 = vmul.f32 %v1035, %v151
    %v1037 = vadd.f32 %v1033, %v1036
    %s1038 = sld [smem:[#allocation10 + $0x8e]]
    %v1039 = vstv %s1038
    %v1040 = vmul.f32 %v1039, %v167
    %v1041 = vadd.f32 %v1037, %v1040
    %s1042 = sld [smem:[#allocation10 + $0x8f]]
    %v1043 = vstv %s1042
    %v1044 = vmul.f32 %v1043, %v183
    %v1045 = vadd.f32 %v1041, %v1044
    %s1046 = sld [smem:[#allocation10 + $0x90]]
    %v1047 = vstv %s1046
    %v1048 = vmul.f32 %v1047, %v199
    %v1049 = vadd.f32 %v1045, %v1048
    %s1050 = sld [smem:[#allocation10 + $0x91]]
    %v1051 = vstv %s1050
    %v1052 = vmul.f32 %v1051, %v215
    %v1053 = vadd.f32 %v1049, %v1052
    %s1054 = sld [smem:[#allocation10 + $0x92]]
    %v1055 = vstv %s1054
    %v1056 = vmul.f32 %v1055, %v231
    %v1057 = vadd.f32 %v1053, %v1056
    %s1058 = sld [smem:[#allocation10 + $0x93]]
    %v1059 = vstv %s1058
    %v1060 = vmul.f32 %v1059, %v247
    %v1061 = vadd.f32 %v1057, %v1060
    %s1062 = sld [smem:[#allocation10 + $0x94]]
    %v1063 = vstv %s1062
    %v1064 = vmul.f32 %v1063, %v263
    %v1065 = vadd.f32 %v1061, %v1064
    %s1066 = sld [smem:[#allocation10 + $0x95]]
    %v1067 = vstv %s1066
    %v1068 = vmul.f32 %v1067, %v279
    %v1069 = vadd.f32 %v1065, %v1068
    %s1070 = sld [smem:[#allocation10 + $0x96]]
    %v1071 = vstv %s1070
    %v1072 = vmul.f32 %v1071, %v295
    %v1073 = vadd.f32 %v1069, %v1072
    %s1074 = sld [smem:[#allocation10 + $0x97]]
    %v1075 = vstv %s1074
    %v1076 = vmul.f32 %v1075, %v311
    %v1077 = vadd.f32 %v1073, %v1076
    %s1078 = sld [smem:[#allocation10 + $0x98]]
    %v1079 = vstv %s1078
    %v1080 = vmul.f32 %v1079, %v327
    %v1081 = vadd.f32 %v1077, %v1080
    %s1082 = sld [smem:[#allocation10 + $0x99]]
    %v1083 = vstv %s1082
    %v1084 = vmul.f32 %v1083, %v343
    %v1085 = vadd.f32 %v1081, %v1084
    %s1086 = sld [smem:[#allocation10 + $0x9a]]
    %v1087 = vstv %s1086
    %v1088 = vmul.f32 %v1087, %v359
    %v1089 = vadd.f32 %v1085, %v1088
    %s1090 = sld [smem:[#allocation10 + $0x9b]]
    %v1091 = vstv %s1090
    %v1092 = vmul.f32 %v1091, %v375
    %v1093 = vadd.f32 %v1089, %v1092
    %s1094 = sld [smem:[#allocation10 + $0x9c]]
    %v1095 = vstv %s1094
    %v1096 = vmul.f32 %v1095, %v391
    %v1097 = vadd.f32 %v1093, %v1096
    %s1098 = sld [smem:[#allocation10 + $0x9d]]
    %v1099 = vstv %s1098
    %v1100 = vmul.f32 %v1099, %v407
    %v1101 = vadd.f32 %v1097, %v1100
    %s1102 = sld [smem:[#allocation10 + $0x9e]]
    %v1103 = vstv %s1102
    %v1104 = vmul.f32 %v1103, %v423
    %v1105 = vadd.f32 %v1101, %v1104
    %s1106 = sld [smem:[#allocation10 + $0x9f]]
    %v1107 = vstv %s1106
    %v1108 = vmul.f32 %v1107, %v439
    %v1109 = vadd.f32 %v1105, %v1108
    %v1110 = vmul.f32 %v1109, 0.01
    %v1111 = vmax.f32 %v1109, %v1110
    %s1112 = sld [smem:[#allocation11 + $0x8]]
    %s1113 = sld [smem:[#allocation10 + $0xa0]]
    %v1114 = vstv %s1113
    %v1115 = vmul.f32 %v1114, %v135
    %v1116 = vstv %s1112
    %v1117 = vadd.f32 %v1116, %v1115
    %s1118 = sld [smem:[#allocation10 + $0xa1]]
    %v1119 = vstv %s1118
    %v1120 = vmul.f32 %v1119, %v151
    %v1121 = vadd.f32 %v1117, %v1120
    %s1122 = sld [smem:[#allocation10 + $0xa2]]
    %v1123 = vstv %s1122
    %v1124 = vmul.f32 %v1123, %v167
    %v1125 = vadd.f32 %v1121, %v1124
    %s1126 = sld [smem:[#allocation10 + $0xa3]]
    %v1127 = vstv %s1126
    %v1128 = vmul.f32 %v1127, %v183
    %v1129 = vadd.f32 %v1125, %v1128
    %s1130 = sld [smem:[#allocation10 + $0xa4]]
    %v1131 = vstv %s1130
    %v1132 = vmul.f32 %v1131, %v199
    %v1133 = vadd.f32 %v1129, %v1132
    %s1134 = sld [smem:[#allocation10 + $0xa5]]
    %v1135 = vstv %s1134
    %v1136 = vmul.f32 %v1135, %v215
    %v1137 = vadd.f32 %v1133, %v1136
    %s1138 = sld [smem:[#allocation10 + $0xa6]]
    %v1139 = vstv %s1138
    %v1140 = vmul.f32 %v1139, %v231
    %v1141 = vadd.f32 %v1137, %v1140
    %s1142 = sld [smem:[#allocation10 + $0xa7]]
    %v1143 = vstv %s1142
    %v1144 = vmul.f32 %v1143, %v247
    %v1145 = vadd.f32 %v1141, %v1144
    %s1146 = sld [smem:[#allocation10 + $0xa8]]
    %v1147 = vstv %s1146
    %v1148 = vmul.f32 %v1147, %v263
    %v1149 = vadd.f32 %v1145, %v1148
    %s1150 = sld [smem:[#allocation10 + $0xa9]]
    %v1151 = vstv %s1150
    %v1152 = vmul.f32 %v1151, %v279
    %v1153 = vadd.f32 %v1149, %v1152
    %s1154 = sld [smem:[#allocation10 + $0xaa]]
    %v1155 = vstv %s1154
    %v1156 = vmul.f32 %v1155, %v295
    %v1157 = vadd.f32 %v1153, %v1156
    %s1158 = sld [smem:[#allocation10 + $0xab]]
    %v1159 = vstv %s1158
    %v1160 = vmul.f32 %v1159, %v311
    %v1161 = vadd.f32 %v1157, %v1160
    %s1162 = sld [smem:[#allocation10 + $0xac]]
    %v1163 = vstv %s1162
    %v1164 = vmul.f32 %v1163, %v327
    %v1165 = vadd.f32 %v1161, %v1164
    %s1166 = sld [smem:[#allocation10 + $0xad]]
    %v1167 = vstv %s1166
    %v1168 = vmul.f32 %v1167, %v343
    %v1169 = vadd.f32 %v1165, %v1168
    %s1170 = sld [smem:[#allocation10 + $0xae]]
    %v1171 = vstv %s1170
    %v1172 = vmul.f32 %v1171, %v359
    %v1173 = vadd.f32 %v1169, %v1172
    %s1174 = sld [smem:[#allocation10 + $0xaf]]
    %v1175 = vstv %s1174
    %v1176 = vmul.f32 %v1175, %v375
    %v1177 = vadd.f32 %v1173, %v1176
    %s1178 = sld [smem:[#allocation10 + $0xb0]]
    %v1179 = vstv %s1178
    %v1180 = vmul.f32 %v1179, %v391
    %v1181 = vadd.f32 %v1177, %v1180
    %s1182 = sld [smem:[#allocation10 + $0xb1]]
    %v1183 = vstv %s1182
    %v1184 = vmul.f32 %v1183, %v407
    %v1185 = vadd.f32 %v1181, %v1184
    %s1186 = sld [smem:[#allocation10 + $0xb2]]
    %v1187 = vstv %s1186
    %v1188 = vmul.f32 %v1187, %v423
    %v1189 = vadd.f32 %v1185, %v1188
    %s1190 = sld [smem:[#allocation10 + $0xb3]]
    %v1191 = vstv %s1190
    %v1192 = vmul.f32 %v1191, %v439
    %v1193 = vadd.f32 %v1189, %v1192
    %v1194 = vmul.f32 %v1193, 0.01
    %v1195 = vmax.f32 %v1193, %v1194
    %s1196 = sld [smem:[#allocation11 + $0x9]]
    %s1197 = sld [smem:[#allocation10 + $0xb4]]
    %v1198 = vstv %s1197
    %v1199 = vmul.f32 %v1198, %v135
    %v1200 = vstv %s1196
    %v1201 = vadd.f32 %v1200, %v1199
    %s1202 = sld [smem:[#allocation10 + $0xb5]]
    %v1203 = vstv %s1202
    %v1204 = vmul.f32 %v1203, %v151
    %v1205 = vadd.f32 %v1201, %v1204
    %s1206 = sld [smem:[#allocation10 + $0xb6]]
    %v1207 = vstv %s1206
    %v1208 = vmul.f32 %v1207, %v167
    %v1209 = vadd.f32 %v1205, %v1208
    %s1210 = sld [smem:[#allocation10 + $0xb7]]
    %v1211 = vstv %s1210
    %v1212 = vmul.f32 %v1211, %v183
    %v1213 = vadd.f32 %v1209, %v1212
    %s1214 = sld [smem:[#allocation10 + $0xb8]]
    %v1215 = vstv %s1214
    %v1216 = vmul.f32 %v1215, %v199
    %v1217 = vadd.f32 %v1213, %v1216
    %s1218 = sld [smem:[#allocation10 + $0xb9]]
    %v1219 = vstv %s1218
    %v1220 = vmul.f32 %v1219, %v215
    %v1221 = vadd.f32 %v1217, %v1220
    %s1222 = sld [smem:[#allocation10 + $0xba]]
    %v1223 = vstv %s1222
    %v1224 = vmul.f32 %v1223, %v231
    %v1225 = vadd.f32 %v1221, %v1224
    %s1226 = sld [smem:[#allocation10 + $0xbb]]
    %v1227 = vstv %s1226
    %v1228 = vmul.f32 %v1227, %v247
    %v1229 = vadd.f32 %v1225, %v1228
    %s1230 = sld [smem:[#allocation10 + $0xbc]]
    %v1231 = vstv %s1230
    %v1232 = vmul.f32 %v1231, %v263
    %v1233 = vadd.f32 %v1229, %v1232
    %s1234 = sld [smem:[#allocation10 + $0xbd]]
    %v1235 = vstv %s1234
    %v1236 = vmul.f32 %v1235, %v279
    %v1237 = vadd.f32 %v1233, %v1236
    %s1238 = sld [smem:[#allocation10 + $0xbe]]
    %v1239 = vstv %s1238
    %v1240 = vmul.f32 %v1239, %v295
    %v1241 = vadd.f32 %v1237, %v1240
    %s1242 = sld [smem:[#allocation10 + $0xbf]]
    %v1243 = vstv %s1242
    %v1244 = vmul.f32 %v1243, %v311
    %v1245 = vadd.f32 %v1241, %v1244
    %s1246 = sld [smem:[#allocation10 + $0xc0]]
    %v1247 = vstv %s1246
    %v1248 = vmul.f32 %v1247, %v327
    %v1249 = vadd.f32 %v1245, %v1248
    %s1250 = sld [smem:[#allocation10 + $0xc1]]
    %v1251 = vstv %s1250
    %v1252 = vmul.f32 %v1251, %v343
    %v1253 = vadd.f32 %v1249, %v1252
    %s1254 = sld [smem:[#allocation10 + $0xc2]]
    %v1255 = vstv %s1254
    %v1256 = vmul.f32 %v1255, %v359
    %v1257 = vadd.f32 %v1253, %v1256
    %s1258 = sld [smem:[#allocation10 + $0xc3]]
    %v1259 = vstv %s1258
    %v1260 = vmul.f32 %v1259, %v375
    %v1261 = vadd.f32 %v1257, %v1260
    %s1262 = sld [smem:[#allocation10 + $0xc4]]
    %v1263 = vstv %s1262
    %v1264 = vmul.f32 %v1263, %v391
    %v1265 = vadd.f32 %v1261, %v1264
    %s1266 = sld [smem:[#allocation10 + $0xc5]]
    %v1267 = vstv %s1266
    %v1268 = vmul.f32 %v1267, %v407
    %v1269 = vadd.f32 %v1265, %v1268
    %s1270 = sld [smem:[#allocation10 + $0xc6]]
    %v1271 = vstv %s1270
    %v1272 = vmul.f32 %v1271, %v423
    %v1273 = vadd.f32 %v1269, %v1272
    %s1274 = sld [smem:[#allocation10 + $0xc7]]
    %v1275 = vstv %s1274
    %v1276 = vmul.f32 %v1275, %v439
    %v1277 = vadd.f32 %v1273, %v1276
    %v1278 = vmul.f32 %v1277, 0.01
    %v1279 = vmax.f32 %v1277, %v1278
    %s1280 = sld [smem:[#allocation14]]
    %s1281 = sld [smem:[#allocation13]]
    %v1282 = vstv %s1281
    %v1283 = vmul.f32 %v1282, %v523
    %v1284 = vstv %s1280
    %v1285 = vadd.f32 %v1284, %v1283
    %s1286 = sld [smem:[#allocation13 + $0x1]]
    %v1287 = vstv %s1286
    %v1288 = vmul.f32 %v1287, %v607
    %v1289 = vadd.f32 %v1285, %v1288
    %s1290 = sld [smem:[#allocation13 + $0x2]]
    %v1291 = vstv %s1290
    %v1292 = vmul.f32 %v1291, %v691
    %v1293 = vadd.f32 %v1289, %v1292
    %s1294 = sld [smem:[#allocation13 + $0x3]]
    %v1295 = vstv %s1294
    %v1296 = vmul.f32 %v1295, %v775
    %v1297 = vadd.f32 %v1293, %v1296
    %s1298 = sld [smem:[#allocation13 + $0x4]]
    %v1299 = vstv %s1298
    %v1300 = vmul.f32 %v1299, %v859
    %v1301 = vadd.f32 %v1297, %v1300
    %s1302 = sld [smem:[#allocation13 + $0x5]]
    %v1303 = vstv %s1302
    %v1304 = vmul.f32 %v1303, %v943
    %v1305 = vadd.f32 %v1301, %v1304
    %s1306 = sld [smem:[#allocation13 + $0x6]]
    %v1307 = vstv %s1306
    %v1308 = vmul.f32 %v1307, %v1027
    %v1309 = vadd.f32 %v1305, %v1308
    %s1310 = sld [smem:[#allocation13 + $0x7]]
    %v1311 = vstv %s1310
    %v1312 = vmul.f32 %v1311, %v1111
    %v1313 = vadd.f32 %v1309, %v1312
    %s1314 = sld [smem:[#allocation13 + $0x8]]
    %v1315 = vstv %s1314
    %v1316 = vmul.f32 %v1315, %v1195
    %v1317 = vadd.f32 %v1313, %v1316
    %s1318 = sld [smem:[#allocation13 + $0x9]]
    %v1319 = vstv %s1318
    %v1320 = vmul.f32 %v1319, %v1279
    %v1321 = vadd.f32 %v1317, %v1320
    %1322 = vst [vmem:[#allocation16] sm:$0xff] %v1321
    %s1323 = sld [smem:[#allocation14 + $0x1]]
    %s1324 = sld [smem:[#allocation13 + $0xa]]
    %v1325 = vstv %s1324
    %v1326 = vmul.f32 %v1325, %v523
    %v1327 = vstv %s1323
    %v1328 = vadd.f32 %v1327, %v1326
    %s1329 = sld [smem:[#allocation13 + $0xb]]
    %v1330 = vstv %s1329
    %v1331 = vmul.f32 %v1330, %v607
    %v1332 = vadd.f32 %v1328, %v1331
    %s1333 = sld [smem:[#allocation13 + $0xc]]
    %v1334 = vstv %s1333
    %v1335 = vmul.f32 %v1334, %v691
    %v1336 = vadd.f32 %v1332, %v1335
    %s1337 = sld [smem:[#allocation13 + $0xd]]
    %v1338 = vstv %s1337
    %v1339 = vmul.f32 %v1338, %v775
    %v1340 = vadd.f32 %v1336, %v1339
    %s1341 = sld [smem:[#allocation13 + $0xe]]
    %v1342 = vstv %s1341
    %v1343 = vmul.f32 %v1342, %v859
    %v1344 = vadd.f32 %v1340, %v1343
    %s1345 = sld [smem:[#allocation13 + $0xf]]
    %v1346 = vstv %s1345
    %v1347 = vmul.f32 %v1346, %v943
    %v1348 = vadd.f32 %v1344, %v1347
    %s1349 = sld [smem:[#allocation13 + $0x10]]
    %v1350 = vstv %s1349
    %v1351 = vmul.f32 %v1350, %v1027
    %v1352 = vadd.f32 %v1348, %v1351
    %s1353 = sld [smem:[#allocation13 + $0x11]]
    %v1354 = vstv %s1353
    %v1355 = vmul.f32 %v1354, %v1111
    %v1356 = vadd.f32 %v1352, %v1355
    %s1357 = sld [smem:[#allocation13 + $0x12]]
    %v1358 = vstv %s1357
    %v1359 = vmul.f32 %v1358, %v1195
    %v1360 = vadd.f32 %v1356, %v1359
    %s1361 = sld [smem:[#allocation13 + $0x13]]
    %v1362 = vstv %s1361
    %v1363 = vmul.f32 %v1362, %v1279
    %v1364 = vadd.f32 %v1360, %v1363
    %s1365 = scalar_lea.vmem [#allocation16], 8
    %1366 = vst [vmem:[%s1365] sm:$0xff] %v1364
    %s1367 = sld [smem:[#allocation14 + $0x2]]
    %s1368 = sld [smem:[#allocation13 + $0x14]]
    %v1369 = vstv %s1368
    %v1370 = vmul.f32 %v1369, %v523
    %v1371 = vstv %s1367
    %v1372 = vadd.f32 %v1371, %v1370
    %s1373 = sld [smem:[#allocation13 + $0x15]]
    %v1374 = vstv %s1373
    %v1375 = vmul.f32 %v1374, %v607
    %v1376 = vadd.f32 %v1372, %v1375
    %s1377 = sld [smem:[#allocation13 + $0x16]]
    %v1378 = vstv %s1377
    %v1379 = vmul.f32 %v1378, %v691
    %v1380 = vadd.f32 %v1376, %v1379
    %s1381 = sld [smem:[#allocation13 + $0x17]]
    %v1382 = vstv %s1381
    %v1383 = vmul.f32 %v1382, %v775
    %v1384 = vadd.f32 %v1380, %v1383
    %s1385 = sld [smem:[#allocation13 + $0x18]]
    %v1386 = vstv %s1385
    %v1387 = vmul.f32 %v1386, %v859
    %v1388 = vadd.f32 %v1384, %v1387
    %s1389 = sld [smem:[#allocation13 + $0x19]]
    %v1390 = vstv %s1389
    %v1391 = vmul.f32 %v1390, %v943
    %v1392 = vadd.f32 %v1388, %v1391
    %s1393 = sld [smem:[#allocation13 + $0x1a]]
    %v1394 = vstv %s1393
    %v1395 = vmul.f32 %v1394, %v1027
    %v1396 = vadd.f32 %v1392, %v1395
    %s1397 = sld [smem:[#allocation13 + $0x1b]]
    %v1398 = vstv %s1397
    %v1399 = vmul.f32 %v1398, %v1111
    %v1400 = vadd.f32 %v1396, %v1399
    %s1401 = sld [smem:[#allocation13 + $0x1c]]
    %v1402 = vstv %s1401
    %v1403 = vmul.f32 %v1402, %v1195
    %v1404 = vadd.f32 %v1400, %v1403
    %s1405 = sld [smem:[#allocation13 + $0x1d]]
    %v1406 = vstv %s1405
    %v1407 = vmul.f32 %v1406, %v1279
    %v1408 = vadd.f32 %v1404, %v1407
    %s1409 = scalar_lea.vmem [#allocation16], 16
    %1410 = vst [vmem:[%s1409] sm:$0xff] %v1408
    // Predicated region
    $region58: #{tpu_custom_call.1} parent=1 // pred_check
      _
    $region59: #{tpu_custom_call.1} parent=1 // pred_check_branch
      %1412 = sbr.rel (0) target = $region61
    $region60: #{tpu_custom_call.1} parent=1 // pred_region
      %1414 = vsyncadd [#allocation4], 0
      %s1415 = sshll.u32 [#allocation16], 4
      %s1416 = int_to_ptr.vmem [resolvable:$true] %s1415
      %s1417 = sshll.u32 %s7, 4
      %s1418 = int_to_ptr.hbm [resolvable:$true] %s1417
      %1423 = dma.vmem_to_hbm [thread:$0]  %s1416, 384, %s1418, [#allocation4], 128, 128, 8
    $region61: #{tpu_custom_call.1} parent=1 // pred_fallthru
      _
    // Predicated region
    $region62: #{tpu_custom_call.1} parent=1 // pred_check
      _
    $region63: #{tpu_custom_call.1} parent=1 // pred_check_branch
      %1425 = sbr.rel (0) target = $region65
    $region64: #{tpu_custom_call.1} parent=1 // pred_region
      %1427 = dma.done [#allocation4], 384
    $region65: #{tpu_custom_call.1} parent=1 // pred_fallthru
      _
    %1428 = vsyncpa [#allocation3], 1
    %1429 = vsyncpa [#allocation4], 1
    %1430 = vsyncpa [#allocation5], 1
    %1431 = vsyncpa [#allocation9], 1
    %1432 = vsyncpa [#allocation6], 1
    %1433 = vsyncpa [#allocation12], 1
    %1434 = vsyncpa [#allocation15], 1

</llo_original>
